<compile_context>
chip_gen: v7x
topology: tpu7x:2x2x1
jax: 0.10.0
libtpu: 0.0.40
codegen_flags: <defaults>
</compile_context>

<pallas_src>
import functools

import jax
import jax.numpy as jnp
from jax import lax
from jax.experimental import pallas as pl
from jax.experimental.pallas import tpu as pltpu


# --------------------------- per-generation budgets ---------------------------

@functools.lru_cache(maxsize=None)
def _vmem_limit_bytes():
    """Scoped-VMEM budget derived from the chip (v5e/v6e: 128 MiB, v7x: 64 MiB)."""
    try:
        cap = int(pltpu.get_tpu_info().vmem_capacity_bytes)
    except Exception:
        cap = 64 * 1024 * 1024          # conservative fallback
    return max(32 * 1024 * 1024, min(int(cap * 0.7), 100 * 1024 * 1024))


# ------------------------------ tile pickers ------------------------------

def _pick_row_tile(m, d, resident_weight_bytes, target=1024):
    """Row tile for [M, D] slabs.

    Largest multiple-of-16 tile (bf16-friendly sublane count) that fits the
    activation side of the VMEM budget next to the (double-buffered) resident
    weights, while still leaving >=2 grid steps when M allows it so v7x's
    second TensorCore is used ("parallel" grid axis).
    """
    budget = _vmem_limit_bytes() - 2 * resident_weight_bytes - 8 * 1024 * 1024
    # rough per-row activation bytes: double-buffered ctx(bf16)/x(f32)/out(f32)
    # tiles + f32 accumulator scratch + live LN/FFN temporaries.
    per_row = 32 * d + 4 * 512
    cap = max(16, (max(budget, 4 * 1024 * 1024) // per_row) // 16 * 16)
    tm = min(m, target, cap)
    if tm == m and m >= 32:
        tm = m // 2                      # guarantee >=2 grid steps
    if tm < m:
        tm = max(16, (tm // 16) * 16)    # bf16 tile-friendly sublanes
    return tm


def _pick_group_block(g, s, dph, target_lanes=512, max_tile_bytes=8 * 1024 * 1024):
    """Heads per attention grid step: fill lanes / bound VMEM; must divide G;
    keep >=2 grid steps so both v7x TensorCores get work."""
    want = max(1, target_lanes // max(dph, 1))
    per_g_bytes = 4 * s * dph * 2 + 2 * s * s * 4   # bf16 q/k/v/ctx + f32 scores/attn
    want = min(want, max(1, max_tile_bytes // max(per_g_bytes, 1)))
    if g >= 2:
        want = min(want, max(1, g // 2))
    gb = 1
    for cand in range(1, g + 1):
        if g % cand == 0 and cand <= want:
            gb = cand
    return gb


def _pick_ffn_chunk(f, tm, max_hidden_bytes=2 * 1024 * 1024):
    """F-chunk for the in-kernel FFN loop: keeps the [tm, fc] f32 hidden small."""
    assert f % 128 == 0, "ffn_dim must be a multiple of 128 (lane alignment)"
    target = max(128, (max_hidden_bytes // (4 * max(tm, 1))) // 128 * 128)
    best = 128
    for c in range(128, f + 1, 128):
        if f % c == 0 and c <= target:
            best = c
    return best


# ----------------------------- Pallas kernels -----------------------------

def _qkv_kernel(x_ref, w_ref, b_ref, q_ref, k_ref, v_ref):
    # One fused [TM, D] @ [D, 3D] MXU matmul (bf16 operands, f32 accumulate).
    # q/k/v are stored as bf16: downstream they are only ever MXU operands.
    d = q_ref.shape[-1]
    x = x_ref[...].astype(jnp.bfloat16)
    qkv = jnp.dot(x, w_ref[...], preferred_element_type=jnp.float32) + b_ref[...]
    qkv = qkv.astype(jnp.bfloat16)
    q_ref[...] = qkv[:, :d]                 # 128-aligned lane slices (D % 128 == 0)
    k_ref[...] = qkv[:, d:2 * d]
    v_ref[...] = qkv[:, 2 * d:]


def qkv_proj(x2d, w_qkv, b_qkv, tm):
    M, D = x2d.shape
    D3 = w_qkv.shape[1]
    Do = D3 // 3
    assert D % 128 == 0 and Do % 128 == 0, "model_dim must be a multiple of 128"
    row = lambda i: (i, 0)
    const = lambda i: (0, 0)
    sd = jax.ShapeDtypeStruct((M, Do), jnp.bfloat16)
    return pl.pallas_call(
        _qkv_kernel,
        grid=(pl.cdiv(M, tm),),
        in_specs=[pl.BlockSpec((tm, D), row),      # activations (tiled over M)
                  pl.BlockSpec((D, D3), const),    # fused W_qkv (bf16, VMEM-resident)
                  pl.BlockSpec((1, D3), const)],   # fused bias (f32)
        out_specs=(pl.BlockSpec((tm, Do), row),
                   pl.BlockSpec((tm, Do), row),
                   pl.BlockSpec((tm, Do), row)),
        out_shape=(sd, sd, sd),
        compiler_params=pltpu.CompilerParams(
            dimension_semantics=("parallel",),
            vmem_limit_bytes=_vmem_limit_bytes()),
    )(x2d, w_qkv, b_qkv)


def _attn_kernel(scale, q_ref, k_ref, v_ref, ctx_ref, attn_ref):
    q = q_ref[...]                                   # [GB, S, dph] bf16
    k = k_ref[...]
    v = v_ref[...]
    s = jnp.einsum('gqd,gkd->gqk', q, k, preferred_element_type=jnp.float32)
    s = s * scale                                    # scale applied in f32 (exact)
    m = jnp.max(s, axis=-1, keepdims=True)
    p = jnp.exp(s - m)
    denom = jnp.sum(p, axis=-1, keepdims=True)
    attn = p / denom                                 # exact f32 softmax (returned map)
    attn_ref[...] = attn
    # ctx uses bf16 attn/v MXU operands (~1e-3 rel. error vs pure-f32 reference).
    ctx_ref[...] = jnp.einsum('gqk,gkd->gqd', attn.astype(jnp.bfloat16), v,
                              preferred_element_type=jnp.float32).astype(jnp.bfloat16)


def scaled_dot_attention(q, k, v, scale, gb):
    G, S, dph = q.shape
    kern = functools.partial(_attn_kernel, scale)
    blk = lambda g: (g, 0, 0)
    return pl.pallas_call(
        kern,
        grid=(G // gb,),
        in_specs=[pl.BlockSpec((gb, S, dph), blk)] * 3,
        out_specs=(pl.BlockSpec((gb, S, dph), blk),
                   pl.BlockSpec((gb, S, S), blk)),
        out_shape=(jax.ShapeDtypeStruct((G, S, dph), jnp.bfloat16),   # ctx (bf16)
                   jax.ShapeDtypeStruct((G, S, S), jnp.float32)),     # attention map
        compiler_params=pltpu.CompilerParams(
            dimension_semantics=("parallel",),
            vmem_limit_bytes=_vmem_limit_bytes()),
    )(q, k, v)


def _layernorm(y, gamma, beta, eps=1e-5):
    mean = jnp.mean(y, axis=-1, keepdims=True)
    var = jnp.mean(jnp.square(y - mean), axis=-1, keepdims=True)
    return (y - mean) * lax.rsqrt(var + eps) * gamma + beta


def _out_ffn_kernel(fc, ctx_ref, x_ref, wo_ref, bo_ref, g1_ref, be1_ref,
                    w1_ref, b1_ref, w2_ref, b2_ref, g2_ref, be2_ref,
                    out_ref, f_acc_ref):
    # final projection + residual + layernorm (MultiHeadAttention tail)
    o = jnp.dot(ctx_ref[...], wo_ref[...], preferred_element_type=jnp.float32) + bo_ref[...]
    y = _layernorm(x_ref[...] + o, g1_ref[...], be1_ref[...])
    # position-wise FFN (two 1x1 convs == two per-position linears); the hidden
    # dim is walked in static F-chunks so only a [tm, fc] f32 hidden is live.
    yb = y.astype(jnp.bfloat16)
    f_acc_ref[...] = jnp.zeros_like(f_acc_ref)
    F = w1_ref.shape[1]
    for c in range(F // fc):                         # static unroll, static slices
        lo = c * fc
        h = jnp.maximum(
            jnp.dot(yb, w1_ref[:, lo:lo + fc],
                    preferred_element_type=jnp.float32) + b1_ref[:, lo:lo + fc],
            0.0)
        f_acc_ref[...] += jnp.dot(h.astype(jnp.bfloat16), w2_ref[lo:lo + fc, :],
                                  preferred_element_type=jnp.float32)
    f = f_acc_ref[...] + b2_ref[...]
    out_ref[...] = _layernorm(y + f, g2_ref[...], be2_ref[...])


def out_proj_ffn(ctx2d, x2d, p, tm):
    M, D = x2d.shape
    F = p['w1'].shape[1]
    assert D % 128 == 0, "model_dim must be a multiple of 128"
    fc = _pick_ffn_chunk(F, tm)
    row = lambda i: (i, 0)
    const = lambda i: (0, 0)
    return pl.pallas_call(
        functools.partial(_out_ffn_kernel, fc),
        grid=(pl.cdiv(M, tm),),
        in_specs=[pl.BlockSpec((tm, D), row),     # ctx (bf16, tiled)
                  pl.BlockSpec((tm, D), row),     # residual input (f32, tiled)
                  pl.BlockSpec((D, D), const),    # wo (bf16, resident)
                  pl.BlockSpec((1, D), const),    # bo
                  pl.BlockSpec((1, D), const),    # ln1 gamma
                  pl.BlockSpec((1, D), const),    # ln1 beta
                  pl.BlockSpec((D, F), const),    # w1 (bf16, resident)
                  pl.BlockSpec((1, F), const),    # b1
                  pl.BlockSpec((F, D), const),    # w2 (bf16, resident)
                  pl.BlockSpec((1, D), const),    # b2
                  pl.BlockSpec((1, D), const),    # ln2 gamma
                  pl.BlockSpec((1, D), const)],   # ln2 beta
        out_specs=pl.BlockSpec((tm, D), row),     # lane-dense D-wide f32 store
        out_shape=jax.ShapeDtypeStruct((M, D), jnp.float32),
        scratch_shapes=[pltpu.VMEM((tm, D), jnp.float32)],   # FFN output accumulator
        compiler_params=pltpu.CompilerParams(
            dimension_semantics=("parallel",),
            vmem_limit_bytes=_vmem_limit_bytes()),
    )(ctx2d, x2d, p['wo'], p['bo'], p['ln1_g'], p['ln1_b'],
      p['w1'], p['b1'], p['w2'], p['b2'], p['ln2_g'], p['ln2_b'])


# ------------------------------ model glue ------------------------------

def encoder_layer(x, p, num_heads):
    B, S, D = x.shape
    dph = D // num_heads
    G = B * num_heads
    M = B * S
    x2d = x.reshape(M, D)

    F = p['w1'].shape[1]
    resident_bytes = max(2 * (D * D + 2 * D * F),   # bf16 wo + w1 + w2 (tail kernel)
                         2 * 3 * D * D)             # bf16 fused W_qkv
    tm = _pick_row_tile(M, D, resident_bytes)

    q, k, v = qkv_proj(x2d, p['w_qkv'], p['b_qkv'], tm)

    # exact torch .view(B*H, -1, dph) head split (row-major reshape)
    qg = q.reshape(G, S, dph)
    kg = k.reshape(G, S, dph)
    vg = v.reshape(G, S, dph)
    # TODO(synk): reference mask/temperature plumbing is broken (see header);
    # we apply no mask and use the standard 1/sqrt(dph) scaling.
    scale = 1.0 / float(dph) ** 0.5
    gb = _pick_group_block(G, S, dph)
    ctx, attn = scaled_dot_attention(qg, kg, vg, scale, gb)

    # exact torch .view(B, -1, dph*H) merge (row-major reshape)
    ctx2d = ctx.reshape(M, D)
    out2d = out_proj_ffn(ctx2d, x2d, p, tm)
    return out2d.reshape(B, S, D), attn


def build_pos_encoding(max_seq_len, d_model):
    # rows used by the reference: sinusoid(pos=0..max_seq_len-1)
    pos = jnp.arange(max_seq_len, dtype=jnp.float32)[:, None]
    j = jnp.arange(d_model)[None, :]
    angle = pos / jnp.power(10000.0, (2.0 * (j // 2)).astype(jnp.float32) / d_model)
    pe = jnp.where(j % 2 == 0, jnp.sin(angle), jnp.cos(angle))
    return pe.astype(jnp.float32)


@functools.partial(jax.jit, static_argnames=("num_heads",))
def encoder_forward(tokens, params, num_heads):
    emb = jnp.take(params['emb'], tokens, axis=0)          # [B, S, D]
    x = emb + params['pos'][None, :, :]                    # broadcast pos enc
    _pad_mask = (tokens == 0)[:, None, :]                  # padding_mask (unused, see TODO)
    attentions = []
    out = x
    for lp in params['layers']:
        out, attn = encoder_layer(out, lp, num_heads)
        attentions.append(attn)
    return out, attentions


def init_layer_params(key, D, F):
    ks = jax.random.split(key, 12)

    def w(k, din, dout):
        return jax.random.normal(k, (din, dout), jnp.float32) / jnp.sqrt(float(din))

    def b(k, dout):
        return jax.random.normal(k, (1, dout), jnp.float32) * 0.01

    wq, wk, wv = w(ks[0], D, D), w(ks[2], D, D), w(ks[4], D, D)
    bq, bk, bv = b(ks[1], D), b(ks[3], D), b(ks[5], D)
    # weights pre-cast to bf16 ONCE here (MXU operands); biases / LN stay f32.
    return {
        'w_qkv': jnp.concatenate([wq, wk, wv], axis=1).astype(jnp.bfloat16),  # [D, 3D]
        'b_qkv': jnp.concatenate([bq, bk, bv], axis=1),                       # [1, 3D]
        'wo': w(ks[6], D, D).astype(jnp.bfloat16), 'bo': b(ks[7], D),
        'ln1_g': jnp.ones((1, D), jnp.float32), 'ln1_b': jnp.zeros((1, D), jnp.float32),
        'w1': w(ks[8], D, F).astype(jnp.bfloat16), 'b1': b(ks[9], F),
        'w2': w(ks[10], F, D).astype(jnp.bfloat16), 'b2': b(ks[11], D),
        'ln2_g': jnp.ones((1, D), jnp.float32), 'ln2_b': jnp.zeros((1, D), jnp.float32),
    }


if __name__ == "__main__":
    # batch, seq(=max_seq_len), model_dim, heads, ffn_dim, layers
    B, S, D, H, F, L = 2, 16, 128, 4, 256, 2
    vocab_size = 10

    key = jax.random.PRNGKey(0)
    keys = jax.random.split(key, 2 + L)
    k_tok, k_emb, k_layers = keys[0], keys[1], keys[2:]

    tokens = jax.random.randint(k_tok, (B, S), 0, vocab_size + 1)   # 0 = padding id
    emb_table = jax.random.normal(k_emb, (vocab_size + 1, D), jnp.float32) * 0.1
    emb_table = emb_table.at[0].set(0.0)                            # padding_idx=0

    params = {
        'emb': emb_table,
        'pos': build_pos_encoding(S, D),
        'layers': [init_layer_params(k, D, F) for k in k_layers],
    }

    out, attns = encoder_forward(tokens, params, num_heads=H)
    jax.block_until_ready(out)
    for a in attns:
        jax.block_until_ready(a)

    assert out.shape == (B, S, D)
    assert all(a.shape == (B * H, S, S) for a in attns)
    print("KERNEL_OK")
</pallas_src>

<mosaic_0001>
module attributes {stable_mosaic.version = 11 : i64} {
  func.func @_qkv_kernel(%arg0: i32, %arg1: memref<16x128xf32, #tpu.memory_space<vmem>>, %arg2: memref<128x384xbf16, #tpu.memory_space<vmem>>, %arg3: memref<1x384xf32, #tpu.memory_space<vmem>>, %arg4: memref<16x128xbf16, #tpu.memory_space<vmem>>, %arg5: memref<16x128xbf16, #tpu.memory_space<vmem>>, %arg6: memref<16x128xbf16, #tpu.memory_space<vmem>>) attributes {dimension_semantics = [#tpu.dimension_semantics<parallel>], iteration_bounds = array<i64: 2>, scalar_prefetch = 0 : i64, scratch_operands = 0 : i64, tpu.core_type = #tpu.core_type<tc>, window_params = [{transform_indices = @transform_0, window_bounds = array<i64: 16, 128>}, {pipeline_mode = #tpu.pipeline_mode<synchronous>, transform_indices = @transform_1, window_bounds = array<i64: 128, 384>}, {pipeline_mode = #tpu.pipeline_mode<synchronous>, transform_indices = @transform_2, window_bounds = array<i64: 1, 384>}, {transform_indices = @transform_3, window_bounds = array<i64: 16, 128>}, {transform_indices = @transform_4, window_bounds = array<i64: 16, 128>}, {transform_indices = @transform_5, window_bounds = array<i64: 16, 128>}]} {
    %c0 = arith.constant 0 : index
    %c0_0 = arith.constant 0 : index
    %0 = vector.load %arg1[%c0, %c0_0] : memref<16x128xf32, #tpu.memory_space<vmem>>, vector<16x128xf32>
    %1 = arith.truncf %0 : vector<16x128xf32> to vector<16x128xbf16>
    %c0_1 = arith.constant 0 : index
    %c0_2 = arith.constant 0 : index
    %2 = vector.load %arg2[%c0_1, %c0_2] : memref<128x384xbf16, #tpu.memory_space<vmem>>, vector<128x384xbf16>
    %cst = arith.constant dense<0.000000e+00> : vector<16x384xf32>
    %3 = tpu.matmul %1, %2, %cst {dimension_numbers = #tpu.dot_dimension_numbers<[1], [0], [0], [1], [0, 0, 1, 1], [], []>} : vector<16x128xbf16>, vector<128x384xbf16>, vector<16x384xf32> -> vector<16x384xf32>
    %c0_3 = arith.constant 0 : index
    %c0_4 = arith.constant 0 : index
    %4 = vector.load %arg3[%c0_3, %c0_4] : memref<1x384xf32, #tpu.memory_space<vmem>>, vector<1x384xf32>
    %5 = vector.broadcast %4 : vector<1x384xf32> to vector<16x384xf32>
    %6 = arith.addf %3, %5 : vector<16x384xf32>
    %7 = arith.truncf %6 : vector<16x384xf32> to vector<16x384xbf16>
    %8 = vector.extract_strided_slice %7 {offsets = [0, 0], sizes = [16, 128], strides = [1, 1]} : vector<16x384xbf16> to vector<16x128xbf16>
    %c0_5 = arith.constant 0 : index
    %c0_6 = arith.constant 0 : index
    %9 = vector.load %arg4[%c0_5, %c0_6] : memref<16x128xbf16, #tpu.memory_space<vmem>>, vector<16x128xbf16>
    tpu.vector_store %arg4[%c0_5, %c0_6], %8 {strides = array<i32>} : memref<16x128xbf16, #tpu.memory_space<vmem>>, vector<16x128xbf16>,
    %10 = vector.extract_strided_slice %7 {offsets = [0, 128], sizes = [16, 128], strides = [1, 1]} : vector<16x384xbf16> to vector<16x128xbf16>
    %c0_7 = arith.constant 0 : index
    %c0_8 = arith.constant 0 : index
    %11 = vector.load %arg5[%c0_7, %c0_8] : memref<16x128xbf16, #tpu.memory_space<vmem>>, vector<16x128xbf16>
    tpu.vector_store %arg5[%c0_7, %c0_8], %10 {strides = array<i32>} : memref<16x128xbf16, #tpu.memory_space<vmem>>, vector<16x128xbf16>,
    %12 = vector.extract_strided_slice %7 {offsets = [0, 256], sizes = [16, 128], strides = [1, 1]} : vector<16x384xbf16> to vector<16x128xbf16>
    %c0_9 = arith.constant 0 : index
    %c0_10 = arith.constant 0 : index
    %13 = vector.load %arg6[%c0_9, %c0_10] : memref<16x128xbf16, #tpu.memory_space<vmem>>, vector<16x128xbf16>
    tpu.vector_store %arg6[%c0_9, %c0_10], %12 {strides = array<i32>} : memref<16x128xbf16, #tpu.memory_space<vmem>>, vector<16x128xbf16>,
    return
  }
  func.func @transform_0(%arg0: i32) -> (i32, i32) {
    %c0_i32 = arith.constant 0 : i32
    %c0_i32_0 = arith.constant 0 : i32
    return %arg0, %c0_i32 : i32, i32
  }
  func.func @transform_1(%arg0: i32) -> (i32, i32) {
    %c0_i32 = arith.constant 0 : i32
    %c0_i32_0 = arith.constant 0 : i32
    %c0_i32_1 = arith.constant 0 : i32
    return %c0_i32, %c0_i32_0 : i32, i32
  }
  func.func @transform_2(%arg0: i32) -> (i32, i32) {
    %c0_i32 = arith.constant 0 : i32
    %c0_i32_0 = arith.constant 0 : i32
    %c0_i32_1 = arith.constant 0 : i32
    return %c0_i32, %c0_i32_0 : i32, i32
  }
  func.func @transform_3(%arg0: i32) -> (i32, i32) {
    %c0_i32 = arith.constant 0 : i32
    %c0_i32_0 = arith.constant 0 : i32
    return %arg0, %c0_i32 : i32, i32
  }
  func.func @transform_4(%arg0: i32) -> (i32, i32) {
    %c0_i32 = arith.constant 0 : i32
    %c0_i32_0 = arith.constant 0 : i32
    return %arg0, %c0_i32 : i32, i32
  }
  func.func @transform_5(%arg0: i32) -> (i32, i32) {
    %c0_i32 = arith.constant 0 : i32
    %c0_i32_0 = arith.constant 0 : i32
    return %arg0, %c0_i32 : i32, i32
  }
}

module attributes {stable_mosaic.version = 11 : i64} {
  func.func @_attn_kernel(%arg0: i32, %arg1: memref<4x16x32xbf16, #tpu.memory_space<vmem>>, %arg2: memref<4x16x32xbf16, #tpu.memory_space<vmem>>, %arg3: memref<4x16x32xbf16, #tpu.memory_space<vmem>>, %arg4: memref<4x16x32xbf16, #tpu.memory_space<vmem>>, %arg5: memref<4x16x16xf32, #tpu.memory_space<vmem>>) attributes {dimension_semantics = [#tpu.dimension_semantics<parallel>], iteration_bounds = array<i64: 2>, scalar_prefetch = 0 : i64, scratch_operands = 0 : i64, tpu.core_type = #tpu.core_type<tc>, window_params = [{transform_indices = @transform_0, window_bounds = array<i64: 4, 16, 32>}, {transform_indices = @transform_1, window_bounds = array<i64: 4, 16, 32>}, {transform_indices = @transform_2, window_bounds = array<i64: 4, 16, 32>}, {transform_indices = @transform_3, window_bounds = array<i64: 4, 16, 32>}, {transform_indices = @transform_4, window_bounds = array<i64: 4, 16, 16>}]} {
    %c0 = arith.constant 0 : index
    %c0_0 = arith.constant 0 : index
    %c0_1 = arith.constant 0 : index
    %0 = vector.load %arg1[%c0, %c0_0, %c0_1] : memref<4x16x32xbf16, #tpu.memory_space<vmem>>, vector<4x16x32xbf16>
    %c0_2 = arith.constant 0 : index
    %c0_3 = arith.constant 0 : index
    %c0_4 = arith.constant 0 : index
    %1 = vector.load %arg2[%c0_2, %c0_3, %c0_4] : memref<4x16x32xbf16, #tpu.memory_space<vmem>>, vector<4x16x32xbf16>
    %c0_5 = arith.constant 0 : index
    %c0_6 = arith.constant 0 : index
    %c0_7 = arith.constant 0 : index
    %2 = vector.load %arg3[%c0_5, %c0_6, %c0_7] : memref<4x16x32xbf16, #tpu.memory_space<vmem>>, vector<4x16x32xbf16>
    "tpu.trace_start"() <{level = 10 : i32, message = "gqd,gkd->gqk"}> : () -> ()
    %cst = arith.constant dense<0.000000e+00> : vector<4x16x16xf32>
    %3 = tpu.matmul %0, %1, %cst {dimension_numbers = #tpu.dot_dimension_numbers<[2], [2], [1], [1], [0, 0, 0, 1, 1, 1], [0], [0]>} : vector<4x16x32xbf16>, vector<4x16x32xbf16>, vector<4x16x16xf32> -> vector<4x16x16xf32>
    "tpu.trace_stop"() : () -> ()
    %cst_8 = arith.constant 0.176776692 : f32
    %4 = vector.broadcast %cst_8 : f32 to vector<4x16x16xf32>
    %5 = arith.mulf %3, %4 : vector<4x16x16xf32>
    %cst_9 = arith.constant dense<0xFF800000> : vector<4x16xf32>
    %6 = vector.multi_reduction <maximumf>, %5, %cst_9 [2] : vector<4x16x16xf32> to vector<4x16xf32>
    %7 = vector.shape_cast %6 : vector<4x16xf32> to vector<4x16x1xf32>
    %8 = vector.broadcast %7 : vector<4x16x1xf32> to vector<4x16x16xf32>
    %9 = arith.subf %5, %8 : vector<4x16x16xf32>
    %10 = math.exp %9 : vector<4x16x16xf32>
    %cst_10 = arith.constant dense<0.000000e+00> : vector<4x16xf32>
    %11 = vector.multi_reduction <add>, %10, %cst_10 [2] : vector<4x16x16xf32> to vector<4x16xf32>
    %12 = vector.shape_cast %11 : vector<4x16xf32> to vector<4x16x1xf32>
    %13 = vector.broadcast %12 : vector<4x16x1xf32> to vector<4x16x16xf32>
    %14 = arith.divf %10, %13 : vector<4x16x16xf32>
    %c0_11 = arith.constant 0 : index
    %c0_12 = arith.constant 0 : index
    %c0_13 = arith.constant 0 : index
    %15 = vector.load %arg5[%c0_11, %c0_12, %c0_13] : memref<4x16x16xf32, #tpu.memory_space<vmem>>, vector<4x16x16xf32>
    tpu.vector_store %arg5[%c0_11, %c0_12, %c0_13], %14 {strides = array<i32>} : memref<4x16x16xf32, #tpu.memory_space<vmem>>, vector<4x16x16xf32>,
    %16 = arith.truncf %14 : vector<4x16x16xf32> to vector<4x16x16xbf16>
    "tpu.trace_start"() <{level = 10 : i32, message = "gqk,gkd->gqd"}> : () -> ()
    %cst_14 = arith.constant dense<0.000000e+00> : vector<4x16x32xf32>
    %17 = tpu.matmul %16, %2, %cst_14 {dimension_numbers = #tpu.dot_dimension_numbers<[2], [1], [1], [2], [0, 0, 0, 1, 1, 2], [0], [0]>} : vector<4x16x16xbf16>, vector<4x16x32xbf16>, vector<4x16x32xf32> -> vector<4x16x32xf32>
    "tpu.trace_stop"() : () -> ()
    %18 = arith.truncf %17 : vector<4x16x32xf32> to vector<4x16x32xbf16>
    %c0_15 = arith.constant 0 : index
    %c0_16 = arith.constant 0 : index
    %c0_17 = arith.constant 0 : index
    %19 = vector.load %arg4[%c0_15, %c0_16, %c0_17] : memref<4x16x32xbf16, #tpu.memory_space<vmem>>, vector<4x16x32xbf16>
    tpu.vector_store %arg4[%c0_15, %c0_16, %c0_17], %18 {strides = array<i32>} : memref<4x16x32xbf16, #tpu.memory_space<vmem>>, vector<4x16x32xbf16>,
    return
  }
  func.func @transform_0(%arg0: i32) -> (i32, i32, i32) {
    %c0_i32 = arith.constant 0 : i32
    %c0_i32_0 = arith.constant 0 : i32
    %c0_i32_1 = arith.constant 0 : i32
    return %arg0, %c0_i32, %c0_i32_0 : i32, i32, i32
  }
  func.func @transform_1(%arg0: i32) -> (i32, i32, i32) {
    %c0_i32 = arith.constant 0 : i32
    %c0_i32_0 = arith.constant 0 : i32
    %c0_i32_1 = arith.constant 0 : i32
    return %arg0, %c0_i32, %c0_i32_0 : i32, i32, i32
  }
  func.func @transform_2(%arg0: i32) -> (i32, i32, i32) {
    %c0_i32 = arith.constant 0 : i32
    %c0_i32_0 = arith.constant 0 : i32
    %c0_i32_1 = arith.constant 0 : i32
    return %arg0, %c0_i32, %c0_i32_0 : i32, i32, i32
  }
  func.func @transform_3(%arg0: i32) -> (i32, i32, i32) {
    %c0_i32 = arith.constant 0 : i32
    %c0_i32_0 = arith.constant 0 : i32
    %c0_i32_1 = arith.constant 0 : i32
    return %arg0, %c0_i32, %c0_i32_0 : i32, i32, i32
  }
  func.func @transform_4(%arg0: i32) -> (i32, i32, i32) {
    %c0_i32 = arith.constant 0 : i32
    %c0_i32_0 = arith.constant 0 : i32
    %c0_i32_1 = arith.constant 0 : i32
    return %arg0, %c0_i32, %c0_i32_0 : i32, i32, i32
  }
}

module attributes {stable_mosaic.version = 11 : i64} {
  func.func @_out_ffn_kernel(%arg0: i32, %arg1: memref<16x128xbf16, #tpu.memory_space<vmem>>, %arg2: memref<16x128xf32, #tpu.memory_space<vmem>>, %arg3: memref<128x128xbf16, #tpu.memory_space<vmem>>, %arg4: memref<1x128xf32, #tpu.memory_space<vmem>>, %arg5: memref<1x128xf32, #tpu.memory_space<vmem>>, %arg6: memref<1x128xf32, #tpu.memory_space<vmem>>, %arg7: memref<128x256xbf16, #tpu.memory_space<vmem>>, %arg8: memref<1x256xf32, #tpu.memory_space<vmem>>, %arg9: memref<256x128xbf16, #tpu.memory_space<vmem>>, %arg10: memref<1x128xf32, #tpu.memory_space<vmem>>, %arg11: memref<1x128xf32, #tpu.memory_space<vmem>>, %arg12: memref<1x128xf32, #tpu.memory_space<vmem>>, %arg13: memref<16x128xf32, #tpu.memory_space<vmem>>, %arg14: memref<16x128xf32, #tpu.memory_space<vmem>>) attributes {dimension_semantics = [#tpu.dimension_semantics<parallel>], iteration_bounds = array<i64: 2>, scalar_prefetch = 0 : i64, scratch_operands = 1 : i64, tpu.core_type = #tpu.core_type<tc>, window_params = [{transform_indices = @transform_0, window_bounds = array<i64: 16, 128>}, {transform_indices = @transform_1, window_bounds = array<i64: 16, 128>}, {pipeline_mode = #tpu.pipeline_mode<synchronous>, transform_indices = @transform_2, window_bounds = array<i64: 128, 128>}, {pipeline_mode = #tpu.pipeline_mode<synchronous>, transform_indices = @transform_3, window_bounds = array<i64: 1, 128>}, {pipeline_mode = #tpu.pipeline_mode<synchronous>, transform_indices = @transform_4, window_bounds = array<i64: 1, 128>}, {pipeline_mode = #tpu.pipeline_mode<synchronous>, transform_indices = @transform_5, window_bounds = array<i64: 1, 128>}, {pipeline_mode = #tpu.pipeline_mode<synchronous>, transform_indices = @transform_6, window_bounds = array<i64: 128, 256>}, {pipeline_mode = #tpu.pipeline_mode<synchronous>, transform_indices = @transform_7, window_bounds = array<i64: 1, 256>}, {pipeline_mode = #tpu.pipeline_mode<synchronous>, transform_indices = @transform_8, window_bounds = array<i64: 256, 128>}, {pipeline_mode = #tpu.pipeline_mode<synchronous>, transform_indices = @transform_9, window_bounds = array<i64: 1, 128>}, {pipeline_mode = #tpu.pipeline_mode<synchronous>, transform_indices = @transform_10, window_bounds = array<i64: 1, 128>}, {pipeline_mode = #tpu.pipeline_mode<synchronous>, transform_indices = @transform_11, window_bounds = array<i64: 1, 128>}, {transform_indices = @transform_12, window_bounds = array<i64: 16, 128>}]} {
    %c0 = arith.constant 0 : index
    %c0_0 = arith.constant 0 : index
    %0 = vector.load %arg1[%c0, %c0_0] : memref<16x128xbf16, #tpu.memory_space<vmem>>, vector<16x128xbf16>
    %c0_1 = arith.constant 0 : index
    %c0_2 = arith.constant 0 : index
    %1 = vector.load %arg3[%c0_1, %c0_2] : memref<128x128xbf16, #tpu.memory_space<vmem>>, vector<128x128xbf16>
    %cst = arith.constant dense<0.000000e+00> : vector<16x128xf32>
    %2 = tpu.matmul %0, %1, %cst {dimension_numbers = #tpu.dot_dimension_numbers<[1], [0], [0], [1], [0, 0, 1, 1], [], []>} : vector<16x128xbf16>, vector<128x128xbf16>, vector<16x128xf32> -> vector<16x128xf32>
    %c0_3 = arith.constant 0 : index
    %c0_4 = arith.constant 0 : index
    %3 = vector.load %arg4[%c0_3, %c0_4] : memref<1x128xf32, #tpu.memory_space<vmem>>, vector<1x128xf32>
    %4 = vector.broadcast %3 : vector<1x128xf32> to vector<16x128xf32>
    %5 = arith.addf %2, %4 : vector<16x128xf32>
    %c0_5 = arith.constant 0 : index
    %c0_6 = arith.constant 0 : index
    %6 = vector.load %arg2[%c0_5, %c0_6] : memref<16x128xf32, #tpu.memory_space<vmem>>, vector<16x128xf32>
    %7 = arith.addf %6, %5 : vector<16x128xf32>
    %c0_7 = arith.constant 0 : index
    %c0_8 = arith.constant 0 : index
    %8 = vector.load %arg5[%c0_7, %c0_8] : memref<1x128xf32, #tpu.memory_space<vmem>>, vector<1x128xf32>
    %c0_9 = arith.constant 0 : index
    %c0_10 = arith.constant 0 : index
    %9 = vector.load %arg6[%c0_9, %c0_10] : memref<1x128xf32, #tpu.memory_space<vmem>>, vector<1x128xf32>
    %cst_11 = arith.constant dense<0.000000e+00> : vector<16xf32>
    %10 = vector.multi_reduction <add>, %7, %cst_11 [1] : vector<16x128xf32> to vector<16xf32>
    %11 = vector.shape_cast %10 : vector<16xf32> to vector<16x1xf32>
    %cst_12 = arith.constant 1.280000e+02 : f32
    %12 = vector.broadcast %cst_12 : f32 to vector<16x1xf32>
    %13 = arith.divf %11, %12 : vector<16x1xf32>
    %14 = vector.broadcast %13 : vector<16x1xf32> to vector<16x128xf32>
    %15 = arith.subf %7, %14 : vector<16x128xf32>
    %16 = arith.mulf %15, %15 : vector<16x128xf32>
    %cst_13 = arith.constant dense<0.000000e+00> : vector<16xf32>
    %17 = vector.multi_reduction <add>, %16, %cst_13 [1] : vector<16x128xf32> to vector<16xf32>
    %18 = vector.shape_cast %17 : vector<16xf32> to vector<16x1xf32>
    %cst_14 = arith.constant 1.280000e+02 : f32
    %19 = vector.broadcast %cst_14 : f32 to vector<16x1xf32>
    %20 = arith.divf %18, %19 : vector<16x1xf32>
    %21 = vector.broadcast %13 : vector<16x1xf32> to vector<16x128xf32>
    %22 = arith.subf %7, %21 : vector<16x128xf32>
    %cst_15 = arith.constant 9.99999974E-6 : f32
    %23 = vector.broadcast %cst_15 : f32 to vector<16x1xf32>
    %24 = arith.addf %20, %23 : vector<16x1xf32>
    %25 = math.rsqrt %24 : vector<16x1xf32>
    %26 = vector.broadcast %25 : vector<16x1xf32> to vector<16x128xf32>
    %27 = arith.mulf %22, %26 : vector<16x128xf32>
    %28 = vector.broadcast %8 : vector<1x128xf32> to vector<16x128xf32>
    %29 = arith.mulf %27, %28 : vector<16x128xf32>
    %30 = vector.broadcast %9 : vector<1x128xf32> to vector<16x128xf32>
    %31 = arith.addf %29, %30 : vector<16x128xf32>
    %32 = arith.truncf %31 : vector<16x128xf32> to vector<16x128xbf16>
    %cst_16 = arith.constant 0.000000e+00 : f32
    %33 = vector.broadcast %cst_16 : f32 to vector<16x128xf32>
    %c0_17 = arith.constant 0 : index
    %c0_18 = arith.constant 0 : index
    %34 = vector.load %arg14[%c0_17, %c0_18] : memref<16x128xf32, #tpu.memory_space<vmem>>, vector<16x128xf32>
    tpu.vector_store %arg14[%c0_17, %c0_18], %33 {strides = array<i32>} : memref<16x128xf32, #tpu.memory_space<vmem>>, vector<16x128xf32>,
    %c0_19 = arith.constant 0 : index
    %c0_20 = arith.constant 0 : index
    %35 = vector.load %arg7[%c0_19, %c0_20] : memref<128x256xbf16, #tpu.memory_space<vmem>>, vector<128x256xbf16>
    %cst_21 = arith.constant dense<0.000000e+00> : vector<16x256xf32>
    %36 = tpu.matmul %32, %35, %cst_21 {dimension_numbers = #tpu.dot_dimension_numbers<[1], [0], [0], [1], [0, 0, 1, 1], [], []>} : vector<16x128xbf16>, vector<128x256xbf16>, vector<16x256xf32> -> vector<16x256xf32>
    %c0_22 = arith.constant 0 : index
    %c0_23 = arith.constant 0 : index
    %37 = vector.load %arg8[%c0_22, %c0_23] : memref<1x256xf32, #tpu.memory_space<vmem>>, vector<1x256xf32>
    %38 = vector.broadcast %37 : vector<1x256xf32> to vector<16x256xf32>
    %39 = arith.addf %36, %38 : vector<16x256xf32>
    %cst_24 = arith.constant 0.000000e+00 : f32
    %40 = vector.broadcast %cst_24 : f32 to vector<16x256xf32>
    %41 = arith.maximumf %39, %40 : vector<16x256xf32>
    %c0_25 = arith.constant 0 : index
    %c0_26 = arith.constant 0 : index
    %42 = vector.load %arg14[%c0_25, %c0_26] : memref<16x128xf32, #tpu.memory_space<vmem>>, vector<16x128xf32>
    %43 = arith.truncf %41 : vector<16x256xf32> to vector<16x256xbf16>
    %c0_27 = arith.constant 0 : index
    %c0_28 = arith.constant 0 : index
    %44 = vector.load %arg9[%c0_27, %c0_28] : memref<256x128xbf16, #tpu.memory_space<vmem>>, vector<256x128xbf16>
    %cst_29 = arith.constant dense<0.000000e+00> : vector<16x128xf32>
    %45 = tpu.matmul %43, %44, %cst_29 {dimension_numbers = #tpu.dot_dimension_numbers<[1], [0], [0], [1], [0, 0, 1, 1], [], []>} : vector<16x256xbf16>, vector<256x128xbf16>, vector<16x128xf32> -> vector<16x128xf32>
    %46 = arith.addf %42, %45 : vector<16x128xf32>
    %c0_30 = arith.constant 0 : index
    %c0_31 = arith.constant 0 : index
    %47 = vector.load %arg14[%c0_30, %c0_31] : memref<16x128xf32, #tpu.memory_space<vmem>>, vector<16x128xf32>
    tpu.vector_store %arg14[%c0_30, %c0_31], %46 {strides = array<i32>} : memref<16x128xf32, #tpu.memory_space<vmem>>, vector<16x128xf32>,
    %c0_32 = arith.constant 0 : index
    %c0_33 = arith.constant 0 : index
    %48 = vector.load %arg14[%c0_32, %c0_33] : memref<16x128xf32, #tpu.memory_space<vmem>>, vector<16x128xf32>
    %c0_34 = arith.constant 0 : index
    %c0_35 = arith.constant 0 : index
    %49 = vector.load %arg10[%c0_34, %c0_35] : memref<1x128xf32, #tpu.memory_space<vmem>>, vector<1x128xf32>
    %50 = vector.broadcast %49 : vector<1x128xf32> to vector<16x128xf32>
    %51 = arith.addf %48, %50 : vector<16x128xf32>
    %52 = arith.addf %31, %51 : vector<16x128xf32>
    %c0_36 = arith.constant 0 : index
    %c0_37 = arith.constant 0 : index
    %53 = vector.load %arg11[%c0_36, %c0_37] : memref<1x128xf32, #tpu.memory_space<vmem>>, vector<1x128xf32>
    %c0_38 = arith.constant 0 : index
    %c0_39 = arith.constant 0 : index
    %54 = vector.load %arg12[%c0_38, %c0_39] : memref<1x128xf32, #tpu.memory_space<vmem>>, vector<1x128xf32>
    %cst_40 = arith.constant dense<0.000000e+00> : vector<16xf32>
    %55 = vector.multi_reduction <add>, %52, %cst_40 [1] : vector<16x128xf32> to vector<16xf32>
    %56 = vector.shape_cast %55 : vector<16xf32> to vector<16x1xf32>
    %cst_41 = arith.constant 1.280000e+02 : f32
    %57 = vector.broadcast %cst_41 : f32 to vector<16x1xf32>
    %58 = arith.divf %56, %57 : vector<16x1xf32>
    %59 = vector.broadcast %58 : vector<16x1xf32> to vector<16x128xf32>
    %60 = arith.subf %52, %59 : vector<16x128xf32>
    %61 = arith.mulf %60, %60 : vector<16x128xf32>
    %cst_42 = arith.constant dense<0.000000e+00> : vector<16xf32>
    %62 = vector.multi_reduction <add>, %61, %cst_42 [1] : vector<16x128xf32> to vector<16xf32>
    %63 = vector.shape_cast %62 : vector<16xf32> to vector<16x1xf32>
    %cst_43 = arith.constant 1.280000e+02 : f32
    %64 = vector.broadcast %cst_43 : f32 to vector<16x1xf32>
    %65 = arith.divf %63, %64 : vector<16x1xf32>
    %66 = vector.broadcast %58 : vector<16x1xf32> to vector<16x128xf32>
    %67 = arith.subf %52, %66 : vector<16x128xf32>
    %cst_44 = arith.constant 9.99999974E-6 : f32
    %68 = vector.broadcast %cst_44 : f32 to vector<16x1xf32>
    %69 = arith.addf %65, %68 : vector<16x1xf32>
    %70 = math.rsqrt %69 : vector<16x1xf32>
    %71 = vector.broadcast %70 : vector<16x1xf32> to vector<16x128xf32>
    %72 = arith.mulf %67, %71 : vector<16x128xf32>
    %73 = vector.broadcast %53 : vector<1x128xf32> to vector<16x128xf32>
    %74 = arith.mulf %72, %73 : vector<16x128xf32>
    %75 = vector.broadcast %54 : vector<1x128xf32> to vector<16x128xf32>
    %76 = arith.addf %74, %75 : vector<16x128xf32>
    %c0_45 = arith.constant 0 : index
    %c0_46 = arith.constant 0 : index
    %77 = vector.load %arg13[%c0_45, %c0_46] : memref<16x128xf32, #tpu.memory_space<vmem>>, vector<16x128xf32>
    tpu.vector_store %arg13[%c0_45, %c0_46], %76 {strides = array<i32>} : memref<16x128xf32, #tpu.memory_space<vmem>>, vector<16x128xf32>,
    return
  }
  func.func @transform_0(%arg0: i32) -> (i32, i32) {
    %c0_i32 = arith.constant 0 : i32
    %c0_i32_0 = arith.constant 0 : i32
    return %arg0, %c0_i32 : i32, i32
  }
  func.func @transform_1(%arg0: i32) -> (i32, i32) {
    %c0_i32 = arith.constant 0 : i32
    %c0_i32_0 = arith.constant 0 : i32
    return %arg0, %c0_i32 : i32, i32
  }
  func.func @transform_2(%arg0: i32) -> (i32, i32) {
    %c0_i32 = arith.constant 0 : i32
    %c0_i32_0 = arith.constant 0 : i32
    %c0_i32_1 = arith.constant 0 : i32
    return %c0_i32, %c0_i32_0 : i32, i32
  }
  func.func @transform_3(%arg0: i32) -> (i32, i32) {
    %c0_i32 = arith.constant 0 : i32
    %c0_i32_0 = arith.constant 0 : i32
    %c0_i32_1 = arith.constant 0 : i32
    return %c0_i32, %c0_i32_0 : i32, i32
  }
  func.func @transform_4(%arg0: i32) -> (i32, i32) {
    %c0_i32 = arith.constant 0 : i32
    %c0_i32_0 = arith.constant 0 : i32
    %c0_i32_1 = arith.constant 0 : i32
    return %c0_i32, %c0_i32_0 : i32, i32
  }
  func.func @transform_5(%arg0: i32) -> (i32, i32) {
    %c0_i32 = arith.constant 0 : i32
    %c0_i32_0 = arith.constant 0 : i32
    %c0_i32_1 = arith.constant 0 : i32
    return %c0_i32, %c0_i32_0 : i32, i32
  }
  func.func @transform_6(%arg0: i32) -> (i32, i32) {
    %c0_i32 = arith.constant 0 : i32
    %c0_i32_0 = arith.constant 0 : i32
    %c0_i32_1 = arith.constant 0 : i32
    return %c0_i32, %c0_i32_0 : i32, i32
  }
  func.func @transform_7(%arg0: i32) -> (i32, i32) {
    %c0_i32 = arith.constant 0 : i32
    %c0_i32_0 = arith.constant 0 : i32
    %c0_i32_1 = arith.constant 0 : i32
    return %c0_i32, %c0_i32_0 : i32, i32
  }
  func.func @transform_8(%arg0: i32) -> (i32, i32) {
    %c0_i32 = arith.constant 0 : i32
    %c0_i32_0 = arith.constant 0 : i32
    %c0_i32_1 = arith.constant 0 : i32
    return %c0_i32, %c0_i32_0 : i32, i32
  }
  func.func @transform_9(%arg0: i32) -> (i32, i32) {
    %c0_i32 = arith.constant 0 : i32
    %c0_i32_0 = arith.constant 0 : i32
    %c0_i32_1 = arith.constant 0 : i32
    return %c0_i32, %c0_i32_0 : i32, i32
  }
  func.func @transform_10(%arg0: i32) -> (i32, i32) {
    %c0_i32 = arith.constant 0 : i32
    %c0_i32_0 = arith.constant 0 : i32
    %c0_i32_1 = arith.constant 0 : i32
    return %c0_i32, %c0_i32_0 : i32, i32
  }
  func.func @transform_11(%arg0: i32) -> (i32, i32) {
    %c0_i32 = arith.constant 0 : i32
    %c0_i32_0 = arith.constant 0 : i32
    %c0_i32_1 = arith.constant 0 : i32
    return %c0_i32, %c0_i32_0 : i32, i32
  }
  func.func @transform_12(%arg0: i32) -> (i32, i32) {
    %c0_i32 = arith.constant 0 : i32
    %c0_i32_0 = arith.constant 0 : i32
    return %arg0, %c0_i32 : i32, i32
  }
}

module attributes {stable_mosaic.version = 11 : i64} {
  func.func @_out_ffn_kernel(%arg0: i32, %arg1: memref<16x128xbf16, #tpu.memory_space<vmem>>, %arg2: memref<16x128xf32, #tpu.memory_space<vmem>>, %arg3: memref<128x128xbf16, #tpu.memory_space<vmem>>, %arg4: memref<1x128xf32, #tpu.memory_space<vmem>>, %arg5: memref<1x128xf32, #tpu.memory_space<vmem>>, %arg6: memref<1x128xf32, #tpu.memory_space<vmem>>, %arg7: memref<128x256xbf16, #tpu.memory_space<vmem>>, %arg8: memref<1x256xf32, #tpu.memory_space<vmem>>, %arg9: memref<256x128xbf16, #tpu.memory_space<vmem>>, %arg10: memref<1x128xf32, #tpu.memory_space<vmem>>, %arg11: memref<1x128xf32, #tpu.memory_space<vmem>>, %arg12: memref<1x128xf32, #tpu.memory_space<vmem>>, %arg13: memref<16x128xf32, #tpu.memory_space<vmem>>, %arg14: memref<16x128xf32, #tpu.memory_space<vmem>>) attributes {dimension_semantics = [#tpu.dimension_semantics<parallel>], iteration_bounds = array<i64: 2>, scalar_prefetch = 0 : i64, scratch_operands = 1 : i64, tpu.core_type = #tpu.core_type<tc>, window_params = [{transform_indices = @transform_0, window_bounds = array<i64: 16, 128>}, {transform_indices = @transform_1, window_bounds = array<i64: 16, 128>}, {pipeline_mode = #tpu.pipeline_mode<synchronous>, transform_indices = @transform_2, window_bounds = array<i64: 128, 128>}, {pipeline_mode = #tpu.pipeline_mode<synchronous>, transform_indices = @transform_3, window_bounds = array<i64: 1, 128>}, {pipeline_mode = #tpu.pipeline_mode<synchronous>, transform_indices = @transform_4, window_bounds = array<i64: 1, 128>}, {pipeline_mode = #tpu.pipeline_mode<synchronous>, transform_indices = @transform_5, window_bounds = array<i64: 1, 128>}, {pipeline_mode = #tpu.pipeline_mode<synchronous>, transform_indices = @transform_6, window_bounds = array<i64: 128, 256>}, {pipeline_mode = #tpu.pipeline_mode<synchronous>, transform_indices = @transform_7, window_bounds = array<i64: 1, 256>}, {pipeline_mode = #tpu.pipeline_mode<synchronous>, transform_indices = @transform_8, window_bounds = array<i64: 256, 128>}, {pipeline_mode = #tpu.pipeline_mode<synchronous>, transform_indices = @transform_9, window_bounds = array<i64: 1, 128>}, {pipeline_mode = #tpu.pipeline_mode<synchronous>, transform_indices = @transform_10, window_bounds = array<i64: 1, 128>}, {pipeline_mode = #tpu.pipeline_mode<synchronous>, transform_indices = @transform_11, window_bounds = array<i64: 1, 128>}, {transform_indices = @transform_12, window_bounds = array<i64: 16, 128>}]} {
    %c0 = arith.constant 0 : index
    %c0_0 = arith.constant 0 : index
    %0 = vector.load %arg1[%c0, %c0_0] : memref<16x128xbf16, #tpu.memory_space<vmem>>, vector<16x128xbf16>
    %c0_1 = arith.constant 0 : index
    %c0_2 = arith.constant 0 : index
    %1 = vector.load %arg3[%c0_1, %c0_2] : memref<128x128xbf16, #tpu.memory_space<vmem>>, vector<128x128xbf16>
    %cst = arith.constant dense<0.000000e+00> : vector<16x128xf32>
    %2 = tpu.matmul %0, %1, %cst {dimension_numbers = #tpu.dot_dimension_numbers<[1], [0], [0], [1], [0, 0, 1, 1], [], []>} : vector<16x128xbf16>, vector<128x128xbf16>, vector<16x128xf32> -> vector<16x128xf32>
    %c0_3 = arith.constant 0 : index
    %c0_4 = arith.constant 0 : index
    %3 = vector.load %arg4[%c0_3, %c0_4] : memref<1x128xf32, #tpu.memory_space<vmem>>, vector<1x128xf32>
    %4 = vector.broadcast %3 : vector<1x128xf32> to vector<16x128xf32>
    %5 = arith.addf %2, %4 : vector<16x128xf32>
    %c0_5 = arith.constant 0 : index
    %c0_6 = arith.constant 0 : index
    %6 = vector.load %arg2[%c0_5, %c0_6] : memref<16x128xf32, #tpu.memory_space<vmem>>, vector<16x128xf32>
    %7 = arith.addf %6, %5 : vector<16x128xf32>
    %c0_7 = arith.constant 0 : index
    %c0_8 = arith.constant 0 : index
    %8 = vector.load %arg5[%c0_7, %c0_8] : memref<1x128xf32, #tpu.memory_space<vmem>>, vector<1x128xf32>
    %c0_9 = arith.constant 0 : index
    %c0_10 = arith.constant 0 : index
    %9 = vector.load %arg6[%c0_9, %c0_10] : memref<1x128xf32, #tpu.memory_space<vmem>>, vector<1x128xf32>
    %cst_11 = arith.constant dense<0.000000e+00> : vector<16xf32>
    %10 = vector.multi_reduction <add>, %7, %cst_11 [1] : vector<16x128xf32> to vector<16xf32>
    %11 = vector.shape_cast %10 : vector<16xf32> to vector<16x1xf32>
    %cst_12 = arith.constant 1.280000e+02 : f32
    %12 = vector.broadcast %cst_12 : f32 to vector<16x1xf32>
    %13 = arith.divf %11, %12 : vector<16x1xf32>
    %14 = vector.broadcast %13 : vector<16x1xf32> to vector<16x128xf32>
    %15 = arith.subf %7, %14 : vector<16x128xf32>
    %16 = arith.mulf %15, %15 : vector<16x128xf32>
    %cst_13 = arith.constant dense<0.000000e+00> : vector<16xf32>
    %17 = vector.multi_reduction <add>, %16, %cst_13 [1] : vector<16x128xf32> to vector<16xf32>
    %18 = vector.shape_cast %17 : vector<16xf32> to vector<16x1xf32>
    %cst_14 = arith.constant 1.280000e+02 : f32
    %19 = vector.broadcast %cst_14 : f32 to vector<16x1xf32>
    %20 = arith.divf %18, %19 : vector<16x1xf32>
    %21 = vector.broadcast %13 : vector<16x1xf32> to vector<16x128xf32>
    %22 = arith.subf %7, %21 : vector<16x128xf32>
    %cst_15 = arith.constant 9.99999974E-6 : f32
    %23 = vector.broadcast %cst_15 : f32 to vector<16x1xf32>
    %24 = arith.addf %20, %23 : vector<16x1xf32>
    %25 = math.rsqrt %24 : vector<16x1xf32>
    %26 = vector.broadcast %25 : vector<16x1xf32> to vector<16x128xf32>
    %27 = arith.mulf %22, %26 : vector<16x128xf32>
    %28 = vector.broadcast %8 : vector<1x128xf32> to vector<16x128xf32>
    %29 = arith.mulf %27, %28 : vector<16x128xf32>
    %30 = vector.broadcast %9 : vector<1x128xf32> to vector<16x128xf32>
    %31 = arith.addf %29, %30 : vector<16x128xf32>
    %32 = arith.truncf %31 : vector<16x128xf32> to vector<16x128xbf16>
    %cst_16 = arith.constant 0.000000e+00 : f32
    %33 = vector.broadcast %cst_16 : f32 to vector<16x128xf32>
    %c0_17 = arith.constant 0 : index
    %c0_18 = arith.constant 0 : index
    %34 = vector.load %arg14[%c0_17, %c0_18] : memref<16x128xf32, #tpu.memory_space<vmem>>, vector<16x128xf32>
    tpu.vector_store %arg14[%c0_17, %c0_18], %33 {strides = array<i32>} : memref<16x128xf32, #tpu.memory_space<vmem>>, vector<16x128xf32>,
    %c0_19 = arith.constant 0 : index
    %c0_20 = arith.constant 0 : index
    %35 = vector.load %arg7[%c0_19, %c0_20] : memref<128x256xbf16, #tpu.memory_space<vmem>>, vector<128x256xbf16>
    %cst_21 = arith.constant dense<0.000000e+00> : vector<16x256xf32>
    %36 = tpu.matmul %32, %35, %cst_21 {dimension_numbers = #tpu.dot_dimension_numbers<[1], [0], [0], [1], [0, 0, 1, 1], [], []>} : vector<16x128xbf16>, vector<128x256xbf16>, vector<16x256xf32> -> vector<16x256xf32>
    %c0_22 = arith.constant 0 : index
    %c0_23 = arith.constant 0 : index
    %37 = vector.load %arg8[%c0_22, %c0_23] : memref<1x256xf32, #tpu.memory_space<vmem>>, vector<1x256xf32>
    %38 = vector.broadcast %37 : vector<1x256xf32> to vector<16x256xf32>
    %39 = arith.addf %36, %38 : vector<16x256xf32>
    %cst_24 = arith.constant 0.000000e+00 : f32
    %40 = vector.broadcast %cst_24 : f32 to vector<16x256xf32>
    %41 = arith.maximumf %39, %40 : vector<16x256xf32>
    %c0_25 = arith.constant 0 : index
    %c0_26 = arith.constant 0 : index
    %42 = vector.load %arg14[%c0_25, %c0_26] : memref<16x128xf32, #tpu.memory_space<vmem>>, vector<16x128xf32>
    %43 = arith.truncf %41 : vector<16x256xf32> to vector<16x256xbf16>
    %c0_27 = arith.constant 0 : index
    %c0_28 = arith.constant 0 : index
    %44 = vector.load %arg9[%c0_27, %c0_28] : memref<256x128xbf16, #tpu.memory_space<vmem>>, vector<256x128xbf16>
    %cst_29 = arith.constant dense<0.000000e+00> : vector<16x128xf32>
    %45 = tpu.matmul %43, %44, %cst_29 {dimension_numbers = #tpu.dot_dimension_numbers<[1], [0], [0], [1], [0, 0, 1, 1], [], []>} : vector<16x256xbf16>, vector<256x128xbf16>, vector<16x128xf32> -> vector<16x128xf32>
    %46 = arith.addf %42, %45 : vector<16x128xf32>
    %c0_30 = arith.constant 0 : index
    %c0_31 = arith.constant 0 : index
    %47 = vector.load %arg14[%c0_30, %c0_31] : memref<16x128xf32, #tpu.memory_space<vmem>>, vector<16x128xf32>
    tpu.vector_store %arg14[%c0_30, %c0_31], %46 {strides = array<i32>} : memref<16x128xf32, #tpu.memory_space<vmem>>, vector<16x128xf32>,
    %c0_32 = arith.constant 0 : index
    %c0_33 = arith.constant 0 : index
    %48 = vector.load %arg14[%c0_32, %c0_33] : memref<16x128xf32, #tpu.memory_space<vmem>>, vector<16x128xf32>
    %c0_34 = arith.constant 0 : index
    %c0_35 = arith.constant 0 : index
    %49 = vector.load %arg10[%c0_34, %c0_35] : memref<1x128xf32, #tpu.memory_space<vmem>>, vector<1x128xf32>
    %50 = vector.broadcast %49 : vector<1x128xf32> to vector<16x128xf32>
    %51 = arith.addf %48, %50 : vector<16x128xf32>
    %52 = arith.addf %31, %51 : vector<16x128xf32>
    %c0_36 = arith.constant 0 : index
    %c0_37 = arith.constant 0 : index
    %53 = vector.load %arg11[%c0_36, %c0_37] : memref<1x128xf32, #tpu.memory_space<vmem>>, vector<1x128xf32>
    %c0_38 = arith.constant 0 : index
    %c0_39 = arith.constant 0 : index
    %54 = vector.load %arg12[%c0_38, %c0_39] : memref<1x128xf32, #tpu.memory_space<vmem>>, vector<1x128xf32>
    %cst_40 = arith.constant dense<0.000000e+00> : vector<16xf32>
    %55 = vector.multi_reduction <add>, %52, %cst_40 [1] : vector<16x128xf32> to vector<16xf32>
    %56 = vector.shape_cast %55 : vector<16xf32> to vector<16x1xf32>
    %cst_41 = arith.constant 1.280000e+02 : f32
    %57 = vector.broadcast %cst_41 : f32 to vector<16x1xf32>
    %58 = arith.divf %56, %57 : vector<16x1xf32>
    %59 = vector.broadcast %58 : vector<16x1xf32> to vector<16x128xf32>
    %60 = arith.subf %52, %59 : vector<16x128xf32>
    %61 = arith.mulf %60, %60 : vector<16x128xf32>
    %cst_42 = arith.constant dense<0.000000e+00> : vector<16xf32>
    %62 = vector.multi_reduction <add>, %61, %cst_42 [1] : vector<16x128xf32> to vector<16xf32>
    %63 = vector.shape_cast %62 : vector<16xf32> to vector<16x1xf32>
    %cst_43 = arith.constant 1.280000e+02 : f32
    %64 = vector.broadcast %cst_43 : f32 to vector<16x1xf32>
    %65 = arith.divf %63, %64 : vector<16x1xf32>
    %66 = vector.broadcast %58 : vector<16x1xf32> to vector<16x128xf32>
    %67 = arith.subf %52, %66 : vector<16x128xf32>
    %cst_44 = arith.constant 9.99999974E-6 : f32
    %68 = vector.broadcast %cst_44 : f32 to vector<16x1xf32>
    %69 = arith.addf %65, %68 : vector<16x1xf32>
    %70 = math.rsqrt %69 : vector<16x1xf32>
    %71 = vector.broadcast %70 : vector<16x1xf32> to vector<16x128xf32>
    %72 = arith.mulf %67, %71 : vector<16x128xf32>
    %73 = vector.broadcast %53 : vector<1x128xf32> to vector<16x128xf32>
    %74 = arith.mulf %72, %73 : vector<16x128xf32>
    %75 = vector.broadcast %54 : vector<1x128xf32> to vector<16x128xf32>
    %76 = arith.addf %74, %75 : vector<16x128xf32>
    %c0_45 = arith.constant 0 : index
    %c0_46 = arith.constant 0 : index
    %77 = vector.load %arg13[%c0_45, %c0_46] : memref<16x128xf32, #tpu.memory_space<vmem>>, vector<16x128xf32>
    tpu.vector_store %arg13[%c0_45, %c0_46], %76 {strides = array<i32>} : memref<16x128xf32, #tpu.memory_space<vmem>>, vector<16x128xf32>,
    return
  }
  func.func @transform_0(%arg0: i32) -> (i32, i32) {
    %c0_i32 = arith.constant 0 : i32
    %c0_i32_0 = arith.constant 0 : i32
    return %arg0, %c0_i32 : i32, i32
  }
  func.func @transform_1(%arg0: i32) -> (i32, i32) {
    %c0_i32 = arith.constant 0 : i32
    %c0_i32_0 = arith.constant 0 : i32
    return %arg0, %c0_i32 : i32, i32
  }
  func.func @transform_2(%arg0: i32) -> (i32, i32) {
    %c0_i32 = arith.constant 0 : i32
    %c0_i32_0 = arith.constant 0 : i32
    %c0_i32_1 = arith.constant 0 : i32
    return %c0_i32, %c0_i32_0 : i32, i32
  }
  func.func @transform_3(%arg0: i32) -> (i32, i32) {
    %c0_i32 = arith.constant 0 : i32
    %c0_i32_0 = arith.constant 0 : i32
    %c0_i32_1 = arith.constant 0 : i32
    return %c0_i32, %c0_i32_0 : i32, i32
  }
  func.func @transform_4(%arg0: i32) -> (i32, i32) {
    %c0_i32 = arith.constant 0 : i32
    %c0_i32_0 = arith.constant 0 : i32
    %c0_i32_1 = arith.constant 0 : i32
    return %c0_i32, %c0_i32_0 : i32, i32
  }
  func.func @transform_5(%arg0: i32) -> (i32, i32) {
    %c0_i32 = arith.constant 0 : i32
    %c0_i32_0 = arith.constant 0 : i32
    %c0_i32_1 = arith.constant 0 : i32
    return %c0_i32, %c0_i32_0 : i32, i32
  }
  func.func @transform_6(%arg0: i32) -> (i32, i32) {
    %c0_i32 = arith.constant 0 : i32
    %c0_i32_0 = arith.constant 0 : i32
    %c0_i32_1 = arith.constant 0 : i32
    return %c0_i32, %c0_i32_0 : i32, i32
  }
  func.func @transform_7(%arg0: i32) -> (i32, i32) {
    %c0_i32 = arith.constant 0 : i32
    %c0_i32_0 = arith.constant 0 : i32
    %c0_i32_1 = arith.constant 0 : i32
    return %c0_i32, %c0_i32_0 : i32, i32
  }
  func.func @transform_8(%arg0: i32) -> (i32, i32) {
    %c0_i32 = arith.constant 0 : i32
    %c0_i32_0 = arith.constant 0 : i32
    %c0_i32_1 = arith.constant 0 : i32
    return %c0_i32, %c0_i32_0 : i32, i32
  }
  func.func @transform_9(%arg0: i32) -> (i32, i32) {
    %c0_i32 = arith.constant 0 : i32
    %c0_i32_0 = arith.constant 0 : i32
    %c0_i32_1 = arith.constant 0 : i32
    return %c0_i32, %c0_i32_0 : i32, i32
  }
  func.func @transform_10(%arg0: i32) -> (i32, i32) {
    %c0_i32 = arith.constant 0 : i32
    %c0_i32_0 = arith.constant 0 : i32
    %c0_i32_1 = arith.constant 0 : i32
    return %c0_i32, %c0_i32_0 : i32, i32
  }
  func.func @transform_11(%arg0: i32) -> (i32, i32) {
    %c0_i32 = arith.constant 0 : i32
    %c0_i32_0 = arith.constant 0 : i32
    %c0_i32_1 = arith.constant 0 : i32
    return %c0_i32, %c0_i32_0 : i32, i32
  }
  func.func @transform_12(%arg0: i32) -> (i32, i32) {
    %c0_i32 = arith.constant 0 : i32
    %c0_i32_0 = arith.constant 0 : i32
    return %arg0, %c0_i32 : i32, i32
  }
}

</mosaic_0001>

<llo_original>
// kernel: encoder_forward.6
$region0: #{encoder_forward.6}
  #allocation0 [shape = 'u32[]', space=smem, size = 0x4, offset = 0x4, fixed_abs, tag = 'smem constant byte address 0x4 - core index']
  #allocation1 [shape = 'u32[144,128]{1,0:T(1,128)}', space=vmem, size = 0x12000, scoped, tag = 'internal scratch']
  %s0 = inlined_call_operand.vmem [shape: f32[32,128], index: 0, kind: input, shape index: {}]
  %s1 = inlined_call_operand.vmem [shape: bf16[128,384], index: 1, kind: input, shape index: {}]
  %s2 = inlined_call_operand.vmem [shape: f32[1,384], index: 2, kind: input, shape index: {}]
  %s3 = inlined_call_operand.vmem [shape: bf16[32,128], index: 3, kind: output, shape index: {0}]
  %s4 = inlined_call_operand.vmem [shape: bf16[32,128], index: 4, kind: output, shape index: {1}]
  %s5 = inlined_call_operand.vmem [shape: bf16[32,128], index: 5, kind: output, shape index: {2}]
  %6 = xla_tuple %s3, %s4, %s5
  %s7 = sld [smem:[#allocation0]]
  $region61: #{encoder_forward.6} parent=0
    _
  %s9 = ssub.s32 1, %s7
  %s10 = scalar_select 0, %s9, %s7
  loop: start=0, step=1, limit=4
  $region2: #{encoder_forward.6} parent=0 // loop_pre_header
    _
  $region3: #{encoder_forward.6} parent=0 // loop_header
    %s12 = sphi 0, %s16
    %p13 = scmp.ge.s32.totalorder %s12, 4
    %s22 = sphi 0, %s24
    %s25 = sphi 0, %s22
    %s26 = sphi 0, %s25
    %s42 = sphi 0, %s26
    %s46 = sphi 0, %s46
    %s48 = sphi 0, %s46
    %s49 = sphi 0, %s48
    %s63 = sphi 0, %s49
    %s67 = sphi 0, %s67
    %s69 = sphi 0, %s67
    %s70 = sphi 0, %s69
    %s84 = sphi 0, %s70
    %s90 = sphi 0, %s92
    %s93 = sphi 0, %s90
    %s94 = sphi 0, %s93
    %s110 = sphi 0, %s94
    %s116 = sphi 0, %s118
    %s119 = sphi 0, %s116
    %s120 = sphi 0, %s119
    %s136 = sphi 0, %s120
    %s142 = sphi 0, %s144
    %s145 = sphi 0, %s142
    %s146 = sphi 0, %s145
    %s162 = sphi 0, %s146
  $region4: #{encoder_forward.6} parent=0 // loop_header_branch
    %15 = sbr.rel (%p13) target = $region8
  $region5: #{encoder_forward.6} parent=0 // loop_body
    %s17 = ssub.s32 %s12, 1
    %s18 = ssub.s32 %s12, 2
    %s19 = sadd.s32 %s12, 1
    %s20 = ssub.s32 %s12, %s19
    %p21 = scmp.eq.s32.totalorder %s20, 0
    %s23 = sadd.s32 %s22, 1
    %s24 = scalar_select %p21, %s22, %s23
    %p27 = pneg %p21
    %p28 = scmp.eq.s32.totalorder %s12, 1
    %p29 = por %p27, %p28
    %p30 = scmp.ne.s32.totalorder %s22, %s25
    %p31 = scmp.eq.s32.totalorder %s12, 0
    %p32 = por %p30, %p31
    %p33 = scmp.ne.s32.totalorder %s22, %s25
    %p34 = scmp.eq.s32.totalorder %s17, 1
    %p35 = por %p33, %p34
    %p36 = scmp.ne.s32.totalorder %s25, %s26
    %p37 = scmp.eq.s32.totalorder %s17, 0
    %p38 = por %p36, %p37
    %p39 = scmp.ne.s32.totalorder %s25, %s26
    %p40 = scmp.eq.s32.totalorder %s18, 1
    %p41 = por %p39, %p40
    %p43 = scmp.ne.s32.totalorder %s26, %s42
    %p44 = scmp.eq.s32.totalorder %s18, 0
    %p45 = por %p43, %p44
    %s47 = sadd.s32 %s46, 1
    %p50 = scmp.eq.s32.totalorder %s12, 1
    %p51 = scmp.ne.s32.totalorder %s46, %s48
    %p52 = scmp.eq.s32.totalorder %s12, 0
    %p53 = por %p51, %p52
    %p54 = scmp.ne.s32.totalorder %s46, %s48
    %p55 = scmp.eq.s32.totalorder %s17, 1
    %p56 = por %p54, %p55
    %p57 = scmp.ne.s32.totalorder %s48, %s49
    %p58 = scmp.eq.s32.totalorder %s17, 0
    %p59 = por %p57, %p58
    %p60 = scmp.ne.s32.totalorder %s48, %s49
    %p61 = scmp.eq.s32.totalorder %s18, 1
    %p62 = por %p60, %p61
    %p64 = scmp.ne.s32.totalorder %s49, %s63
    %p65 = scmp.eq.s32.totalorder %s18, 0
    %p66 = por %p64, %p65
    %s68 = sadd.s32 %s67, 1
    %p71 = scmp.eq.s32.totalorder %s12, 1
    %p72 = scmp.ne.s32.totalorder %s67, %s69
    %p73 = scmp.eq.s32.totalorder %s12, 0
    %p74 = por %p72, %p73
    %p75 = scmp.ne.s32.totalorder %s67, %s69
    %p76 = scmp.eq.s32.totalorder %s17, 1
    %p77 = por %p75, %p76
    %p78 = scmp.ne.s32.totalorder %s69, %s70
    %p79 = scmp.eq.s32.totalorder %s17, 0
    %p80 = por %p78, %p79
    %p81 = scmp.ne.s32.totalorder %s69, %s70
    %p82 = scmp.eq.s32.totalorder %s18, 1
    %p83 = por %p81, %p82
    %p85 = scmp.ne.s32.totalorder %s70, %s84
    %p86 = scmp.eq.s32.totalorder %s18, 0
    %p87 = por %p85, %p86
    %s88 = ssub.s32 %s12, %s19
    %p89 = scmp.eq.s32.totalorder %s88, 0
    %s91 = sadd.s32 %s90, 1
    %s92 = scalar_select %p89, %s90, %s91
    %p95 = pneg %p89
    %p96 = scmp.eq.s32.totalorder %s12, 1
    %p97 = por %p95, %p96
    %p98 = scmp.ne.s32.totalorder %s90, %s93
    %p99 = scmp.eq.s32.totalorder %s12, 0
    %p100 = por %p98, %p99
    %p101 = scmp.ne.s32.totalorder %s90, %s93
    %p102 = scmp.eq.s32.totalorder %s17, 1
    %p103 = por %p101, %p102
    %p104 = scmp.ne.s32.totalorder %s93, %s94
    %p105 = scmp.eq.s32.totalorder %s17, 0
    %p106 = por %p104, %p105
    %p107 = scmp.ne.s32.totalorder %s93, %s94
    %p108 = scmp.eq.s32.totalorder %s18, 1
    %p109 = por %p107, %p108
    %p111 = scmp.ne.s32.totalorder %s94, %s110
    %p112 = scmp.eq.s32.totalorder %s18, 0
    %p113 = por %p111, %p112
    %s114 = ssub.s32 %s12, %s19
    %p115 = scmp.eq.s32.totalorder %s114, 0
    %s117 = sadd.s32 %s116, 1
    %s118 = scalar_select %p115, %s116, %s117
    %p121 = pneg %p115
    %p122 = scmp.eq.s32.totalorder %s12, 1
    %p123 = por %p121, %p122
    %p124 = scmp.ne.s32.totalorder %s116, %s119
    %p125 = scmp.eq.s32.totalorder %s12, 0
    %p126 = por %p124, %p125
    %p127 = scmp.ne.s32.totalorder %s116, %s119
    %p128 = scmp.eq.s32.totalorder %s17, 1
    %p129 = por %p127, %p128
    %p130 = scmp.ne.s32.totalorder %s119, %s120
    %p131 = scmp.eq.s32.totalorder %s17, 0
    %p132 = por %p130, %p131
    %p133 = scmp.ne.s32.totalorder %s119, %s120
    %p134 = scmp.eq.s32.totalorder %s18, 1
    %p135 = por %p133, %p134
    %p137 = scmp.ne.s32.totalorder %s120, %s136
    %p138 = scmp.eq.s32.totalorder %s18, 0
    %p139 = por %p137, %p138
    %s140 = ssub.s32 %s12, %s19
    %p141 = scmp.eq.s32.totalorder %s140, 0
    %s143 = sadd.s32 %s142, 1
    %s144 = scalar_select %p141, %s142, %s143
    %p147 = pneg %p141
    %p148 = scmp.eq.s32.totalorder %s12, 1
    %p149 = por %p147, %p148
    %p150 = scmp.ne.s32.totalorder %s142, %s145
    %p151 = scmp.eq.s32.totalorder %s12, 0
    %p152 = por %p150, %p151
    %p153 = scmp.ne.s32.totalorder %s142, %s145
    %p154 = scmp.eq.s32.totalorder %s17, 1
    %p155 = por %p153, %p154
    %p156 = scmp.ne.s32.totalorder %s145, %s146
    %p157 = scmp.eq.s32.totalorder %s17, 0
    %p158 = por %p156, %p157
    %p159 = scmp.ne.s32.totalorder %s145, %s146
    %p160 = scmp.eq.s32.totalorder %s18, 1
    %p161 = por %p159, %p160
    %p163 = scmp.ne.s32.totalorder %s146, %s162
    %p164 = scmp.eq.s32.totalorder %s18, 0
    %p165 = por %p163, %p164
    %p166 = scmp.le.s32.totalorder 1, %s12
    %p167 = scmp.lt.s32.totalorder %s12, 3
    %p168 = pnand %p166, %p167
    %p169 = pneg %p168
    // Predicated region
    $region9: #{encoder_forward.6} parent=5 // pred_check
      _
    $region10: #{encoder_forward.6} parent=5 // pred_check_branch
      %171 = sbr.rel (%p168) target = $region12
    $region11: #{encoder_forward.6} parent=5 // pred_region
      %s172 = ssub.s32 %s12, 1
      // Predicated region
      $region13: #{encoder_forward.6} parent=11 // pred_check
        %p173 = pneg %p59
      $region14: #{encoder_forward.6} parent=11 // pred_check_branch
        %175 = sbr.rel (%p173) target = $region16
      $region15: #{encoder_forward.6} parent=11 // pred_region
        _
      $region16: #{encoder_forward.6} parent=11 // pred_fallthru
        _
      // Predicated region
      $region17: #{encoder_forward.6} parent=11 // pred_check
        %p176 = pneg %p80
      $region18: #{encoder_forward.6} parent=11 // pred_check_branch
        %178 = sbr.rel (%p176) target = $region20
      $region19: #{encoder_forward.6} parent=11 // pred_region
        _
      $region20: #{encoder_forward.6} parent=11 // pred_fallthru
        _
    $region12: #{encoder_forward.6} parent=5 // pred_fallthru
      _
    %p179 = scmp.lt.s32.totalorder %s12, 2
    // Predicated region
    $region21: #{encoder_forward.6} parent=5 // pred_check
      %p180 = pneg %p179
    $region22: #{encoder_forward.6} parent=5 // pred_check_branch
      %182 = sbr.rel (%p180) target = $region24
    $region23: #{encoder_forward.6} parent=5 // pred_region
      // Predicated region
      $region25: #{encoder_forward.6} parent=23 // pred_check
        %p183 = pneg %p32
      $region26: #{encoder_forward.6} parent=23 // pred_check_branch
        %185 = sbr.rel (%p183) target = $region28
      $region27: #{encoder_forward.6} parent=23 // pred_region
        %s186 = smul.u32 2, %s12
        %p187 = scmp.lt.s32.totalorder %s186, 3
        %s188 = scalar_select %p187, %s186, 3
        %s189 = smul.addr %s188, 8
        %s190 = scalar_lea.vmem %s0, %s189
        %s191 = smul.u32 2, %s12
      $region28: #{encoder_forward.6} parent=23 // pred_fallthru
        _
    $region24: #{encoder_forward.6} parent=5 // pred_fallthru
      _
    %p192 = scmp.le.s32.totalorder 1, %s12
    %p193 = scmp.lt.s32.totalorder %s12, 3
    %p194 = pnand %p192, %p193
    %p195 = pneg %p194
    // Predicated region
    $region29: #{encoder_forward.6} parent=5 // pred_check
      _
    $region30: #{encoder_forward.6} parent=5 // pred_check_branch
      %197 = sbr.rel (%p194) target = $region32
    $region31: #{encoder_forward.6} parent=5 // pred_region
      %s198 = ssub.s32 %s12, 1
      %s199 = smul.u32 2, %s17
      %p200 = scmp.lt.s32.totalorder %s199, 3
      %s201 = scalar_select %p200, %s199, 3
      %s202 = smul.addr %s201, 8
      %s203 = scalar_lea.vmem %s0, %s202
      %p204 = pneg %p38
      %p205 = pneg %p35
      %p206 = pneg %p59
      %p207 = pneg %p56
      %p208 = pneg %p80
      %p209 = pneg %p77
      %p210 = pneg %p106
      %p211 = pneg %p103
      %s212 = smul.u32 2, %s17
      %p213 = scmp.lt.s32.totalorder %s212, 3
      %s214 = scalar_select %p213, %s212, 3
      %s215 = smul.addr %s214, 4
      %s216 = scalar_lea.vmem %s3, %s215
      %p217 = pneg %p132
      %p218 = pneg %p129
      %s219 = smul.u32 2, %s17
      %p220 = scmp.lt.s32.totalorder %s219, 3
      %s221 = scalar_select %p220, %s219, 3
      %s222 = smul.addr %s221, 4
      %s223 = scalar_lea.vmem %s4, %s222
      %p224 = pneg %p158
      %p225 = pneg %p155
      %s226 = smul.u32 2, %s17
      %p227 = scmp.lt.s32.totalorder %s226, 3
      %s228 = scalar_select %p227, %s226, 3
      %s229 = smul.addr %s228, 4
      %s230 = scalar_lea.vmem %s5, %s229
      %s231 = smul.u32 2, %s17
      %p232 = scmp.lt.s32.totalorder %s231, 3
      %s233 = scalar_select %p232, %s231, 3
      %s234 = smul.addr %s233, 8
      %s235 = scalar_lea.vmem %s0, %s234
      %s236 = smul.u32 2, %s17
      %s237 = smul.u32 2, %s17
      %p238 = scmp.lt.s32.totalorder %s237, 3
      %s239 = scalar_select %p238, %s237, 3
      %s240 = smul.addr %s239, 4
      %s241 = scalar_lea.vmem %s3, %s240
      %s242 = smul.u32 2, %s17
      %s243 = smul.u32 2, %s17
      %p244 = scmp.lt.s32.totalorder %s243, 3
      %s245 = scalar_select %p244, %s243, 3
      %s246 = smul.addr %s245, 4
      %s247 = scalar_lea.vmem %s4, %s246
      %s248 = smul.u32 2, %s17
      %s249 = smul.u32 2, %s17
      %p250 = scmp.lt.s32.totalorder %s249, 3
      %s251 = scalar_select %p250, %s249, 3
      %s252 = smul.addr %s251, 4
      %s253 = scalar_lea.vmem %s5, %s252
      %s254 = smul.u32 2, %s17
      %v256 = vld [vmem:[%s235] sm:$0xff]
      %v257 = vld [vmem:[%s235 + $0x8] sm:$0xff]
      %v258 = vpack.c.bf16 %v257, %v256
      %v259 = vld [vmem:[%s1] sm:$0xff]
      %v260 = vld [vmem:[%s1 + $0x8] sm:$0xf]
      %v261 = vld [vmem:[%s1 + $0xc] sm:$0xff]
      %v262 = vld [vmem:[%s1 + $0x14] sm:$0xf]
      %v263 = vld [vmem:[%s1 + $0x18] sm:$0xff]
      %v264 = vld [vmem:[%s1 + $0x20] sm:$0xf]
      %v265 = vld [vmem:[%s1 + $0x24] sm:$0xff]
      %v266 = vld [vmem:[%s1 + $0x2c] sm:$0xf]
      %v267 = vld [vmem:[%s1 + $0x30] sm:$0xff]
      %v268 = vld [vmem:[%s1 + $0x38] sm:$0xf]
      %v269 = vld [vmem:[%s1 + $0x3c] sm:$0xff]
      %v270 = vld [vmem:[%s1 + $0x44] sm:$0xf]
      %v271 = vld [vmem:[%s1 + $0x48] sm:$0xff]
      %v272 = vld [vmem:[%s1 + $0x50] sm:$0xf]
      %v273 = vld [vmem:[%s1 + $0x54] sm:$0xff]
      %v274 = vld [vmem:[%s1 + $0x5c] sm:$0xf]
      %v275 = vld [vmem:[%s1 + $0x60] sm:$0xff]
      %v276 = vld [vmem:[%s1 + $0x68] sm:$0xf]
      %v277 = vld [vmem:[%s1 + $0x6c] sm:$0xff]
      %v278 = vld [vmem:[%s1 + $0x74] sm:$0xf]
      %v279 = vld [vmem:[%s1 + $0x78] sm:$0xff]
      %v280 = vld [vmem:[%s1 + $0x80] sm:$0xf]
      %v281 = vld [vmem:[%s1 + $0x84] sm:$0xff]
      %v282 = vld [vmem:[%s1 + $0x8c] sm:$0xf]
      %v283 = vld [vmem:[%s1 + $0x90] sm:$0xff]
      %v284 = vld [vmem:[%s1 + $0x98] sm:$0xf]
      %v285 = vld [vmem:[%s1 + $0x9c] sm:$0xff]
      %v286 = vld [vmem:[%s1 + $0xa4] sm:$0xf]
      %v287 = vld [vmem:[%s1 + $0xa8] sm:$0xff]
      %v288 = vld [vmem:[%s1 + $0xb0] sm:$0xf]
      %v289 = vld [vmem:[%s1 + $0xb4] sm:$0xff]
      %v290 = vld [vmem:[%s1 + $0xbc] sm:$0xf]
      %v291 = vld [vmem:[%s2] sm:$0x7]
      %v293 = vlaneseq
      %v294 = vshrl.u32 %v293, 7
      %v295 = vsub.s32 0, %v294
      %v296 = vrot.slane %v291, %v295
      %v297 = vlaneseq
      %v298 = vshrl.u32 %v297, 7
      %v299 = vsub.s32 1, %v298
      %v300 = vrot.slane %v291, %v299
      %v301 = vlaneseq
      %v302 = vshrl.u32 %v301, 7
      %v303 = vsub.s32 2, %v302
      %v304 = vrot.slane %v291, %v303
      %v340 = vunpack.c.l.b16 %v259
      %v341 = vunpack.c.h.b16 %v259
      %v342 = vunpack.c.l.b16 %v260
      %v343 = vunpack.c.l.b16 %v261
      %v344 = vunpack.c.h.b16 %v261
      %v345 = vunpack.c.l.b16 %v262
      %v346 = vunpack.c.l.b16 %v263
      %v347 = vunpack.c.h.b16 %v263
      %v348 = vunpack.c.l.b16 %v264
      %v349 = vunpack.c.l.b16 %v265
      %v350 = vunpack.c.h.b16 %v265
      %v351 = vunpack.c.l.b16 %v266
      %v352 = vunpack.c.l.b16 %v267
      %v353 = vunpack.c.h.b16 %v267
      %v354 = vunpack.c.l.b16 %v268
      %v355 = vunpack.c.l.b16 %v269
      %v356 = vunpack.c.h.b16 %v269
      %v357 = vunpack.c.l.b16 %v270
      %v358 = vunpack.c.l.b16 %v271
      %v359 = vunpack.c.h.b16 %v271
      %v360 = vunpack.c.l.b16 %v272
      %v361 = vunpack.c.l.b16 %v273
      %v362 = vunpack.c.h.b16 %v273
      %v363 = vunpack.c.l.b16 %v274
      %v364 = vunpack.c.l.b16 %v275
      %v365 = vunpack.c.h.b16 %v275
      %v366 = vunpack.c.l.b16 %v276
      %v367 = vunpack.c.l.b16 %v277
      %v368 = vunpack.c.h.b16 %v277
      %v369 = vunpack.c.l.b16 %v278
      %v370 = vunpack.c.l.b16 %v279
      %v371 = vunpack.c.h.b16 %v279
      %v372 = vunpack.c.l.b16 %v280
      %v373 = vunpack.c.l.b16 %v281
      %v374 = vunpack.c.h.b16 %v281
      %v375 = vunpack.c.l.b16 %v282
      %v376 = vunpack.c.l.b16 %v283
      %v377 = vunpack.c.h.b16 %v283
      %v378 = vunpack.c.l.b16 %v284
      %v379 = vunpack.c.l.b16 %v285
      %v380 = vunpack.c.h.b16 %v285
      %v381 = vunpack.c.l.b16 %v286
      %v382 = vunpack.c.l.b16 %v287
      %v383 = vunpack.c.h.b16 %v287
      %v384 = vunpack.c.l.b16 %v288
      %v385 = vunpack.c.l.b16 %v289
      %v386 = vunpack.c.h.b16 %v289
      %v387 = vunpack.c.l.b16 %v290
      %v388 = vpack.c.b16 %v343, %v340
      %v389 = vpack.c.b16 %v344, %v341
      %v390 = vpack.c.b16 %v345, %v342
      %v391 = vpack.c.b16 %v349, %v346
      %v392 = vpack.c.b16 %v350, %v347
      %v393 = vpack.c.b16 %v351, %v348
      %v394 = vpack.c.b16 %v355, %v352
      %v395 = vpack.c.b16 %v356, %v353
      %v396 = vpack.c.b16 %v357, %v354
      %v397 = vpack.c.b16 %v361, %v358
      %v398 = vpack.c.b16 %v362, %v359
      %v399 = vpack.c.b16 %v363, %v360
      %v400 = vpack.c.b16 %v367, %v364
      %v401 = vpack.c.b16 %v368, %v365
      %v402 = vpack.c.b16 %v369, %v366
      %v403 = vpack.c.b16 %v373, %v370
      %v404 = vpack.c.b16 %v374, %v371
      %v405 = vpack.c.b16 %v375, %v372
      %v406 = vpack.c.b16 %v379, %v376
      %v407 = vpack.c.b16 %v380, %v377
      %v408 = vpack.c.b16 %v381, %v378
      %v409 = vpack.c.b16 %v385, %v382
      %v410 = vpack.c.b16 %v386, %v383
      %v411 = vpack.c.b16 %v387, %v384
      %436 = vmatprep.subr.bf16.mxu0 %v389
      %437 = vmatpush1.bf16.msra.mxu0 %v388
      %438 = vmatprep.subr.bf16.mxu0 %v392
      %439 = vmatpush1.bf16.msra.mxu0 %v391
      %440 = vmatprep.subr.bf16.mxu0 %v395
      %441 = vmatpush1.bf16.msra.mxu0 %v394
      %442 = vmatprep.subr.bf16.mxu0 %v398
      %443 = vmatpush1.bf16.msra.mxu0 %v397
      %444 = vmatprep.subr.bf16.mxu0 %v401
      %445 = vmatpush1.bf16.msra.mxu0 %v400
      %446 = vmatprep.subr.bf16.mxu0 %v404
      %447 = vmatpush1.bf16.msra.mxu0 %v403
      %448 = vmatprep.subr.bf16.mxu0 %v407
      %449 = vmatpush1.bf16.msra.mxu0 %v406
      %450 = vmatprep.subr.bf16.mxu0 %v410
      %451 = vmatpush1.bf16.msra.mxu0 %v409
      %452 = vmatprep.subr.bf16.mxu0 0
      %453 = vmatpush1.bf16.msra.mxu0 0
      %454 = vmatprep.subr.bf16.mxu0 0
      %455 = vmatpush1.bf16.msra.mxu0 0
      %456 = vmatprep.subr.bf16.mxu0 0
      %457 = vmatpush1.bf16.msra.mxu0 0
      %458 = vmatprep.subr.bf16.mxu0 0
      %459 = vmatpush1.bf16.msra.mxu0 0
      %460 = vmatprep.subr.bf16.mxu0 0
      %461 = vmatpush1.bf16.msra.mxu0 0
      %462 = vmatprep.subr.bf16.mxu0 0
      %463 = vmatpush1.bf16.msra.mxu0 0
      %464 = vmatprep.subr.bf16.mxu0 0
      %465 = vmatpush1.bf16.msra.mxu0 0
      %466 = vmatprep.subr.bf16.mxu0 0
      %467 = vmatpush1.bf16.msra.mxu0 0
      %468 = vmatprep.mubr.bf16.mxu0 0
      %469 = vmatmul.mubr.bf16.gmra.mrb[0].mxu0 %v258
      %v470 = vpop.f32.mrb[0].mxu0
      %v471 = vadd.f32 %v296, %v470
      %v472 = vpop.f32.mrb[0].mxu0
      %v473 = vadd.f32 %v300, %v472
      %v474 = vpop.f32.mrb[0].mxu0
      %v475 = vadd.f32 %v296, %v474
      %v476 = vpop.f32.mrb[0].mxu0
      %v477 = vadd.f32 %v300, %v476
      %478 = vdwg.mxu0
      %479 = vmatprep.subr.bf16.mxu0 0
      %480 = vmatpush1.bf16.msra.mxu0 %v390
      %481 = vmatprep.subr.bf16.mxu0 0
      %482 = vmatpush1.bf16.msra.mxu0 %v393
      %483 = vmatprep.subr.bf16.mxu0 0
      %484 = vmatpush1.bf16.msra.mxu0 %v396
      %485 = vmatprep.subr.bf16.mxu0 0
      %486 = vmatpush1.bf16.msra.mxu0 %v399
      %487 = vmatprep.subr.bf16.mxu0 0
      %488 = vmatpush1.bf16.msra.mxu0 %v402
      %489 = vmatprep.subr.bf16.mxu0 0
      %490 = vmatpush1.bf16.msra.mxu0 %v405
      %491 = vmatprep.subr.bf16.mxu0 0
      %492 = vmatpush1.bf16.msra.mxu0 %v408
      %493 = vmatprep.subr.bf16.mxu0 0
      %494 = vmatpush1.bf16.msra.mxu0 %v411
      %495 = vmatprep.subr.bf16.mxu0 0
      %496 = vmatpush1.bf16.msra.mxu0 0
      %497 = vmatprep.subr.bf16.mxu0 0
      %498 = vmatpush1.bf16.msra.mxu0 0
      %499 = vmatprep.subr.bf16.mxu0 0
      %500 = vmatpush1.bf16.msra.mxu0 0
      %501 = vmatprep.subr.bf16.mxu0 0
      %502 = vmatpush1.bf16.msra.mxu0 0
      %503 = vmatprep.subr.bf16.mxu0 0
      %504 = vmatpush1.bf16.msra.mxu0 0
      %505 = vmatprep.subr.bf16.mxu0 0
      %506 = vmatpush1.bf16.msra.mxu0 0
      %507 = vmatprep.subr.bf16.mxu0 0
      %508 = vmatpush1.bf16.msra.mxu0 0
      %509 = vmatprep.subr.bf16.mxu0 0
      %510 = vmatpush1.bf16.msra.mxu0 0
      %511 = vmatprep.mubr.bf16.mxu0 0
      %512 = vmatmul.mubr.bf16.gmra.mrb[0].mxu0 %v258
      %v513 = vpop.f32.mrb[0].mxu0
      %v514 = vadd.f32 %v304, %v513
      %v515 = vpop.f32.mrb[0].mxu0
      %v516 = vpop.f32.mrb[0].mxu0
      %v517 = vadd.f32 %v304, %v516
      %v518 = vpop.f32.mrb[0].mxu0
      %519 = vdwg.mxu0
      %v520 = vpack.c.bf16 %v475, %v471
      %v521 = vpack.c.bf16 %v477, %v473
      %v522 = vpack.c.bf16 %v517, %v514
      %v524 = vunpack.c.l.b16 %v520
      %v525 = vunpack.c.h.b16 %v520
      %v526 = vpack.c.b16 %v524, %v524
      %v527 = vpack.c.b16 %v525, %v525
      %530 = vst [vmem:[%s241] sm:$0xf] %v526
      %531 = vst [vmem:[%s241 + $0x4] sm:$0xf] %v527
      %v533 = vunpack.c.l.b16 %v521
      %v534 = vunpack.c.h.b16 %v521
      %v535 = vpack.c.b16 %v533, %v533
      %v536 = vpack.c.b16 %v534, %v534
      %539 = vst [vmem:[%s247] sm:$0xf] %v535
      %540 = vst [vmem:[%s247 + $0x4] sm:$0xf] %v536
      %v542 = vunpack.c.l.b16 %v522
      %v543 = vunpack.c.h.b16 %v522
      %v544 = vpack.c.b16 %v542, %v542
      %v545 = vpack.c.b16 %v543, %v543
      %548 = vst [vmem:[%s253] sm:$0xf] %v544
      %549 = vst [vmem:[%s253 + $0x4] sm:$0xf] %v545
      %s550 = smul.u32 2, %s17
      %p551 = scmp.lt.s32.totalorder %s550, 3
      %s552 = scalar_select %p551, %s550, 3
      %s553 = smul.addr %s552, 4
      %s554 = scalar_lea.vmem %s3, %s553
      %s555 = smul.u32 2, %s17
      %p556 = scmp.lt.s32.totalorder %s555, 3
      %s557 = scalar_select %p556, %s555, 3
      %s558 = smul.addr %s557, 4
      %s559 = scalar_lea.vmem %s4, %s558
      %s560 = smul.u32 2, %s17
      %p561 = scmp.lt.s32.totalorder %s560, 3
      %s562 = scalar_select %p561, %s560, 3
      %s563 = smul.addr %s562, 4
      %s564 = scalar_lea.vmem %s5, %s563
      // Predicated region
      $region33: #{encoder_forward.6} parent=31 // pred_check
        %p565 = pneg %p103
      $region34: #{encoder_forward.6} parent=31 // pred_check_branch
        %567 = sbr.rel (%p565) target = $region36
      $region35: #{encoder_forward.6} parent=31 // pred_region
        %s568 = smul.u32 2, %s17
      $region36: #{encoder_forward.6} parent=31 // pred_fallthru
        _
      // Predicated region
      $region37: #{encoder_forward.6} parent=31 // pred_check
        %p569 = pneg %p129
      $region38: #{encoder_forward.6} parent=31 // pred_check_branch
        %571 = sbr.rel (%p569) target = $region40
      $region39: #{encoder_forward.6} parent=31 // pred_region
        %s572 = smul.u32 2, %s17
      $region40: #{encoder_forward.6} parent=31 // pred_fallthru
        _
      // Predicated region
      $region41: #{encoder_forward.6} parent=31 // pred_check
        %p573 = pneg %p155
      $region42: #{encoder_forward.6} parent=31 // pred_check_branch
        %575 = sbr.rel (%p573) target = $region44
      $region43: #{encoder_forward.6} parent=31 // pred_region
        %s576 = smul.u32 2, %s17
      $region44: #{encoder_forward.6} parent=31 // pred_fallthru
        _
    $region32: #{encoder_forward.6} parent=5 // pred_fallthru
      _
    %p577 = scmp.le.s32.totalorder 2, %s12
    // Predicated region
    $region45: #{encoder_forward.6} parent=5 // pred_check
      %p578 = pneg %p577
    $region46: #{encoder_forward.6} parent=5 // pred_check_branch
      %580 = sbr.rel (%p578) target = $region48
    $region47: #{encoder_forward.6} parent=5 // pred_region
      %s581 = ssub.s32 %s12, 2
      // Predicated region
      $region49: #{encoder_forward.6} parent=47 // pred_check
        %p582 = pneg %p109
      $region50: #{encoder_forward.6} parent=47 // pred_check_branch
        %584 = sbr.rel (%p582) target = $region52
      $region51: #{encoder_forward.6} parent=47 // pred_region
        %s585 = smul.u32 2, %s18
        %p586 = scmp.lt.s32.totalorder %s585, 3
        %s587 = scalar_select %p586, %s585, 3
        %s588 = smul.addr %s587, 4
        %s589 = scalar_lea.vmem %s3, %s588
      $region52: #{encoder_forward.6} parent=47 // pred_fallthru
        _
      // Predicated region
      $region53: #{encoder_forward.6} parent=47 // pred_check
        %p590 = pneg %p135
      $region54: #{encoder_forward.6} parent=47 // pred_check_branch
        %592 = sbr.rel (%p590) target = $region56
      $region55: #{encoder_forward.6} parent=47 // pred_region
        %s593 = smul.u32 2, %s18
        %p594 = scmp.lt.s32.totalorder %s593, 3
        %s595 = scalar_select %p594, %s593, 3
        %s596 = smul.addr %s595, 4
        %s597 = scalar_lea.vmem %s4, %s596
      $region56: #{encoder_forward.6} parent=47 // pred_fallthru
        _
      // Predicated region
      $region57: #{encoder_forward.6} parent=47 // pred_check
        %p598 = pneg %p161
      $region58: #{encoder_forward.6} parent=47 // pred_check_branch
        %600 = sbr.rel (%p598) target = $region60
      $region59: #{encoder_forward.6} parent=47 // pred_region
        %s601 = smul.u32 2, %s18
        %p602 = scmp.lt.s32.totalorder %s601, 3
        %s603 = scalar_select %p602, %s601, 3
        %s604 = smul.addr %s603, 4
        %s605 = scalar_lea.vmem %s5, %s604
      $region60: #{encoder_forward.6} parent=47 // pred_fallthru
        _
    $region48: #{encoder_forward.6} parent=5 // pred_fallthru
      _
  $region6: #{encoder_forward.6} parent=0 // loop_footer
    %s16 = sadd.s32 1, %s12
  $region7: #{encoder_forward.6} parent=0 // loop_footer_branch
    %11 = sbr.rel target = $region3
  $region8: #{encoder_forward.6} parent=0 // loop_exit
    _

// kernel: encoder_forward.7
$region0: #{encoder_forward.7}
  #allocation0 [shape = 'u32[]', space=smem, size = 0x4, offset = 0x4, fixed_abs, tag = 'smem constant byte address 0x4 - core index']
  #allocation1 [shape = 'u32[144,128]{1,0:T(1,128)}', space=vmem, size = 0x12000, scoped, tag = 'internal scratch']
  %s0 = inlined_call_operand.vmem [shape: bf16[8,16,32], index: 0, kind: input, shape index: {}]
  %s1 = inlined_call_operand.vmem [shape: bf16[8,16,32], index: 1, kind: input, shape index: {}]
  %s2 = inlined_call_operand.vmem [shape: bf16[8,16,32], index: 2, kind: input, shape index: {}]
  %s3 = inlined_call_operand.vmem [shape: bf16[8,16,32], index: 3, kind: output, shape index: {0}]
  %s4 = inlined_call_operand.hbm [shape: f32[8,16,16], index: 4, kind: output, shape index: {1}]
  %5 = xla_tuple %s3, %s4
  %s6 = sld [smem:[#allocation0]]
  $region53: #{encoder_forward.7} parent=0
    _
  %s8 = ssub.s32 1, %s6
  %s9 = scalar_select 0, %s8, %s6
  $region1: #{encoder_forward.7} parent=0
    #allocation2 [shape = 'u8[65536]{0}', space=vmem, size = 0x10000, scoped, tag = 'output window, operand 1']
    #allocation3 [shape = 's32[2]{0}', space=sflag, size = 0x8, scoped, tag = 'scoped memory for encoder_forward.7']
    %10 = vsyncpa [#allocation3], 0
    %s11 = scalar_lea.sflag [#allocation3], 1
    %12 = vsyncpa %s11, 0
    loop: start=0, step=1, limit=4
    $region2: #{encoder_forward.7} parent=1 // loop_pre_header
      _
    $region3: #{encoder_forward.7} parent=1 // loop_header
      %s14 = sphi 0, %s18
      %p15 = scmp.ge.s32.totalorder %s14, 4
      %s24 = sphi 0, %s26
      %s27 = sphi 0, %s24
      %s28 = sphi 0, %s27
      %s44 = sphi 0, %s28
      %s50 = sphi 0, %s52
      %s53 = sphi 0, %s50
      %s54 = sphi 0, %s53
      %s70 = sphi 0, %s54
      %s76 = sphi 0, %s78
      %s79 = sphi 0, %s76
      %s80 = sphi 0, %s79
      %s96 = sphi 0, %s80
      %s102 = sphi 0, %s104
      %s105 = sphi 0, %s102
      %s106 = sphi 0, %s105
      %s122 = sphi 0, %s106
      %s128 = sphi 0, %s130
      %s131 = sphi 0, %s128
      %s132 = sphi 0, %s131
      %s148 = sphi 0, %s132
    $region4: #{encoder_forward.7} parent=1 // loop_header_branch
      %17 = sbr.rel (%p15) target = $region8
    $region5: #{encoder_forward.7} parent=1 // loop_body
      %s19 = ssub.s32 %s14, 1
      %s20 = ssub.s32 %s14, 2
      %s21 = sadd.s32 %s14, 1
      %s22 = ssub.s32 %s14, %s21
      %p23 = scmp.eq.s32.totalorder %s22, 0
      %s25 = sadd.s32 %s24, 1
      %s26 = scalar_select %p23, %s24, %s25
      %p29 = pneg %p23
      %p30 = scmp.eq.s32.totalorder %s14, 1
      %p31 = por %p29, %p30
      %p32 = scmp.ne.s32.totalorder %s24, %s27
      %p33 = scmp.eq.s32.totalorder %s14, 0
      %p34 = por %p32, %p33
      %p35 = scmp.ne.s32.totalorder %s24, %s27
      %p36 = scmp.eq.s32.totalorder %s19, 1
      %p37 = por %p35, %p36
      %p38 = scmp.ne.s32.totalorder %s27, %s28
      %p39 = scmp.eq.s32.totalorder %s19, 0
      %p40 = por %p38, %p39
      %p41 = scmp.ne.s32.totalorder %s27, %s28
      %p42 = scmp.eq.s32.totalorder %s20, 1
      %p43 = por %p41, %p42
      %p45 = scmp.ne.s32.totalorder %s28, %s44
      %p46 = scmp.eq.s32.totalorder %s20, 0
      %p47 = por %p45, %p46
      %s48 = ssub.s32 %s14, %s21
      %p49 = scmp.eq.s32.totalorder %s48, 0
      %s51 = sadd.s32 %s50, 1
      %s52 = scalar_select %p49, %s50, %s51
      %p55 = pneg %p49
      %p56 = scmp.eq.s32.totalorder %s14, 1
      %p57 = por %p55, %p56
      %p58 = scmp.ne.s32.totalorder %s50, %s53
      %p59 = scmp.eq.s32.totalorder %s14, 0
      %p60 = por %p58, %p59
      %p61 = scmp.ne.s32.totalorder %s50, %s53
      %p62 = scmp.eq.s32.totalorder %s19, 1
      %p63 = por %p61, %p62
      %p64 = scmp.ne.s32.totalorder %s53, %s54
      %p65 = scmp.eq.s32.totalorder %s19, 0
      %p66 = por %p64, %p65
      %p67 = scmp.ne.s32.totalorder %s53, %s54
      %p68 = scmp.eq.s32.totalorder %s20, 1
      %p69 = por %p67, %p68
      %p71 = scmp.ne.s32.totalorder %s54, %s70
      %p72 = scmp.eq.s32.totalorder %s20, 0
      %p73 = por %p71, %p72
      %s74 = ssub.s32 %s14, %s21
      %p75 = scmp.eq.s32.totalorder %s74, 0
      %s77 = sadd.s32 %s76, 1
      %s78 = scalar_select %p75, %s76, %s77
      %p81 = pneg %p75
      %p82 = scmp.eq.s32.totalorder %s14, 1
      %p83 = por %p81, %p82
      %p84 = scmp.ne.s32.totalorder %s76, %s79
      %p85 = scmp.eq.s32.totalorder %s14, 0
      %p86 = por %p84, %p85
      %p87 = scmp.ne.s32.totalorder %s76, %s79
      %p88 = scmp.eq.s32.totalorder %s19, 1
      %p89 = por %p87, %p88
      %p90 = scmp.ne.s32.totalorder %s79, %s80
      %p91 = scmp.eq.s32.totalorder %s19, 0
      %p92 = por %p90, %p91
      %p93 = scmp.ne.s32.totalorder %s79, %s80
      %p94 = scmp.eq.s32.totalorder %s20, 1
      %p95 = por %p93, %p94
      %p97 = scmp.ne.s32.totalorder %s80, %s96
      %p98 = scmp.eq.s32.totalorder %s20, 0
      %p99 = por %p97, %p98
      %s100 = ssub.s32 %s14, %s21
      %p101 = scmp.eq.s32.totalorder %s100, 0
      %s103 = sadd.s32 %s102, 1
      %s104 = scalar_select %p101, %s102, %s103
      %p107 = pneg %p101
      %p108 = scmp.eq.s32.totalorder %s14, 1
      %p109 = por %p107, %p108
      %p110 = scmp.ne.s32.totalorder %s102, %s105
      %p111 = scmp.eq.s32.totalorder %s14, 0
      %p112 = por %p110, %p111
      %p113 = scmp.ne.s32.totalorder %s102, %s105
      %p114 = scmp.eq.s32.totalorder %s19, 1
      %p115 = por %p113, %p114
      %p116 = scmp.ne.s32.totalorder %s105, %s106
      %p117 = scmp.eq.s32.totalorder %s19, 0
      %p118 = por %p116, %p117
      %p119 = scmp.ne.s32.totalorder %s105, %s106
      %p120 = scmp.eq.s32.totalorder %s20, 1
      %p121 = por %p119, %p120
      %p123 = scmp.ne.s32.totalorder %s106, %s122
      %p124 = scmp.eq.s32.totalorder %s20, 0
      %p125 = por %p123, %p124
      %s126 = ssub.s32 %s14, %s21
      %p127 = scmp.eq.s32.totalorder %s126, 0
      %s129 = sadd.s32 %s128, 1
      %s130 = scalar_select %p127, %s128, %s129
      %p133 = pneg %p127
      %p134 = scmp.eq.s32.totalorder %s14, 1
      %p135 = por %p133, %p134
      %p136 = scmp.ne.s32.totalorder %s128, %s131
      %p137 = scmp.eq.s32.totalorder %s14, 0
      %p138 = por %p136, %p137
      %p139 = scmp.ne.s32.totalorder %s128, %s131
      %p140 = scmp.eq.s32.totalorder %s19, 1
      %p141 = por %p139, %p140
      %p142 = scmp.ne.s32.totalorder %s131, %s132
      %p143 = scmp.eq.s32.totalorder %s19, 0
      %p144 = por %p142, %p143
      %p145 = scmp.ne.s32.totalorder %s131, %s132
      %p146 = scmp.eq.s32.totalorder %s20, 1
      %p147 = por %p145, %p146
      %p149 = scmp.ne.s32.totalorder %s132, %s148
      %p150 = scmp.eq.s32.totalorder %s20, 0
      %p151 = por %p149, %p150
      %p152 = scmp.le.s32.totalorder 1, %s14
      %p153 = scmp.lt.s32.totalorder %s14, 3
      %p154 = pnand %p152, %p153
      %p155 = pneg %p154
      // Predicated region
      $region9: #{encoder_forward.7} parent=5 // pred_check
        _
      $region10: #{encoder_forward.7} parent=5 // pred_check_branch
        %157 = sbr.rel (%p154) target = $region12
      $region11: #{encoder_forward.7} parent=5 // pred_region
        %s158 = ssub.s32 %s14, 1
      $region12: #{encoder_forward.7} parent=5 // pred_fallthru
        _
      %p159 = scmp.lt.s32.totalorder %s14, 2
      // Predicated region
      $region13: #{encoder_forward.7} parent=5 // pred_check
        %p160 = pneg %p159
      $region14: #{encoder_forward.7} parent=5 // pred_check_branch
        %162 = sbr.rel (%p160) target = $region16
      $region15: #{encoder_forward.7} parent=5 // pred_region
        // Predicated region
        $region17: #{encoder_forward.7} parent=15 // pred_check
          %p163 = pneg %p34
        $region18: #{encoder_forward.7} parent=15 // pred_check_branch
          %165 = sbr.rel (%p163) target = $region20
        $region19: #{encoder_forward.7} parent=15 // pred_region
          %s166 = smul.u32 4, %s14
          %p167 = scmp.lt.s32.totalorder %s166, 7
          %s168 = scalar_select %p167, %s166, 7
          %s169 = smul.addr %s168, 2
          %s170 = smul.addr %s169, 4
          %s171 = scalar_lea.vmem %s0, %s170
          %s172 = smul.u32 4, %s14
        $region20: #{encoder_forward.7} parent=15 // pred_fallthru
          _
        // Predicated region
        $region21: #{encoder_forward.7} parent=15 // pred_check
          %p173 = pneg %p60
        $region22: #{encoder_forward.7} parent=15 // pred_check_branch
          %175 = sbr.rel (%p173) target = $region24
        $region23: #{encoder_forward.7} parent=15 // pred_region
          %s176 = smul.u32 4, %s14
          %p177 = scmp.lt.s32.totalorder %s176, 7
          %s178 = scalar_select %p177, %s176, 7
          %s179 = smul.addr %s178, 2
          %s180 = smul.addr %s179, 4
          %s181 = scalar_lea.vmem %s1, %s180
          %s182 = smul.u32 4, %s14
        $region24: #{encoder_forward.7} parent=15 // pred_fallthru
          _
        // Predicated region
        $region25: #{encoder_forward.7} parent=15 // pred_check
          %p183 = pneg %p86
        $region26: #{encoder_forward.7} parent=15 // pred_check_branch
          %185 = sbr.rel (%p183) target = $region28
        $region27: #{encoder_forward.7} parent=15 // pred_region
          %s186 = smul.u32 4, %s14
          %p187 = scmp.lt.s32.totalorder %s186, 7
          %s188 = scalar_select %p187, %s186, 7
          %s189 = smul.addr %s188, 2
          %s190 = smul.addr %s189, 4
          %s191 = scalar_lea.vmem %s2, %s190
          %s192 = smul.u32 4, %s14
        $region28: #{encoder_forward.7} parent=15 // pred_fallthru
          _
      $region16: #{encoder_forward.7} parent=5 // pred_fallthru
        _
      %p193 = scmp.le.s32.totalorder 1, %s14
      %p194 = scmp.lt.s32.totalorder %s14, 3
      %p195 = pnand %p193, %p194
      %p196 = pneg %p195
      // Predicated region
      $region29: #{encoder_forward.7} parent=5 // pred_check
        _
      $region30: #{encoder_forward.7} parent=5 // pred_check_branch
        %198 = sbr.rel (%p195) target = $region32
      $region31: #{encoder_forward.7} parent=5 // pred_region
        %s199 = ssub.s32 %s14, 1
        %s200 = smul.u32 4, %s19
        %p201 = scmp.lt.s32.totalorder %s200, 7
        %s202 = scalar_select %p201, %s200, 7
        %s203 = smul.addr %s202, 2
        %s204 = smul.addr %s203, 4
        %s205 = scalar_lea.vmem %s0, %s204
        %p206 = pneg %p40
        %p207 = pneg %p37
        %s208 = smul.u32 4, %s19
        %p209 = scmp.lt.s32.totalorder %s208, 7
        %s210 = scalar_select %p209, %s208, 7
        %s211 = smul.addr %s210, 2
        %s212 = smul.addr %s211, 4
        %s213 = scalar_lea.vmem %s1, %s212
        %p214 = pneg %p66
        %p215 = pneg %p63
        %s216 = smul.u32 4, %s19
        %p217 = scmp.lt.s32.totalorder %s216, 7
        %s218 = scalar_select %p217, %s216, 7
        %s219 = smul.addr %s218, 2
        %s220 = smul.addr %s219, 4
        %s221 = scalar_lea.vmem %s2, %s220
        %p222 = pneg %p92
        %p223 = pneg %p89
        %p224 = pneg %p118
        %p225 = pneg %p115
        %s226 = smul.u32 4, %s19
        %p227 = scmp.lt.s32.totalorder %s226, 7
        %s228 = scalar_select %p227, %s226, 7
        %s229 = smul.addr %s228, 2
        %s230 = smul.addr %s229, 4
        %s231 = scalar_lea.vmem %s3, %s230
        %p232 = pneg %p144
        %p233 = pneg %p141
        %s234 = sand.u32 %s131, 1
        %s235 = scalar_lea.sflag [#allocation3], %s234
        %s236 = sand.u32 %s131, 1
        %s237 = smul.addr %s236, 64
        %s238 = scalar_lea.vmem [#allocation2], %s237
        %s239 = smul.u32 4, %s19
        %p240 = scmp.lt.s32.totalorder %s239, 7
        %s241 = scalar_select %p240, %s239, 7
        %s242 = smul.addr %s241, 2
        %s243 = smul.addr %s242, 4
        %s244 = scalar_lea.vmem %s0, %s243
        %s245 = smul.u32 4, %s19
        %s246 = smul.u32 4, %s19
        %p247 = scmp.lt.s32.totalorder %s246, 7
        %s248 = scalar_select %p247, %s246, 7
        %s249 = smul.addr %s248, 2
        %s250 = smul.addr %s249, 4
        %s251 = scalar_lea.vmem %s1, %s250
        %s252 = smul.u32 4, %s19
        %s253 = smul.u32 4, %s19
        %p254 = scmp.lt.s32.totalorder %s253, 7
        %s255 = scalar_select %p254, %s253, 7
        %s256 = smul.addr %s255, 2
        %s257 = smul.addr %s256, 4
        %s258 = scalar_lea.vmem %s2, %s257
        %s259 = smul.u32 4, %s19
        %s260 = smul.u32 4, %s19
        %p261 = scmp.lt.s32.totalorder %s260, 7
        %s262 = scalar_select %p261, %s260, 7
        %s263 = smul.addr %s262, 2
        %s264 = smul.addr %s263, 4
        %s265 = scalar_lea.vmem %s3, %s264
        %s266 = smul.u32 4, %s19
        %s267 = smul.u32 4, %s19
        %v269 = vld [vmem:[%s244] sm:$0xf]
        %v270 = vld [vmem:[%s244 + $0x4] sm:$0xf]
        %v271 = vld [vmem:[%s244 + $0x8] sm:$0xf]
        %v272 = vld [vmem:[%s244 + $0xc] sm:$0xf]
        %v273 = vld [vmem:[%s244 + $0x10] sm:$0xf]
        %v274 = vld [vmem:[%s244 + $0x14] sm:$0xf]
        %v275 = vld [vmem:[%s244 + $0x18] sm:$0xf]
        %v276 = vld [vmem:[%s244 + $0x1c] sm:$0xf]
        %v277 = vld [vmem:[%s251] sm:$0xf]
        %v278 = vld [vmem:[%s251 + $0x4] sm:$0xf]
        %v279 = vld [vmem:[%s251 + $0x8] sm:$0xf]
        %v280 = vld [vmem:[%s251 + $0xc] sm:$0xf]
        %v281 = vld [vmem:[%s251 + $0x10] sm:$0xf]
        %v282 = vld [vmem:[%s251 + $0x14] sm:$0xf]
        %v283 = vld [vmem:[%s251 + $0x18] sm:$0xf]
        %v284 = vld [vmem:[%s251 + $0x1c] sm:$0xf]
        %v285 = vld [vmem:[%s258] sm:$0xf]
        %v286 = vld [vmem:[%s258 + $0x4] sm:$0xf]
        %v287 = vld [vmem:[%s258 + $0x8] sm:$0xf]
        %v288 = vld [vmem:[%s258 + $0xc] sm:$0xf]
        %v289 = vld [vmem:[%s258 + $0x10] sm:$0xf]
        %v290 = vld [vmem:[%s258 + $0x14] sm:$0xf]
        %v291 = vld [vmem:[%s258 + $0x18] sm:$0xf]
        %v292 = vld [vmem:[%s258 + $0x1c] sm:$0xf]
        %v295 = vunpack.c.l.b16 %v269
        %v296 = vunpack.c.l.b16 %v270
        %v297 = vpack.c.b16 %v296, %v295
        %v300 = vunpack.c.l.b16 %v277
        %v301 = vunpack.c.l.b16 %v278
        %v302 = vpack.c.b16 %v301, %v300
        %vm303 = vcmask 261120
        %v305 = vsel %vm303, %v297, 0
        %v308 = vsel %vm303, %v302, 0
        %310 = vmatprep.subr.bf16.mxu0 0
        %311 = vmatpush1.bf16.xpose.msra.mxu0 %v308
        %312 = vmatprep.subr.bf16.mxu0 0
        %313 = vmatpush1.bf16.xpose.msra.mxu0 0
        %314 = vmatprep.subr.bf16.mxu0 0
        %315 = vmatpush1.bf16.xpose.msra.mxu0 0
        %316 = vmatprep.subr.bf16.mxu0 0
        %317 = vmatpush1.bf16.xpose.msra.mxu0 0
        %318 = vmatprep.subr.bf16.mxu0 0
        %319 = vmatpush1.bf16.xpose.msra.mxu0 0
        %320 = vmatprep.subr.bf16.mxu0 0
        %321 = vmatpush1.bf16.xpose.msra.mxu0 0
        %322 = vmatprep.subr.bf16.mxu0 0
        %323 = vmatpush1.bf16.xpose.msra.mxu0 0
        %324 = vmatprep.subr.bf16.mxu0 0
        %325 = vmatpush1.bf16.xpose.msra.mxu0 0
        %326 = vmatprep.subr.bf16.mxu0 0
        %327 = vmatpush1.bf16.xpose.msra.mxu0 0
        %328 = vmatprep.subr.bf16.mxu0 0
        %329 = vmatpush1.bf16.xpose.msra.mxu0 0
        %330 = vmatprep.subr.bf16.mxu0 0
        %331 = vmatpush1.bf16.xpose.msra.mxu0 0
        %332 = vmatprep.subr.bf16.mxu0 0
        %333 = vmatpush1.bf16.xpose.msra.mxu0 0
        %334 = vmatprep.subr.bf16.mxu0 0
        %335 = vmatpush1.bf16.xpose.msra.mxu0 0
        %336 = vmatprep.subr.bf16.mxu0 0
        %337 = vmatpush1.bf16.xpose.msra.mxu0 0
        %338 = vmatprep.subr.bf16.mxu0 0
        %339 = vmatpush1.bf16.xpose.msra.mxu0 0
        %340 = vmatprep.subr.bf16.mxu0 0
        %341 = vmatpush1.bf16.xpose.msra.mxu0 0
        %342 = vmatprep.mubr.bf16.mxu0 0
        %343 = vmatmul.mubr.bf16.gmra.mrb[0].mxu0 %v305
        %v344 = vpop.f32.mrb[0].mxu0
        %v345 = vadd.f32 0.0, %v344
        %v346 = vpop.f32.mrb[0].mxu0
        %v347 = vpop.f32.mrb[0].mxu0
        %v348 = vadd.f32 0.0, %v347
        %v349 = vpop.f32.mrb[0].mxu0
        %350 = vdwg.mxu0
        %v353 = vunpack.c.l.b16 %v271
        %v354 = vunpack.c.l.b16 %v272
        %v355 = vpack.c.b16 %v354, %v353
        %v358 = vunpack.c.l.b16 %v279
        %v359 = vunpack.c.l.b16 %v280
        %v360 = vpack.c.b16 %v359, %v358
        %v362 = vsel %vm303, %v355, 0
        %v365 = vsel %vm303, %v360, 0
        %367 = vmatprep.subr.bf16.mxu0 0
        %368 = vmatpush1.bf16.xpose.msra.mxu0 %v365
        %369 = vmatprep.subr.bf16.mxu0 0
        %370 = vmatpush1.bf16.xpose.msra.mxu0 0
        %371 = vmatprep.subr.bf16.mxu0 0
        %372 = vmatpush1.bf16.xpose.msra.mxu0 0
        %373 = vmatprep.subr.bf16.mxu0 0
        %374 = vmatpush1.bf16.xpose.msra.mxu0 0
        %375 = vmatprep.subr.bf16.mxu0 0
        %376 = vmatpush1.bf16.xpose.msra.mxu0 0
        %377 = vmatprep.subr.bf16.mxu0 0
        %378 = vmatpush1.bf16.xpose.msra.mxu0 0
        %379 = vmatprep.subr.bf16.mxu0 0
        %380 = vmatpush1.bf16.xpose.msra.mxu0 0
        %381 = vmatprep.subr.bf16.mxu0 0
        %382 = vmatpush1.bf16.xpose.msra.mxu0 0
        %383 = vmatprep.subr.bf16.mxu0 0
        %384 = vmatpush1.bf16.xpose.msra.mxu0 0
        %385 = vmatprep.subr.bf16.mxu0 0
        %386 = vmatpush1.bf16.xpose.msra.mxu0 0
        %387 = vmatprep.subr.bf16.mxu0 0
        %388 = vmatpush1.bf16.xpose.msra.mxu0 0
        %389 = vmatprep.subr.bf16.mxu0 0
        %390 = vmatpush1.bf16.xpose.msra.mxu0 0
        %391 = vmatprep.subr.bf16.mxu0 0
        %392 = vmatpush1.bf16.xpose.msra.mxu0 0
        %393 = vmatprep.subr.bf16.mxu0 0
        %394 = vmatpush1.bf16.xpose.msra.mxu0 0
        %395 = vmatprep.subr.bf16.mxu0 0
        %396 = vmatpush1.bf16.xpose.msra.mxu0 0
        %397 = vmatprep.subr.bf16.mxu0 0
        %398 = vmatpush1.bf16.xpose.msra.mxu0 0
        %399 = vmatprep.mubr.bf16.mxu0 0
        %400 = vmatmul.mubr.bf16.gmra.mrb[0].mxu0 %v362
        %v401 = vpop.f32.mrb[0].mxu0
        %v402 = vadd.f32 0.0, %v401
        %v403 = vpop.f32.mrb[0].mxu0
        %v404 = vpop.f32.mrb[0].mxu0
        %v405 = vadd.f32 0.0, %v404
        %v406 = vpop.f32.mrb[0].mxu0
        %407 = vdwg.mxu0
        %v410 = vunpack.c.l.b16 %v273
        %v411 = vunpack.c.l.b16 %v274
        %v412 = vpack.c.b16 %v411, %v410
        %v415 = vunpack.c.l.b16 %v281
        %v416 = vunpack.c.l.b16 %v282
        %v417 = vpack.c.b16 %v416, %v415
        %v419 = vsel %vm303, %v412, 0
        %v422 = vsel %vm303, %v417, 0
        %424 = vmatprep.subr.bf16.mxu0 0
        %425 = vmatpush1.bf16.xpose.msra.mxu0 %v422
        %426 = vmatprep.subr.bf16.mxu0 0
        %427 = vmatpush1.bf16.xpose.msra.mxu0 0
        %428 = vmatprep.subr.bf16.mxu0 0
        %429 = vmatpush1.bf16.xpose.msra.mxu0 0
        %430 = vmatprep.subr.bf16.mxu0 0
        %431 = vmatpush1.bf16.xpose.msra.mxu0 0
        %432 = vmatprep.subr.bf16.mxu0 0
        %433 = vmatpush1.bf16.xpose.msra.mxu0 0
        %434 = vmatprep.subr.bf16.mxu0 0
        %435 = vmatpush1.bf16.xpose.msra.mxu0 0
        %436 = vmatprep.subr.bf16.mxu0 0
        %437 = vmatpush1.bf16.xpose.msra.mxu0 0
        %438 = vmatprep.subr.bf16.mxu0 0
        %439 = vmatpush1.bf16.xpose.msra.mxu0 0
        %440 = vmatprep.subr.bf16.mxu0 0
        %441 = vmatpush1.bf16.xpose.msra.mxu0 0
        %442 = vmatprep.subr.bf16.mxu0 0
        %443 = vmatpush1.bf16.xpose.msra.mxu0 0
        %444 = vmatprep.subr.bf16.mxu0 0
        %445 = vmatpush1.bf16.xpose.msra.mxu0 0
        %446 = vmatprep.subr.bf16.mxu0 0
        %447 = vmatpush1.bf16.xpose.msra.mxu0 0
        %448 = vmatprep.subr.bf16.mxu0 0
        %449 = vmatpush1.bf16.xpose.msra.mxu0 0
        %450 = vmatprep.subr.bf16.mxu0 0
        %451 = vmatpush1.bf16.xpose.msra.mxu0 0
        %452 = vmatprep.subr.bf16.mxu0 0
        %453 = vmatpush1.bf16.xpose.msra.mxu0 0
        %454 = vmatprep.subr.bf16.mxu0 0
        %455 = vmatpush1.bf16.xpose.msra.mxu0 0
        %456 = vmatprep.mubr.bf16.mxu0 0
        %457 = vmatmul.mubr.bf16.gmra.mrb[0].mxu0 %v419
        %v458 = vpop.f32.mrb[0].mxu0
        %v459 = vadd.f32 0.0, %v458
        %v460 = vpop.f32.mrb[0].mxu0
        %v461 = vpop.f32.mrb[0].mxu0
        %v462 = vadd.f32 0.0, %v461
        %v463 = vpop.f32.mrb[0].mxu0
        %464 = vdwg.mxu0
        %v467 = vunpack.c.l.b16 %v275
        %v468 = vunpack.c.l.b16 %v276
        %v469 = vpack.c.b16 %v468, %v467
        %v472 = vunpack.c.l.b16 %v283
        %v473 = vunpack.c.l.b16 %v284
        %v474 = vpack.c.b16 %v473, %v472
        %v476 = vsel %vm303, %v469, 0
        %v479 = vsel %vm303, %v474, 0
        %481 = vmatprep.subr.bf16.mxu0 0
        %482 = vmatpush1.bf16.xpose.msra.mxu0 %v479
        %483 = vmatprep.subr.bf16.mxu0 0
        %484 = vmatpush1.bf16.xpose.msra.mxu0 0
        %485 = vmatprep.subr.bf16.mxu0 0
        %486 = vmatpush1.bf16.xpose.msra.mxu0 0
        %487 = vmatprep.subr.bf16.mxu0 0
        %488 = vmatpush1.bf16.xpose.msra.mxu0 0
        %489 = vmatprep.subr.bf16.mxu0 0
        %490 = vmatpush1.bf16.xpose.msra.mxu0 0
        %491 = vmatprep.subr.bf16.mxu0 0
        %492 = vmatpush1.bf16.xpose.msra.mxu0 0
        %493 = vmatprep.subr.bf16.mxu0 0
        %494 = vmatpush1.bf16.xpose.msra.mxu0 0
        %495 = vmatprep.subr.bf16.mxu0 0
        %496 = vmatpush1.bf16.xpose.msra.mxu0 0
        %497 = vmatprep.subr.bf16.mxu0 0
        %498 = vmatpush1.bf16.xpose.msra.mxu0 0
        %499 = vmatprep.subr.bf16.mxu0 0
        %500 = vmatpush1.bf16.xpose.msra.mxu0 0
        %501 = vmatprep.subr.bf16.mxu0 0
        %502 = vmatpush1.bf16.xpose.msra.mxu0 0
        %503 = vmatprep.subr.bf16.mxu0 0
        %504 = vmatpush1.bf16.xpose.msra.mxu0 0
        %505 = vmatprep.subr.bf16.mxu0 0
        %506 = vmatpush1.bf16.xpose.msra.mxu0 0
        %507 = vmatprep.subr.bf16.mxu0 0
        %508 = vmatpush1.bf16.xpose.msra.mxu0 0
        %509 = vmatprep.subr.bf16.mxu0 0
        %510 = vmatpush1.bf16.xpose.msra.mxu0 0
        %511 = vmatprep.subr.bf16.mxu0 0
        %512 = vmatpush1.bf16.xpose.msra.mxu0 0
        %513 = vmatprep.mubr.bf16.mxu0 0
        %514 = vmatmul.mubr.bf16.gmra.mrb[0].mxu0 %v476
        %v515 = vpop.f32.mrb[0].mxu0
        %v516 = vadd.f32 0.0, %v515
        %v517 = vpop.f32.mrb[0].mxu0
        %v518 = vpop.f32.mrb[0].mxu0
        %v519 = vadd.f32 0.0, %v518
        %v520 = vpop.f32.mrb[0].mxu0
        %521 = vdwg.mxu0
        %v522 = vmul.f32 %v345, 0.17677669
        %v523 = vmul.f32 %v348, 0.17677669
        %v524 = vmul.f32 %v402, 0.17677669
        %v525 = vmul.f32 %v405, 0.17677669
        %v526 = vmul.f32 %v459, 0.17677669
        %v527 = vmul.f32 %v462, 0.17677669
        %v528 = vmul.f32 %v516, 0.17677669
        %v529 = vmul.f32 %v519, 0.17677669
        %vm530 = vcmask 130048
        %v531 = vsel %vm530, %v522, -inf
        %532 = vmax.xlane.f32.xlu0 %v531
        %v533 = vpop.xlane.xlu0 %532
        %v534 = vsel %vm530, %v523, -inf
        %535 = vmax.xlane.f32.xlu0 %v534
        %v536 = vpop.xlane.xlu0 %535
        %v537 = vsel %vm530, %v524, -inf
        %538 = vmax.xlane.f32.xlu0 %v537
        %v539 = vpop.xlane.xlu0 %538
        %v540 = vsel %vm530, %v525, -inf
        %541 = vmax.xlane.f32.xlu0 %v540
        %v542 = vpop.xlane.xlu0 %541
        %v543 = vsel %vm530, %v526, -inf
        %544 = vmax.xlane.f32.xlu0 %v543
        %v545 = vpop.xlane.xlu0 %544
        %v546 = vsel %vm530, %v527, -inf
        %547 = vmax.xlane.f32.xlu0 %v546
        %v548 = vpop.xlane.xlu0 %547
        %v549 = vsel %vm530, %v528, -inf
        %550 = vmax.xlane.f32.xlu0 %v549
        %v551 = vpop.xlane.xlu0 %550
        %v552 = vsel %vm530, %v529, -inf
        %553 = vmax.xlane.f32.xlu0 %v552
        %v554 = vpop.xlane.xlu0 %553
        %v555 = vsub.f32 %v522, %v533
        %v556 = vsub.f32 %v523, %v536
        %v557 = vsub.f32 %v524, %v539
        %v558 = vsub.f32 %v525, %v542
        %v559 = vsub.f32 %v526, %v545
        %v560 = vsub.f32 %v527, %v548
        %v561 = vsub.f32 %v528, %v551
        %v562 = vsub.f32 %v529, %v554
        %v563 = vmul.f32 %v555, 1.442695
        %v564 = vpow.pop %v563
        %v565 = vmul.f32 %v556, 1.442695
        %v566 = vpow.pop %v565
        %v567 = vmul.f32 %v557, 1.442695
        %v568 = vpow.pop %v567
        %v569 = vmul.f32 %v558, 1.442695
        %v570 = vpow.pop %v569
        %v571 = vmul.f32 %v559, 1.442695
        %v572 = vpow.pop %v571
        %v573 = vmul.f32 %v560, 1.442695
        %v574 = vpow.pop %v573
        %v575 = vmul.f32 %v561, 1.442695
        %v576 = vpow.pop %v575
        %v577 = vmul.f32 %v562, 1.442695
        %v578 = vpow.pop %v577
        %v579 = vsel %vm530, %v564, 0.0
        %580 = vadd.xlane.f32.xlu0 %v579
        %v581 = vpop.xlane.xlu0 %580
        %v582 = vsel %vm530, %v566, 0.0
        %583 = vadd.xlane.f32.xlu0 %v582
        %v584 = vpop.xlane.xlu0 %583
        %v585 = vsel %vm530, %v568, 0.0
        %586 = vadd.xlane.f32.xlu0 %v585
        %v587 = vpop.xlane.xlu0 %586
        %v588 = vsel %vm530, %v570, 0.0
        %589 = vadd.xlane.f32.xlu0 %v588
        %v590 = vpop.xlane.xlu0 %589
        %v591 = vsel %vm530, %v572, 0.0
        %592 = vadd.xlane.f32.xlu0 %v591
        %v593 = vpop.xlane.xlu0 %592
        %v594 = vsel %vm530, %v574, 0.0
        %595 = vadd.xlane.f32.xlu0 %v594
        %v596 = vpop.xlane.xlu0 %595
        %v597 = vsel %vm530, %v576, 0.0
        %598 = vadd.xlane.f32.xlu0 %v597
        %v599 = vpop.xlane.xlu0 %598
        %v600 = vsel %vm530, %v578, 0.0
        %601 = vadd.xlane.f32.xlu0 %v600
        %v602 = vpop.xlane.xlu0 %601
        %v603 = vrcp.pop %v581
        %v604 = vmul.f32 %v564, %v603
        %v605 = vrcp.pop %v584
        %v606 = vmul.f32 %v566, %v605
        %v607 = vrcp.pop %v587
        %v608 = vmul.f32 %v568, %v607
        %v609 = vrcp.pop %v590
        %v610 = vmul.f32 %v570, %v609
        %v611 = vrcp.pop %v593
        %v612 = vmul.f32 %v572, %v611
        %v613 = vrcp.pop %v596
        %v614 = vmul.f32 %v574, %v613
        %v615 = vrcp.pop %v599
        %v616 = vmul.f32 %v576, %v615
        %v617 = vrcp.pop %v602
        %v618 = vmul.f32 %v578, %v617
        %619 = vst.msk [vmem:[%s238] sm:$0xff] %vm530, %v604
        %620 = vst.msk [vmem:[%s238 + $0x8] sm:$0xff] %vm530, %v606
        %621 = vst.msk [vmem:[%s238 + $0x10] sm:$0xff] %vm530, %v608
        %622 = vst.msk [vmem:[%s238 + $0x18] sm:$0xff] %vm530, %v610
        %623 = vst.msk [vmem:[%s238 + $0x20] sm:$0xff] %vm530, %v612
        %624 = vst.msk [vmem:[%s238 + $0x28] sm:$0xff] %vm530, %v614
        %625 = vst.msk [vmem:[%s238 + $0x30] sm:$0xff] %vm530, %v616
        %626 = vst.msk [vmem:[%s238 + $0x38] sm:$0xff] %vm530, %v618
        %v627 = vpack.c.bf16 %v606, %v604
        %v628 = vpack.c.bf16 %v610, %v608
        %v629 = vpack.c.bf16 %v614, %v612
        %v630 = vpack.c.bf16 %v618, %v616
        %v633 = vunpack.c.l.b16 %v285
        %v634 = vunpack.c.l.b16 %v286
        %v635 = vpack.c.b16 %v634, %v633
        %v638 = vsel %vm530, %v627, 0
        %640 = vmatprep.subr.bf16.mxu0 0
        %641 = vmatpush1.bf16.msra.mxu0 %v635
        %642 = vmatprep.subr.bf16.mxu0 0
        %643 = vmatpush1.bf16.msra.mxu0 0
        %644 = vmatprep.subr.bf16.mxu0 0
        %645 = vmatpush1.bf16.msra.mxu0 0
        %646 = vmatprep.subr.bf16.mxu0 0
        %647 = vmatpush1.bf16.msra.mxu0 0
        %648 = vmatprep.subr.bf16.mxu0 0
        %649 = vmatpush1.bf16.msra.mxu0 0
        %650 = vmatprep.subr.bf16.mxu0 0
        %651 = vmatpush1.bf16.msra.mxu0 0
        %652 = vmatprep.subr.bf16.mxu0 0
        %653 = vmatpush1.bf16.msra.mxu0 0
        %654 = vmatprep.subr.bf16.mxu0 0
        %655 = vmatpush1.bf16.msra.mxu0 0
        %656 = vmatprep.subr.bf16.mxu0 0
        %657 = vmatpush1.bf16.msra.mxu0 0
        %658 = vmatprep.subr.bf16.mxu0 0
        %659 = vmatpush1.bf16.msra.mxu0 0
        %660 = vmatprep.subr.bf16.mxu0 0
        %661 = vmatpush1.bf16.msra.mxu0 0
        %662 = vmatprep.subr.bf16.mxu0 0
        %663 = vmatpush1.bf16.msra.mxu0 0
        %664 = vmatprep.subr.bf16.mxu0 0
        %665 = vmatpush1.bf16.msra.mxu0 0
        %666 = vmatprep.subr.bf16.mxu0 0
        %667 = vmatpush1.bf16.msra.mxu0 0
        %668 = vmatprep.subr.bf16.mxu0 0
        %669 = vmatpush1.bf16.msra.mxu0 0
        %670 = vmatprep.subr.bf16.mxu0 0
        %671 = vmatpush1.bf16.msra.mxu0 0
        %672 = vmatprep.mubr.bf16.mxu0 0
        %673 = vmatmul.mubr.bf16.gmra.mrb[0].mxu0 %v638
        %v674 = vpop.f32.mrb[0].mxu0
        %v675 = vadd.f32 0.0, %v674
        %v676 = vpop.f32.mrb[0].mxu0
        %v677 = vpop.f32.mrb[0].mxu0
        %v678 = vadd.f32 0.0, %v677
        %v679 = vpop.f32.mrb[0].mxu0
        %680 = vdwg.mxu0
        %v683 = vunpack.c.l.b16 %v287
        %v684 = vunpack.c.l.b16 %v288
        %v685 = vpack.c.b16 %v684, %v683
        %v688 = vsel %vm530, %v628, 0
        %690 = vmatprep.subr.bf16.mxu0 0
        %691 = vmatpush1.bf16.msra.mxu0 %v685
        %692 = vmatprep.subr.bf16.mxu0 0
        %693 = vmatpush1.bf16.msra.mxu0 0
        %694 = vmatprep.subr.bf16.mxu0 0
        %695 = vmatpush1.bf16.msra.mxu0 0
        %696 = vmatprep.subr.bf16.mxu0 0
        %697 = vmatpush1.bf16.msra.mxu0 0
        %698 = vmatprep.subr.bf16.mxu0 0
        %699 = vmatpush1.bf16.msra.mxu0 0
        %700 = vmatprep.subr.bf16.mxu0 0
        %701 = vmatpush1.bf16.msra.mxu0 0
        %702 = vmatprep.subr.bf16.mxu0 0
        %703 = vmatpush1.bf16.msra.mxu0 0
        %704 = vmatprep.subr.bf16.mxu0 0
        %705 = vmatpush1.bf16.msra.mxu0 0
        %706 = vmatprep.subr.bf16.mxu0 0
        %707 = vmatpush1.bf16.msra.mxu0 0
        %708 = vmatprep.subr.bf16.mxu0 0
        %709 = vmatpush1.bf16.msra.mxu0 0
        %710 = vmatprep.subr.bf16.mxu0 0
        %711 = vmatpush1.bf16.msra.mxu0 0
        %712 = vmatprep.subr.bf16.mxu0 0
        %713 = vmatpush1.bf16.msra.mxu0 0
        %714 = vmatprep.subr.bf16.mxu0 0
        %715 = vmatpush1.bf16.msra.mxu0 0
        %716 = vmatprep.subr.bf16.mxu0 0
        %717 = vmatpush1.bf16.msra.mxu0 0
        %718 = vmatprep.subr.bf16.mxu0 0
        %719 = vmatpush1.bf16.msra.mxu0 0
        %720 = vmatprep.subr.bf16.mxu0 0
        %721 = vmatpush1.bf16.msra.mxu0 0
        %722 = vmatprep.mubr.bf16.mxu0 0
        %723 = vmatmul.mubr.bf16.gmra.mrb[0].mxu0 %v688
        %v724 = vpop.f32.mrb[0].mxu0
        %v725 = vadd.f32 0.0, %v724
        %v726 = vpop.f32.mrb[0].mxu0
        %v727 = vpop.f32.mrb[0].mxu0
        %v728 = vadd.f32 0.0, %v727
        %v729 = vpop.f32.mrb[0].mxu0
        %730 = vdwg.mxu0
        %v733 = vunpack.c.l.b16 %v289
        %v734 = vunpack.c.l.b16 %v290
        %v735 = vpack.c.b16 %v734, %v733
        %v738 = vsel %vm530, %v629, 0
        %740 = vmatprep.subr.bf16.mxu0 0
        %741 = vmatpush1.bf16.msra.mxu0 %v735
        %742 = vmatprep.subr.bf16.mxu0 0
        %743 = vmatpush1.bf16.msra.mxu0 0
        %744 = vmatprep.subr.bf16.mxu0 0
        %745 = vmatpush1.bf16.msra.mxu0 0
        %746 = vmatprep.subr.bf16.mxu0 0
        %747 = vmatpush1.bf16.msra.mxu0 0
        %748 = vmatprep.subr.bf16.mxu0 0
        %749 = vmatpush1.bf16.msra.mxu0 0
        %750 = vmatprep.subr.bf16.mxu0 0
        %751 = vmatpush1.bf16.msra.mxu0 0
        %752 = vmatprep.subr.bf16.mxu0 0
        %753 = vmatpush1.bf16.msra.mxu0 0
        %754 = vmatprep.subr.bf16.mxu0 0
        %755 = vmatpush1.bf16.msra.mxu0 0
        %756 = vmatprep.subr.bf16.mxu0 0
        %757 = vmatpush1.bf16.msra.mxu0 0
        %758 = vmatprep.subr.bf16.mxu0 0
        %759 = vmatpush1.bf16.msra.mxu0 0
        %760 = vmatprep.subr.bf16.mxu0 0
        %761 = vmatpush1.bf16.msra.mxu0 0
        %762 = vmatprep.subr.bf16.mxu0 0
        %763 = vmatpush1.bf16.msra.mxu0 0
        %764 = vmatprep.subr.bf16.mxu0 0
        %765 = vmatpush1.bf16.msra.mxu0 0
        %766 = vmatprep.subr.bf16.mxu0 0
        %767 = vmatpush1.bf16.msra.mxu0 0
        %768 = vmatprep.subr.bf16.mxu0 0
        %769 = vmatpush1.bf16.msra.mxu0 0
        %770 = vmatprep.subr.bf16.mxu0 0
        %771 = vmatpush1.bf16.msra.mxu0 0
        %772 = vmatprep.mubr.bf16.mxu0 0
        %773 = vmatmul.mubr.bf16.gmra.mrb[0].mxu0 %v738
        %v774 = vpop.f32.mrb[0].mxu0
        %v775 = vadd.f32 0.0, %v774
        %v776 = vpop.f32.mrb[0].mxu0
        %v777 = vpop.f32.mrb[0].mxu0
        %v778 = vadd.f32 0.0, %v777
        %v779 = vpop.f32.mrb[0].mxu0
        %780 = vdwg.mxu0
        %v783 = vunpack.c.l.b16 %v291
        %v784 = vunpack.c.l.b16 %v292
        %v785 = vpack.c.b16 %v784, %v783
        %v788 = vsel %vm530, %v630, 0
        %790 = vmatprep.subr.bf16.mxu0 0
        %791 = vmatpush1.bf16.msra.mxu0 %v785
        %792 = vmatprep.subr.bf16.mxu0 0
        %793 = vmatpush1.bf16.msra.mxu0 0
        %794 = vmatprep.subr.bf16.mxu0 0
        %795 = vmatpush1.bf16.msra.mxu0 0
        %796 = vmatprep.subr.bf16.mxu0 0
        %797 = vmatpush1.bf16.msra.mxu0 0
        %798 = vmatprep.subr.bf16.mxu0 0
        %799 = vmatpush1.bf16.msra.mxu0 0
        %800 = vmatprep.subr.bf16.mxu0 0
        %801 = vmatpush1.bf16.msra.mxu0 0
        %802 = vmatprep.subr.bf16.mxu0 0
        %803 = vmatpush1.bf16.msra.mxu0 0
        %804 = vmatprep.subr.bf16.mxu0 0
        %805 = vmatpush1.bf16.msra.mxu0 0
        %806 = vmatprep.subr.bf16.mxu0 0
        %807 = vmatpush1.bf16.msra.mxu0 0
        %808 = vmatprep.subr.bf16.mxu0 0
        %809 = vmatpush1.bf16.msra.mxu0 0
        %810 = vmatprep.subr.bf16.mxu0 0
        %811 = vmatpush1.bf16.msra.mxu0 0
        %812 = vmatprep.subr.bf16.mxu0 0
        %813 = vmatpush1.bf16.msra.mxu0 0
        %814 = vmatprep.subr.bf16.mxu0 0
        %815 = vmatpush1.bf16.msra.mxu0 0
        %816 = vmatprep.subr.bf16.mxu0 0
        %817 = vmatpush1.bf16.msra.mxu0 0
        %818 = vmatprep.subr.bf16.mxu0 0
        %819 = vmatpush1.bf16.msra.mxu0 0
        %820 = vmatprep.subr.bf16.mxu0 0
        %821 = vmatpush1.bf16.msra.mxu0 0
        %822 = vmatprep.mubr.bf16.mxu0 0
        %823 = vmatmul.mubr.bf16.gmra.mrb[0].mxu0 %v788
        %v824 = vpop.f32.mrb[0].mxu0
        %v825 = vadd.f32 0.0, %v824
        %v826 = vpop.f32.mrb[0].mxu0
        %v827 = vpop.f32.mrb[0].mxu0
        %v828 = vadd.f32 0.0, %v827
        %v829 = vpop.f32.mrb[0].mxu0
        %830 = vdwg.mxu0
        %v831 = vpack.c.bf16 %v678, %v675
        %v832 = vpack.c.bf16 %v728, %v725
        %v833 = vpack.c.bf16 %v778, %v775
        %v834 = vpack.c.bf16 %v828, %v825
        %v839 = vunpack.c.l.b16 %v831
        %v840 = vunpack.c.h.b16 %v831
        %v841 = vunpack.c.l.b16 %v832
        %v842 = vunpack.c.h.b16 %v832
        %v843 = vunpack.c.l.b16 %v833
        %v844 = vunpack.c.h.b16 %v833
        %v845 = vunpack.c.l.b16 %v834
        %v846 = vunpack.c.h.b16 %v834
        %v847 = vpack.c.b16 %v839, %v839
        %v848 = vpack.c.b16 %v840, %v840
        %v849 = vpack.c.b16 %v841, %v841
        %v850 = vpack.c.b16 %v842, %v842
        %v851 = vpack.c.b16 %v843, %v843
        %v852 = vpack.c.b16 %v844, %v844
        %v853 = vpack.c.b16 %v845, %v845
        %v854 = vpack.c.b16 %v846, %v846
        %vm863 = vcmask 257024
        %864 = vst.msk [vmem:[%s265] sm:$0xf] %vm863, %v847
        %865 = vst.msk [vmem:[%s265 + $0x4] sm:$0xf] %vm863, %v848
        %866 = vst.msk [vmem:[%s265 + $0x8] sm:$0xf] %vm863, %v849
        %867 = vst.msk [vmem:[%s265 + $0xc] sm:$0xf] %vm863, %v850
        %868 = vst.msk [vmem:[%s265 + $0x10] sm:$0xf] %vm863, %v851
        %869 = vst.msk [vmem:[%s265 + $0x14] sm:$0xf] %vm863, %v852
        %870 = vst.msk [vmem:[%s265 + $0x18] sm:$0xf] %vm863, %v853
        %871 = vst.msk [vmem:[%s265 + $0x1c] sm:$0xf] %vm863, %v854
        %s872 = smul.u32 4, %s19
        %p873 = scmp.lt.s32.totalorder %s872, 7
        %s874 = scalar_select %p873, %s872, 7
        %s875 = smul.addr %s874, 2
        %s876 = smul.addr %s875, 4
        %s877 = scalar_lea.vmem %s3, %s876
        %s878 = sand.u32 %s131, 1
        %s879 = scalar_lea.sflag [#allocation3], %s878
        %s880 = sand.u32 %s131, 1
        %s881 = smul.addr %s880, 64
        %s882 = scalar_lea.vmem [#allocation2], %s881
        // Predicated region
        $region33: #{encoder_forward.7} parent=31 // pred_check
          %p883 = pneg %p115
        $region34: #{encoder_forward.7} parent=31 // pred_check_branch
          %885 = sbr.rel (%p883) target = $region36
        $region35: #{encoder_forward.7} parent=31 // pred_region
          %s886 = smul.u32 4, %s19
        $region36: #{encoder_forward.7} parent=31 // pred_fallthru
          _
        // Predicated region
        $region37: #{encoder_forward.7} parent=31 // pred_check
          %p887 = pneg %p141
        $region38: #{encoder_forward.7} parent=31 // pred_check_branch
          %889 = sbr.rel (%p887) target = $region40
        $region39: #{encoder_forward.7} parent=31 // pred_region
          %s890 = smul.u32 4, %s19
          %s892 = ssub.s32 1024, 1024
          %893 = vsyncadd %s879, %s892
          %s894 = smul.addr %s890, 2
          %s895 = smul.addr %s894, 128
          %s896 = scalar_lea.hbm %s4, %s895
          %s897 = sshll.u32 %s882, 4
          %s898 = int_to_ptr.vmem [resolvable:$true] %s897
          %903 = dma.vmem_to_hbm [thread:$0]  %s898, 1024, %s896, %s879, 128, 128, 8
        $region40: #{encoder_forward.7} parent=31 // pred_fallthru
          _
      $region32: #{encoder_forward.7} parent=5 // pred_fallthru
        _
      %p904 = scmp.le.s32.totalorder 2, %s14
      // Predicated region
      $region41: #{encoder_forward.7} parent=5 // pred_check
        %p905 = pneg %p904
      $region42: #{encoder_forward.7} parent=5 // pred_check_branch
        %907 = sbr.rel (%p905) target = $region44
      $region43: #{encoder_forward.7} parent=5 // pred_region
        %s908 = ssub.s32 %s14, 2
        // Predicated region
        $region45: #{encoder_forward.7} parent=43 // pred_check
          %p909 = pneg %p121
        $region46: #{encoder_forward.7} parent=43 // pred_check_branch
          %911 = sbr.rel (%p909) target = $region48
        $region47: #{encoder_forward.7} parent=43 // pred_region
          %s912 = smul.u32 4, %s20
          %p913 = scmp.lt.s32.totalorder %s912, 7
          %s914 = scalar_select %p913, %s912, 7
          %s915 = smul.addr %s914, 2
          %s916 = smul.addr %s915, 4
          %s917 = scalar_lea.vmem %s3, %s916
        $region48: #{encoder_forward.7} parent=43 // pred_fallthru
          _
        // Predicated region
        $region49: #{encoder_forward.7} parent=43 // pred_check
          %p918 = pneg %p147
        $region50: #{encoder_forward.7} parent=43 // pred_check_branch
          %920 = sbr.rel (%p918) target = $region52
        $region51: #{encoder_forward.7} parent=43 // pred_region
          %s921 = sand.u32 %s132, 1
          %s922 = scalar_lea.sflag [#allocation3], %s921
          %s923 = sand.u32 %s132, 1
          %s924 = smul.addr %s923, 64
          %s925 = scalar_lea.vmem [#allocation2], %s924
          %926 = dma.done %s922, 1024
        $region52: #{encoder_forward.7} parent=43 // pred_fallthru
          _
      $region44: #{encoder_forward.7} parent=5 // pred_fallthru
        _
    $region6: #{encoder_forward.7} parent=1 // loop_footer
      %s18 = sadd.s32 1, %s14
    $region7: #{encoder_forward.7} parent=1 // loop_footer_branch
      %13 = sbr.rel target = $region3
    $region8: #{encoder_forward.7} parent=1 // loop_exit
      _
    %927 = vsyncpa [#allocation3], 1
    %s928 = scalar_lea.sflag [#allocation3], 1
    %929 = vsyncpa %s928, 1

// kernel: encoder_forward.8
$region0: #{encoder_forward.8}
  #allocation0 [shape = 'u32[]', space=smem, size = 0x4, offset = 0x4, fixed_abs, tag = 'smem constant byte address 0x4 - core index']
  #allocation1 [shape = 'u32[144,128]{1,0:T(1,128)}', space=vmem, size = 0x12000, scoped, tag = 'internal scratch']
  #allocation2 [shape = 'f32[16,128]{1,0:T(8,128)}', space=vmem, size = 0x2000, scoped, tag = 'scratch operand']
  %s0 = inlined_call_operand.vmem [shape: bf16[32,128], index: 0, kind: input, shape index: {}]
  %s1 = inlined_call_operand.vmem [shape: f32[32,128], index: 1, kind: input, shape index: {}]
  %s2 = inlined_call_operand.vmem [shape: bf16[128,128], index: 2, kind: input, shape index: {}]
  %s3 = inlined_call_operand.vmem [shape: f32[1,128], index: 3, kind: input, shape index: {}]
  %s4 = inlined_call_operand.vmem [shape: f32[1,128], index: 4, kind: input, shape index: {}]
  %s5 = inlined_call_operand.vmem [shape: f32[1,128], index: 5, kind: input, shape index: {}]
  %s6 = inlined_call_operand.vmem [shape: bf16[128,256], index: 6, kind: input, shape index: {}]
  %s7 = inlined_call_operand.vmem [shape: f32[1,256], index: 7, kind: input, shape index: {}]
  %s8 = inlined_call_operand.vmem [shape: bf16[256,128], index: 8, kind: input, shape index: {}]
  %s9 = inlined_call_operand.vmem [shape: f32[1,128], index: 9, kind: input, shape index: {}]
  %s10 = inlined_call_operand.vmem [shape: f32[1,128], index: 10, kind: input, shape index: {}]
  %s11 = inlined_call_operand.vmem [shape: f32[1,128], index: 11, kind: input, shape index: {}]
  %s12 = inlined_call_operand.vmem [shape: f32[32,128], index: 12, kind: output, shape index: {}]
  %s13 = sld [smem:[#allocation0]]
  $region81: #{encoder_forward.8} parent=0
    _
  %s15 = ssub.s32 1, %s13
  %s16 = scalar_select 0, %s15, %s13
  loop: start=0, step=1, limit=4
  $region2: #{encoder_forward.8} parent=0 // loop_pre_header
    _
  $region3: #{encoder_forward.8} parent=0 // loop_header
    %s18 = sphi 0, %s22
    %p19 = scmp.ge.s32.totalorder %s18, 4
    %s28 = sphi 0, %s30
    %s31 = sphi 0, %s28
    %s32 = sphi 0, %s31
    %s48 = sphi 0, %s32
    %s54 = sphi 0, %s56
    %s57 = sphi 0, %s54
    %s58 = sphi 0, %s57
    %s74 = sphi 0, %s58
    %s78 = sphi 0, %s78
    %s80 = sphi 0, %s78
    %s81 = sphi 0, %s80
    %s95 = sphi 0, %s81
    %s99 = sphi 0, %s99
    %s101 = sphi 0, %s99
    %s102 = sphi 0, %s101
    %s116 = sphi 0, %s102
    %s120 = sphi 0, %s120
    %s122 = sphi 0, %s120
    %s123 = sphi 0, %s122
    %s137 = sphi 0, %s123
    %s141 = sphi 0, %s141
    %s143 = sphi 0, %s141
    %s144 = sphi 0, %s143
    %s158 = sphi 0, %s144
    %s162 = sphi 0, %s162
    %s164 = sphi 0, %s162
    %s165 = sphi 0, %s164
    %s179 = sphi 0, %s165
    %s183 = sphi 0, %s183
    %s185 = sphi 0, %s183
    %s186 = sphi 0, %s185
    %s200 = sphi 0, %s186
    %s204 = sphi 0, %s204
    %s206 = sphi 0, %s204
    %s207 = sphi 0, %s206
    %s221 = sphi 0, %s207
    %s225 = sphi 0, %s225
    %s227 = sphi 0, %s225
    %s228 = sphi 0, %s227
    %s242 = sphi 0, %s228
    %s246 = sphi 0, %s246
    %s248 = sphi 0, %s246
    %s249 = sphi 0, %s248
    %s263 = sphi 0, %s249
    %s267 = sphi 0, %s267
    %s269 = sphi 0, %s267
    %s270 = sphi 0, %s269
    %s284 = sphi 0, %s270
    %s290 = sphi 0, %s292
    %s293 = sphi 0, %s290
    %s294 = sphi 0, %s293
    %s310 = sphi 0, %s294
  $region4: #{encoder_forward.8} parent=0 // loop_header_branch
    %21 = sbr.rel (%p19) target = $region8
  $region5: #{encoder_forward.8} parent=0 // loop_body
    %s23 = ssub.s32 %s18, 1
    %s24 = ssub.s32 %s18, 2
    %s25 = sadd.s32 %s18, 1
    %s26 = ssub.s32 %s18, %s25
    %p27 = scmp.eq.s32.totalorder %s26, 0
    %s29 = sadd.s32 %s28, 1
    %s30 = scalar_select %p27, %s28, %s29
    %p33 = pneg %p27
    %p34 = scmp.eq.s32.totalorder %s18, 1
    %p35 = por %p33, %p34
    %p36 = scmp.ne.s32.totalorder %s28, %s31
    %p37 = scmp.eq.s32.totalorder %s18, 0
    %p38 = por %p36, %p37
    %p39 = scmp.ne.s32.totalorder %s28, %s31
    %p40 = scmp.eq.s32.totalorder %s23, 1
    %p41 = por %p39, %p40
    %p42 = scmp.ne.s32.totalorder %s31, %s32
    %p43 = scmp.eq.s32.totalorder %s23, 0
    %p44 = por %p42, %p43
    %p45 = scmp.ne.s32.totalorder %s31, %s32
    %p46 = scmp.eq.s32.totalorder %s24, 1
    %p47 = por %p45, %p46
    %p49 = scmp.ne.s32.totalorder %s32, %s48
    %p50 = scmp.eq.s32.totalorder %s24, 0
    %p51 = por %p49, %p50
    %s52 = ssub.s32 %s18, %s25
    %p53 = scmp.eq.s32.totalorder %s52, 0
    %s55 = sadd.s32 %s54, 1
    %s56 = scalar_select %p53, %s54, %s55
    %p59 = pneg %p53
    %p60 = scmp.eq.s32.totalorder %s18, 1
    %p61 = por %p59, %p60
    %p62 = scmp.ne.s32.totalorder %s54, %s57
    %p63 = scmp.eq.s32.totalorder %s18, 0
    %p64 = por %p62, %p63
    %p65 = scmp.ne.s32.totalorder %s54, %s57
    %p66 = scmp.eq.s32.totalorder %s23, 1
    %p67 = por %p65, %p66
    %p68 = scmp.ne.s32.totalorder %s57, %s58
    %p69 = scmp.eq.s32.totalorder %s23, 0
    %p70 = por %p68, %p69
    %p71 = scmp.ne.s32.totalorder %s57, %s58
    %p72 = scmp.eq.s32.totalorder %s24, 1
    %p73 = por %p71, %p72
    %p75 = scmp.ne.s32.totalorder %s58, %s74
    %p76 = scmp.eq.s32.totalorder %s24, 0
    %p77 = por %p75, %p76
    %s79 = sadd.s32 %s78, 1
    %p82 = scmp.eq.s32.totalorder %s18, 1
    %p83 = scmp.ne.s32.totalorder %s78, %s80
    %p84 = scmp.eq.s32.totalorder %s18, 0
    %p85 = por %p83, %p84
    %p86 = scmp.ne.s32.totalorder %s78, %s80
    %p87 = scmp.eq.s32.totalorder %s23, 1
    %p88 = por %p86, %p87
    %p89 = scmp.ne.s32.totalorder %s80, %s81
    %p90 = scmp.eq.s32.totalorder %s23, 0
    %p91 = por %p89, %p90
    %p92 = scmp.ne.s32.totalorder %s80, %s81
    %p93 = scmp.eq.s32.totalorder %s24, 1
    %p94 = por %p92, %p93
    %p96 = scmp.ne.s32.totalorder %s81, %s95
    %p97 = scmp.eq.s32.totalorder %s24, 0
    %p98 = por %p96, %p97
    %s100 = sadd.s32 %s99, 1
    %p103 = scmp.eq.s32.totalorder %s18, 1
    %p104 = scmp.ne.s32.totalorder %s99, %s101
    %p105 = scmp.eq.s32.totalorder %s18, 0
    %p106 = por %p104, %p105
    %p107 = scmp.ne.s32.totalorder %s99, %s101
    %p108 = scmp.eq.s32.totalorder %s23, 1
    %p109 = por %p107, %p108
    %p110 = scmp.ne.s32.totalorder %s101, %s102
    %p111 = scmp.eq.s32.totalorder %s23, 0
    %p112 = por %p110, %p111
    %p113 = scmp.ne.s32.totalorder %s101, %s102
    %p114 = scmp.eq.s32.totalorder %s24, 1
    %p115 = por %p113, %p114
    %p117 = scmp.ne.s32.totalorder %s102, %s116
    %p118 = scmp.eq.s32.totalorder %s24, 0
    %p119 = por %p117, %p118
    %s121 = sadd.s32 %s120, 1
    %p124 = scmp.eq.s32.totalorder %s18, 1
    %p125 = scmp.ne.s32.totalorder %s120, %s122
    %p126 = scmp.eq.s32.totalorder %s18, 0
    %p127 = por %p125, %p126
    %p128 = scmp.ne.s32.totalorder %s120, %s122
    %p129 = scmp.eq.s32.totalorder %s23, 1
    %p130 = por %p128, %p129
    %p131 = scmp.ne.s32.totalorder %s122, %s123
    %p132 = scmp.eq.s32.totalorder %s23, 0
    %p133 = por %p131, %p132
    %p134 = scmp.ne.s32.totalorder %s122, %s123
    %p135 = scmp.eq.s32.totalorder %s24, 1
    %p136 = por %p134, %p135
    %p138 = scmp.ne.s32.totalorder %s123, %s137
    %p139 = scmp.eq.s32.totalorder %s24, 0
    %p140 = por %p138, %p139
    %s142 = sadd.s32 %s141, 1
    %p145 = scmp.eq.s32.totalorder %s18, 1
    %p146 = scmp.ne.s32.totalorder %s141, %s143
    %p147 = scmp.eq.s32.totalorder %s18, 0
    %p148 = por %p146, %p147
    %p149 = scmp.ne.s32.totalorder %s141, %s143
    %p150 = scmp.eq.s32.totalorder %s23, 1
    %p151 = por %p149, %p150
    %p152 = scmp.ne.s32.totalorder %s143, %s144
    %p153 = scmp.eq.s32.totalorder %s23, 0
    %p154 = por %p152, %p153
    %p155 = scmp.ne.s32.totalorder %s143, %s144
    %p156 = scmp.eq.s32.totalorder %s24, 1
    %p157 = por %p155, %p156
    %p159 = scmp.ne.s32.totalorder %s144, %s158
    %p160 = scmp.eq.s32.totalorder %s24, 0
    %p161 = por %p159, %p160
    %s163 = sadd.s32 %s162, 1
    %p166 = scmp.eq.s32.totalorder %s18, 1
    %p167 = scmp.ne.s32.totalorder %s162, %s164
    %p168 = scmp.eq.s32.totalorder %s18, 0
    %p169 = por %p167, %p168
    %p170 = scmp.ne.s32.totalorder %s162, %s164
    %p171 = scmp.eq.s32.totalorder %s23, 1
    %p172 = por %p170, %p171
    %p173 = scmp.ne.s32.totalorder %s164, %s165
    %p174 = scmp.eq.s32.totalorder %s23, 0
    %p175 = por %p173, %p174
    %p176 = scmp.ne.s32.totalorder %s164, %s165
    %p177 = scmp.eq.s32.totalorder %s24, 1
    %p178 = por %p176, %p177
    %p180 = scmp.ne.s32.totalorder %s165, %s179
    %p181 = scmp.eq.s32.totalorder %s24, 0
    %p182 = por %p180, %p181
    %s184 = sadd.s32 %s183, 1
    %p187 = scmp.eq.s32.totalorder %s18, 1
    %p188 = scmp.ne.s32.totalorder %s183, %s185
    %p189 = scmp.eq.s32.totalorder %s18, 0
    %p190 = por %p188, %p189
    %p191 = scmp.ne.s32.totalorder %s183, %s185
    %p192 = scmp.eq.s32.totalorder %s23, 1
    %p193 = por %p191, %p192
    %p194 = scmp.ne.s32.totalorder %s185, %s186
    %p195 = scmp.eq.s32.totalorder %s23, 0
    %p196 = por %p194, %p195
    %p197 = scmp.ne.s32.totalorder %s185, %s186
    %p198 = scmp.eq.s32.totalorder %s24, 1
    %p199 = por %p197, %p198
    %p201 = scmp.ne.s32.totalorder %s186, %s200
    %p202 = scmp.eq.s32.totalorder %s24, 0
    %p203 = por %p201, %p202
    %s205 = sadd.s32 %s204, 1
    %p208 = scmp.eq.s32.totalorder %s18, 1
    %p209 = scmp.ne.s32.totalorder %s204, %s206
    %p210 = scmp.eq.s32.totalorder %s18, 0
    %p211 = por %p209, %p210
    %p212 = scmp.ne.s32.totalorder %s204, %s206
    %p213 = scmp.eq.s32.totalorder %s23, 1
    %p214 = por %p212, %p213
    %p215 = scmp.ne.s32.totalorder %s206, %s207
    %p216 = scmp.eq.s32.totalorder %s23, 0
    %p217 = por %p215, %p216
    %p218 = scmp.ne.s32.totalorder %s206, %s207
    %p219 = scmp.eq.s32.totalorder %s24, 1
    %p220 = por %p218, %p219
    %p222 = scmp.ne.s32.totalorder %s207, %s221
    %p223 = scmp.eq.s32.totalorder %s24, 0
    %p224 = por %p222, %p223
    %s226 = sadd.s32 %s225, 1
    %p229 = scmp.eq.s32.totalorder %s18, 1
    %p230 = scmp.ne.s32.totalorder %s225, %s227
    %p231 = scmp.eq.s32.totalorder %s18, 0
    %p232 = por %p230, %p231
    %p233 = scmp.ne.s32.totalorder %s225, %s227
    %p234 = scmp.eq.s32.totalorder %s23, 1
    %p235 = por %p233, %p234
    %p236 = scmp.ne.s32.totalorder %s227, %s228
    %p237 = scmp.eq.s32.totalorder %s23, 0
    %p238 = por %p236, %p237
    %p239 = scmp.ne.s32.totalorder %s227, %s228
    %p240 = scmp.eq.s32.totalorder %s24, 1
    %p241 = por %p239, %p240
    %p243 = scmp.ne.s32.totalorder %s228, %s242
    %p244 = scmp.eq.s32.totalorder %s24, 0
    %p245 = por %p243, %p244
    %s247 = sadd.s32 %s246, 1
    %p250 = scmp.eq.s32.totalorder %s18, 1
    %p251 = scmp.ne.s32.totalorder %s246, %s248
    %p252 = scmp.eq.s32.totalorder %s18, 0
    %p253 = por %p251, %p252
    %p254 = scmp.ne.s32.totalorder %s246, %s248
    %p255 = scmp.eq.s32.totalorder %s23, 1
    %p256 = por %p254, %p255
    %p257 = scmp.ne.s32.totalorder %s248, %s249
    %p258 = scmp.eq.s32.totalorder %s23, 0
    %p259 = por %p257, %p258
    %p260 = scmp.ne.s32.totalorder %s248, %s249
    %p261 = scmp.eq.s32.totalorder %s24, 1
    %p262 = por %p260, %p261
    %p264 = scmp.ne.s32.totalorder %s249, %s263
    %p265 = scmp.eq.s32.totalorder %s24, 0
    %p266 = por %p264, %p265
    %s268 = sadd.s32 %s267, 1
    %p271 = scmp.eq.s32.totalorder %s18, 1
    %p272 = scmp.ne.s32.totalorder %s267, %s269
    %p273 = scmp.eq.s32.totalorder %s18, 0
    %p274 = por %p272, %p273
    %p275 = scmp.ne.s32.totalorder %s267, %s269
    %p276 = scmp.eq.s32.totalorder %s23, 1
    %p277 = por %p275, %p276
    %p278 = scmp.ne.s32.totalorder %s269, %s270
    %p279 = scmp.eq.s32.totalorder %s23, 0
    %p280 = por %p278, %p279
    %p281 = scmp.ne.s32.totalorder %s269, %s270
    %p282 = scmp.eq.s32.totalorder %s24, 1
    %p283 = por %p281, %p282
    %p285 = scmp.ne.s32.totalorder %s270, %s284
    %p286 = scmp.eq.s32.totalorder %s24, 0
    %p287 = por %p285, %p286
    %s288 = ssub.s32 %s18, %s25
    %p289 = scmp.eq.s32.totalorder %s288, 0
    %s291 = sadd.s32 %s290, 1
    %s292 = scalar_select %p289, %s290, %s291
    %p295 = pneg %p289
    %p296 = scmp.eq.s32.totalorder %s18, 1
    %p297 = por %p295, %p296
    %p298 = scmp.ne.s32.totalorder %s290, %s293
    %p299 = scmp.eq.s32.totalorder %s18, 0
    %p300 = por %p298, %p299
    %p301 = scmp.ne.s32.totalorder %s290, %s293
    %p302 = scmp.eq.s32.totalorder %s23, 1
    %p303 = por %p301, %p302
    %p304 = scmp.ne.s32.totalorder %s293, %s294
    %p305 = scmp.eq.s32.totalorder %s23, 0
    %p306 = por %p304, %p305
    %p307 = scmp.ne.s32.totalorder %s293, %s294
    %p308 = scmp.eq.s32.totalorder %s24, 1
    %p309 = por %p307, %p308
    %p311 = scmp.ne.s32.totalorder %s294, %s310
    %p312 = scmp.eq.s32.totalorder %s24, 0
    %p313 = por %p311, %p312
    %p314 = scmp.le.s32.totalorder 1, %s18
    %p315 = scmp.lt.s32.totalorder %s18, 3
    %p316 = pnand %p314, %p315
    %p317 = pneg %p316
    // Predicated region
    $region9: #{encoder_forward.8} parent=5 // pred_check
      _
    $region10: #{encoder_forward.8} parent=5 // pred_check_branch
      %319 = sbr.rel (%p316) target = $region12
    $region11: #{encoder_forward.8} parent=5 // pred_region
      %s320 = ssub.s32 %s18, 1
      // Predicated region
      $region13: #{encoder_forward.8} parent=11 // pred_check
        %p321 = pneg %p91
      $region14: #{encoder_forward.8} parent=11 // pred_check_branch
        %323 = sbr.rel (%p321) target = $region16
      $region15: #{encoder_forward.8} parent=11 // pred_region
        _
      $region16: #{encoder_forward.8} parent=11 // pred_fallthru
        _
      // Predicated region
      $region17: #{encoder_forward.8} parent=11 // pred_check
        %p324 = pneg %p112
      $region18: #{encoder_forward.8} parent=11 // pred_check_branch
        %326 = sbr.rel (%p324) target = $region20
      $region19: #{encoder_forward.8} parent=11 // pred_region
        _
      $region20: #{encoder_forward.8} parent=11 // pred_fallthru
        _
      // Predicated region
      $region21: #{encoder_forward.8} parent=11 // pred_check
        %p327 = pneg %p133
      $region22: #{encoder_forward.8} parent=11 // pred_check_branch
        %329 = sbr.rel (%p327) target = $region24
      $region23: #{encoder_forward.8} parent=11 // pred_region
        _
      $region24: #{encoder_forward.8} parent=11 // pred_fallthru
        _
      // Predicated region
      $region25: #{encoder_forward.8} parent=11 // pred_check
        %p330 = pneg %p154
      $region26: #{encoder_forward.8} parent=11 // pred_check_branch
        %332 = sbr.rel (%p330) target = $region28
      $region27: #{encoder_forward.8} parent=11 // pred_region
        _
      $region28: #{encoder_forward.8} parent=11 // pred_fallthru
        _
      // Predicated region
      $region29: #{encoder_forward.8} parent=11 // pred_check
        %p333 = pneg %p175
      $region30: #{encoder_forward.8} parent=11 // pred_check_branch
        %335 = sbr.rel (%p333) target = $region32
      $region31: #{encoder_forward.8} parent=11 // pred_region
        _
      $region32: #{encoder_forward.8} parent=11 // pred_fallthru
        _
      // Predicated region
      $region33: #{encoder_forward.8} parent=11 // pred_check
        %p336 = pneg %p196
      $region34: #{encoder_forward.8} parent=11 // pred_check_branch
        %338 = sbr.rel (%p336) target = $region36
      $region35: #{encoder_forward.8} parent=11 // pred_region
        _
      $region36: #{encoder_forward.8} parent=11 // pred_fallthru
        _
      // Predicated region
      $region37: #{encoder_forward.8} parent=11 // pred_check
        %p339 = pneg %p217
      $region38: #{encoder_forward.8} parent=11 // pred_check_branch
        %341 = sbr.rel (%p339) target = $region40
      $region39: #{encoder_forward.8} parent=11 // pred_region
        _
      $region40: #{encoder_forward.8} parent=11 // pred_fallthru
        _
      // Predicated region
      $region41: #{encoder_forward.8} parent=11 // pred_check
        %p342 = pneg %p238
      $region42: #{encoder_forward.8} parent=11 // pred_check_branch
        %344 = sbr.rel (%p342) target = $region44
      $region43: #{encoder_forward.8} parent=11 // pred_region
        _
      $region44: #{encoder_forward.8} parent=11 // pred_fallthru
        _
      // Predicated region
      $region45: #{encoder_forward.8} parent=11 // pred_check
        %p345 = pneg %p259
      $region46: #{encoder_forward.8} parent=11 // pred_check_branch
        %347 = sbr.rel (%p345) target = $region48
      $region47: #{encoder_forward.8} parent=11 // pred_region
        _
      $region48: #{encoder_forward.8} parent=11 // pred_fallthru
        _
      // Predicated region
      $region49: #{encoder_forward.8} parent=11 // pred_check
        %p348 = pneg %p280
      $region50: #{encoder_forward.8} parent=11 // pred_check_branch
        %350 = sbr.rel (%p348) target = $region52
      $region51: #{encoder_forward.8} parent=11 // pred_region
        _
      $region52: #{encoder_forward.8} parent=11 // pred_fallthru
        _
    $region12: #{encoder_forward.8} parent=5 // pred_fallthru
      _
    %p351 = scmp.lt.s32.totalorder %s18, 2
    // Predicated region
    $region53: #{encoder_forward.8} parent=5 // pred_check
      %p352 = pneg %p351
    $region54: #{encoder_forward.8} parent=5 // pred_check_branch
      %354 = sbr.rel (%p352) target = $region56
    $region55: #{encoder_forward.8} parent=5 // pred_region
      // Predicated region
      $region57: #{encoder_forward.8} parent=55 // pred_check
        %p355 = pneg %p38
      $region58: #{encoder_forward.8} parent=55 // pred_check_branch
        %357 = sbr.rel (%p355) target = $region60
      $region59: #{encoder_forward.8} parent=55 // pred_region
        %s358 = smul.u32 2, %s18
        %p359 = scmp.lt.s32.totalorder %s358, 3
        %s360 = scalar_select %p359, %s358, 3
        %s361 = smul.addr %s360, 4
        %s362 = scalar_lea.vmem %s0, %s361
        %s363 = smul.u32 2, %s18
      $region60: #{encoder_forward.8} parent=55 // pred_fallthru
        _
      // Predicated region
      $region61: #{encoder_forward.8} parent=55 // pred_check
        %p364 = pneg %p64
      $region62: #{encoder_forward.8} parent=55 // pred_check_branch
        %366 = sbr.rel (%p364) target = $region64
      $region63: #{encoder_forward.8} parent=55 // pred_region
        %s367 = smul.u32 2, %s18
        %p368 = scmp.lt.s32.totalorder %s367, 3
        %s369 = scalar_select %p368, %s367, 3
        %s370 = smul.addr %s369, 8
        %s371 = scalar_lea.vmem %s1, %s370
        %s372 = smul.u32 2, %s18
      $region64: #{encoder_forward.8} parent=55 // pred_fallthru
        _
    $region56: #{encoder_forward.8} parent=5 // pred_fallthru
      _
    %p373 = scmp.le.s32.totalorder 1, %s18
    %p374 = scmp.lt.s32.totalorder %s18, 3
    %p375 = pnand %p373, %p374
    %p376 = pneg %p375
    // Predicated region
    $region65: #{encoder_forward.8} parent=5 // pred_check
      _
    $region66: #{encoder_forward.8} parent=5 // pred_check_branch
      %378 = sbr.rel (%p375) target = $region68
    $region67: #{encoder_forward.8} parent=5 // pred_region
      %s379 = ssub.s32 %s18, 1
      %s380 = smul.u32 2, %s23
      %p381 = scmp.lt.s32.totalorder %s380, 3
      %s382 = scalar_select %p381, %s380, 3
      %s383 = smul.addr %s382, 4
      %s384 = scalar_lea.vmem %s0, %s383
      %p385 = pneg %p44
      %p386 = pneg %p41
      %s387 = smul.u32 2, %s23
      %p388 = scmp.lt.s32.totalorder %s387, 3
      %s389 = scalar_select %p388, %s387, 3
      %s390 = smul.addr %s389, 8
      %s391 = scalar_lea.vmem %s1, %s390
      %p392 = pneg %p70
      %p393 = pneg %p67
      %p394 = pneg %p91
      %p395 = pneg %p88
      %p396 = pneg %p112
      %p397 = pneg %p109
      %p398 = pneg %p133
      %p399 = pneg %p130
      %p400 = pneg %p154
      %p401 = pneg %p151
      %p402 = pneg %p175
      %p403 = pneg %p172
      %p404 = pneg %p196
      %p405 = pneg %p193
      %p406 = pneg %p217
      %p407 = pneg %p214
      %p408 = pneg %p238
      %p409 = pneg %p235
      %p410 = pneg %p259
      %p411 = pneg %p256
      %p412 = pneg %p280
      %p413 = pneg %p277
      %p414 = pneg %p306
      %p415 = pneg %p303
      %s416 = smul.u32 2, %s23
      %p417 = scmp.lt.s32.totalorder %s416, 3
      %s418 = scalar_select %p417, %s416, 3
      %s419 = smul.addr %s418, 8
      %s420 = scalar_lea.vmem %s12, %s419
      %s421 = smul.u32 2, %s23
      %p422 = scmp.lt.s32.totalorder %s421, 3
      %s423 = scalar_select %p422, %s421, 3
      %s424 = smul.addr %s423, 4
      %s425 = scalar_lea.vmem %s0, %s424
      %s426 = smul.u32 2, %s23
      %s427 = smul.u32 2, %s23
      %p428 = scmp.lt.s32.totalorder %s427, 3
      %s429 = scalar_select %p428, %s427, 3
      %s430 = smul.addr %s429, 8
      %s431 = scalar_lea.vmem %s1, %s430
      %s432 = smul.u32 2, %s23
      %s433 = smul.u32 2, %s23
      %p434 = scmp.lt.s32.totalorder %s433, 3
      %s435 = scalar_select %p434, %s433, 3
      %s436 = smul.addr %s435, 8
      %s437 = scalar_lea.vmem %s12, %s436
      %s438 = smul.u32 2, %s23
      %v440 = vld [vmem:[%s425] sm:$0xf]
      %v441 = vld [vmem:[%s425 + $0x4] sm:$0xf]
      %v442 = vld [vmem:[%s2] sm:$0xf]
      %v443 = vld [vmem:[%s2 + $0x4] sm:$0xf]
      %v444 = vld [vmem:[%s2 + $0x8] sm:$0xf]
      %v445 = vld [vmem:[%s2 + $0xc] sm:$0xf]
      %v446 = vld [vmem:[%s2 + $0x10] sm:$0xf]
      %v447 = vld [vmem:[%s2 + $0x14] sm:$0xf]
      %v448 = vld [vmem:[%s2 + $0x18] sm:$0xf]
      %v449 = vld [vmem:[%s2 + $0x1c] sm:$0xf]
      %v450 = vld [vmem:[%s2 + $0x20] sm:$0xf]
      %v451 = vld [vmem:[%s2 + $0x24] sm:$0xf]
      %v452 = vld [vmem:[%s2 + $0x28] sm:$0xf]
      %v453 = vld [vmem:[%s2 + $0x2c] sm:$0xf]
      %v454 = vld [vmem:[%s2 + $0x30] sm:$0xf]
      %v455 = vld [vmem:[%s2 + $0x34] sm:$0xf]
      %v456 = vld [vmem:[%s2 + $0x38] sm:$0xf]
      %v457 = vld [vmem:[%s2 + $0x3c] sm:$0xf]
      %v458 = vld [vmem:[%s3] sm:$0x1]
      %v460 = vlaneseq
      %v461 = vshrl.u32 %v460, 7
      %v462 = vsub.s32 0, %v461
      %v463 = vrot.slane %v458, %v462
      %v467 = vunpack.c.l.b16 %v440
      %v468 = vunpack.c.l.b16 %v441
      %v469 = vpack.c.b16 %v468, %v467
      %v487 = vunpack.c.l.b16 %v442
      %v488 = vunpack.c.l.b16 %v443
      %v489 = vunpack.c.l.b16 %v444
      %v490 = vunpack.c.l.b16 %v445
      %v491 = vunpack.c.l.b16 %v446
      %v492 = vunpack.c.l.b16 %v447
      %v493 = vunpack.c.l.b16 %v448
      %v494 = vunpack.c.l.b16 %v449
      %v495 = vunpack.c.l.b16 %v450
      %v496 = vunpack.c.l.b16 %v451
      %v497 = vunpack.c.l.b16 %v452
      %v498 = vunpack.c.l.b16 %v453
      %v499 = vunpack.c.l.b16 %v454
      %v500 = vunpack.c.l.b16 %v455
      %v501 = vunpack.c.l.b16 %v456
      %v502 = vunpack.c.l.b16 %v457
      %v503 = vpack.c.b16 %v488, %v487
      %v504 = vpack.c.b16 %v490, %v489
      %v505 = vpack.c.b16 %v492, %v491
      %v506 = vpack.c.b16 %v494, %v493
      %v507 = vpack.c.b16 %v496, %v495
      %v508 = vpack.c.b16 %v498, %v497
      %v509 = vpack.c.b16 %v500, %v499
      %v510 = vpack.c.b16 %v502, %v501
      %519 = vmatprep.subr.bf16.mxu0 0
      %520 = vmatpush1.bf16.msra.mxu0 %v503
      %521 = vmatprep.subr.bf16.mxu0 0
      %522 = vmatpush1.bf16.msra.mxu0 %v504
      %523 = vmatprep.subr.bf16.mxu0 0
      %524 = vmatpush1.bf16.msra.mxu0 %v505
      %525 = vmatprep.subr.bf16.mxu0 0
      %526 = vmatpush1.bf16.msra.mxu0 %v506
      %527 = vmatprep.subr.bf16.mxu0 0
      %528 = vmatpush1.bf16.msra.mxu0 %v507
      %529 = vmatprep.subr.bf16.mxu0 0
      %530 = vmatpush1.bf16.msra.mxu0 %v508
      %531 = vmatprep.subr.bf16.mxu0 0
      %532 = vmatpush1.bf16.msra.mxu0 %v509
      %533 = vmatprep.subr.bf16.mxu0 0
      %534 = vmatpush1.bf16.msra.mxu0 %v510
      %535 = vmatprep.subr.bf16.mxu0 0
      %536 = vmatpush1.bf16.msra.mxu0 0
      %537 = vmatprep.subr.bf16.mxu0 0
      %538 = vmatpush1.bf16.msra.mxu0 0
      %539 = vmatprep.subr.bf16.mxu0 0
      %540 = vmatpush1.bf16.msra.mxu0 0
      %541 = vmatprep.subr.bf16.mxu0 0
      %542 = vmatpush1.bf16.msra.mxu0 0
      %543 = vmatprep.subr.bf16.mxu0 0
      %544 = vmatpush1.bf16.msra.mxu0 0
      %545 = vmatprep.subr.bf16.mxu0 0
      %546 = vmatpush1.bf16.msra.mxu0 0
      %547 = vmatprep.subr.bf16.mxu0 0
      %548 = vmatpush1.bf16.msra.mxu0 0
      %549 = vmatprep.subr.bf16.mxu0 0
      %550 = vmatpush1.bf16.msra.mxu0 0
      %551 = vmatprep.mubr.bf16.mxu0 0
      %552 = vmatmul.mubr.bf16.gmra.mrb[0].mxu0 %v469
      %v553 = vpop.f32.mrb[0].mxu0
      %v554 = vadd.f32 %v463, %v553
      %v555 = vpop.f32.mrb[0].mxu0
      %v556 = vpop.f32.mrb[0].mxu0
      %v557 = vadd.f32 %v463, %v556
      %v558 = vpop.f32.mrb[0].mxu0
      %559 = vdwg.mxu0
      %v560 = vld [vmem:[%s431] sm:$0xff]
      %v561 = vld [vmem:[%s431 + $0x8] sm:$0xff]
      %v562 = vadd.f32 %v560, %v554
      %v563 = vadd.f32 %v561, %v557
      %v564 = vld [vmem:[%s4] sm:$0x1]
      %v565 = vld [vmem:[%s5] sm:$0x1]
      %566 = vadd.xlane.f32.xlu0 %v562
      %v567 = vpop.xlane.xlu0 %566
      %568 = vadd.xlane.f32.xlu0 %v563
      %v569 = vpop.xlane.xlu0 %568
      %v570 = vrcp.pop 128.0
      %v571 = vmul.f32 %v567, %v570
      %v572 = vmul.f32 %v569, %v570
      %v573 = vsub.f32 %v562, %v571
      %v574 = vsub.f32 %v563, %v572
      %v575 = vmul.f32 %v573, %v573
      %v576 = vmul.f32 %v574, %v574
      %577 = vadd.xlane.f32.xlu0 %v575
      %v578 = vpop.xlane.xlu0 %577
      %579 = vadd.xlane.f32.xlu0 %v576
      %v580 = vpop.xlane.xlu0 %579
      %v581 = vmul.f32 %v578, %v570
      %v582 = vmul.f32 %v580, %v570
      %v583 = vadd.f32 %v581, 1e-05
      %v584 = vadd.f32 %v582, 1e-05
      %v585 = vrsqrt.pop %v583
      %v586 = vrsqrt.pop %v584
      %v587 = vmul.f32 %v573, %v585
      %v588 = vmul.f32 %v574, %v586
      %v590 = vlaneseq
      %v591 = vshrl.u32 %v590, 7
      %v592 = vsub.s32 0, %v591
      %v593 = vrot.slane %v564, %v592
      %v595 = vmul.f32 %v587, %v593
      %v596 = vmul.f32 %v588, %v593
      %v598 = vlaneseq
      %v599 = vshrl.u32 %v598, 7
      %v600 = vsub.s32 0, %v599
      %v601 = vrot.slane %v565, %v600
      %v603 = vadd.f32 %v595, %v601
      %v604 = vadd.f32 %v596, %v601
      %v605 = vpack.c.bf16 %v604, %v603
      %606 = vst [vmem:[#allocation2] sm:$0xff] 0.0
      %607 = vst [vmem:[#allocation2 + $0x8] sm:$0xff] 0.0
      %v608 = vld [vmem:[%s6] sm:$0xff]
      %v609 = vld [vmem:[%s6 + $0x8] sm:$0xff]
      %v610 = vld [vmem:[%s6 + $0x10] sm:$0xff]
      %v611 = vld [vmem:[%s6 + $0x18] sm:$0xff]
      %v612 = vld [vmem:[%s6 + $0x20] sm:$0xff]
      %v613 = vld [vmem:[%s6 + $0x28] sm:$0xff]
      %v614 = vld [vmem:[%s6 + $0x30] sm:$0xff]
      %v615 = vld [vmem:[%s6 + $0x38] sm:$0xff]
      %v616 = vld [vmem:[%s6 + $0x40] sm:$0xff]
      %v617 = vld [vmem:[%s6 + $0x48] sm:$0xff]
      %v618 = vld [vmem:[%s6 + $0x50] sm:$0xff]
      %v619 = vld [vmem:[%s6 + $0x58] sm:$0xff]
      %v620 = vld [vmem:[%s6 + $0x60] sm:$0xff]
      %v621 = vld [vmem:[%s6 + $0x68] sm:$0xff]
      %v622 = vld [vmem:[%s6 + $0x70] sm:$0xff]
      %v623 = vld [vmem:[%s6 + $0x78] sm:$0xff]
      %v624 = vld [vmem:[%s7] sm:$0x3]
      %v626 = vlaneseq
      %v627 = vshrl.u32 %v626, 7
      %v628 = vsub.s32 0, %v627
      %v629 = vrot.slane %v624, %v628
      %v630 = vlaneseq
      %v631 = vshrl.u32 %v630, 7
      %v632 = vsub.s32 1, %v631
      %v633 = vrot.slane %v624, %v632
      %v652 = vunpack.c.l.b16 %v608
      %v653 = vunpack.c.h.b16 %v608
      %v654 = vunpack.c.l.b16 %v609
      %v655 = vunpack.c.h.b16 %v609
      %v656 = vunpack.c.l.b16 %v610
      %v657 = vunpack.c.h.b16 %v610
      %v658 = vunpack.c.l.b16 %v611
      %v659 = vunpack.c.h.b16 %v611
      %v660 = vunpack.c.l.b16 %v612
      %v661 = vunpack.c.h.b16 %v612
      %v662 = vunpack.c.l.b16 %v613
      %v663 = vunpack.c.h.b16 %v613
      %v664 = vunpack.c.l.b16 %v614
      %v665 = vunpack.c.h.b16 %v614
      %v666 = vunpack.c.l.b16 %v615
      %v667 = vunpack.c.h.b16 %v615
      %v668 = vunpack.c.l.b16 %v616
      %v669 = vunpack.c.h.b16 %v616
      %v670 = vunpack.c.l.b16 %v617
      %v671 = vunpack.c.h.b16 %v617
      %v672 = vunpack.c.l.b16 %v618
      %v673 = vunpack.c.h.b16 %v618
      %v674 = vunpack.c.l.b16 %v619
      %v675 = vunpack.c.h.b16 %v619
      %v676 = vunpack.c.l.b16 %v620
      %v677 = vunpack.c.h.b16 %v620
      %v678 = vunpack.c.l.b16 %v621
      %v679 = vunpack.c.h.b16 %v621
      %v680 = vunpack.c.l.b16 %v622
      %v681 = vunpack.c.h.b16 %v622
      %v682 = vunpack.c.l.b16 %v623
      %v683 = vunpack.c.h.b16 %v623
      %v684 = vpack.c.b16 %v654, %v652
      %v685 = vpack.c.b16 %v655, %v653
      %v686 = vpack.c.b16 %v658, %v656
      %v687 = vpack.c.b16 %v659, %v657
      %v688 = vpack.c.b16 %v662, %v660
      %v689 = vpack.c.b16 %v663, %v661
      %v690 = vpack.c.b16 %v666, %v664
      %v691 = vpack.c.b16 %v667, %v665
      %v692 = vpack.c.b16 %v670, %v668
      %v693 = vpack.c.b16 %v671, %v669
      %v694 = vpack.c.b16 %v674, %v672
      %v695 = vpack.c.b16 %v675, %v673
      %v696 = vpack.c.b16 %v678, %v676
      %v697 = vpack.c.b16 %v679, %v677
      %v698 = vpack.c.b16 %v682, %v680
      %v699 = vpack.c.b16 %v683, %v681
      %716 = vmatprep.subr.bf16.mxu0 %v685
      %717 = vmatpush1.bf16.msra.mxu0 %v684
      %718 = vmatprep.subr.bf16.mxu0 %v687
      %719 = vmatpush1.bf16.msra.mxu0 %v686
      %720 = vmatprep.subr.bf16.mxu0 %v689
      %721 = vmatpush1.bf16.msra.mxu0 %v688
      %722 = vmatprep.subr.bf16.mxu0 %v691
      %723 = vmatpush1.bf16.msra.mxu0 %v690
      %724 = vmatprep.subr.bf16.mxu0 %v693
      %725 = vmatpush1.bf16.msra.mxu0 %v692
      %726 = vmatprep.subr.bf16.mxu0 %v695
      %727 = vmatpush1.bf16.msra.mxu0 %v694
      %728 = vmatprep.subr.bf16.mxu0 %v697
      %729 = vmatpush1.bf16.msra.mxu0 %v696
      %730 = vmatprep.subr.bf16.mxu0 %v699
      %731 = vmatpush1.bf16.msra.mxu0 %v698
      %732 = vmatprep.subr.bf16.mxu0 0
      %733 = vmatpush1.bf16.msra.mxu0 0
      %734 = vmatprep.subr.bf16.mxu0 0
      %735 = vmatpush1.bf16.msra.mxu0 0
      %736 = vmatprep.subr.bf16.mxu0 0
      %737 = vmatpush1.bf16.msra.mxu0 0
      %738 = vmatprep.subr.bf16.mxu0 0
      %739 = vmatpush1.bf16.msra.mxu0 0
      %740 = vmatprep.subr.bf16.mxu0 0
      %741 = vmatpush1.bf16.msra.mxu0 0
      %742 = vmatprep.subr.bf16.mxu0 0
      %743 = vmatpush1.bf16.msra.mxu0 0
      %744 = vmatprep.subr.bf16.mxu0 0
      %745 = vmatpush1.bf16.msra.mxu0 0
      %746 = vmatprep.subr.bf16.mxu0 0
      %747 = vmatpush1.bf16.msra.mxu0 0
      %748 = vmatprep.mubr.bf16.mxu0 0
      %749 = vmatmul.mubr.bf16.gmra.mrb[0].mxu0 %v605
      %v750 = vpop.f32.mrb[0].mxu0
      %v751 = vadd.f32 %v629, %v750
      %v752 = vpop.f32.mrb[0].mxu0
      %v753 = vadd.f32 %v633, %v752
      %v754 = vpop.f32.mrb[0].mxu0
      %v755 = vadd.f32 %v629, %v754
      %v756 = vpop.f32.mrb[0].mxu0
      %v757 = vadd.f32 %v633, %v756
      %758 = vdwg.mxu0
      %v759 = vmax.f32 %v751, 0.0
      %v760 = vmax.f32 %v753, 0.0
      %v761 = vmax.f32 %v755, 0.0
      %v762 = vmax.f32 %v757, 0.0
      %v763 = vld [vmem:[#allocation2] sm:$0xff]
      %v764 = vld [vmem:[#allocation2 + $0x8] sm:$0xff]
      %v765 = vpack.c.bf16 %v761, %v759
      %v766 = vpack.c.bf16 %v762, %v760
      %v767 = vld [vmem:[%s8] sm:$0xf]
      %v768 = vld [vmem:[%s8 + $0x4] sm:$0xf]
      %v769 = vld [vmem:[%s8 + $0x8] sm:$0xf]
      %v770 = vld [vmem:[%s8 + $0xc] sm:$0xf]
      %v771 = vld [vmem:[%s8 + $0x10] sm:$0xf]
      %v772 = vld [vmem:[%s8 + $0x14] sm:$0xf]
      %v773 = vld [vmem:[%s8 + $0x18] sm:$0xf]
      %v774 = vld [vmem:[%s8 + $0x1c] sm:$0xf]
      %v775 = vld [vmem:[%s8 + $0x20] sm:$0xf]
      %v776 = vld [vmem:[%s8 + $0x24] sm:$0xf]
      %v777 = vld [vmem:[%s8 + $0x28] sm:$0xf]
      %v778 = vld [vmem:[%s8 + $0x2c] sm:$0xf]
      %v779 = vld [vmem:[%s8 + $0x30] sm:$0xf]
      %v780 = vld [vmem:[%s8 + $0x34] sm:$0xf]
      %v781 = vld [vmem:[%s8 + $0x38] sm:$0xf]
      %v782 = vld [vmem:[%s8 + $0x3c] sm:$0xf]
      %v783 = vld [vmem:[%s8 + $0x40] sm:$0xf]
      %v784 = vld [vmem:[%s8 + $0x44] sm:$0xf]
      %v785 = vld [vmem:[%s8 + $0x48] sm:$0xf]
      %v786 = vld [vmem:[%s8 + $0x4c] sm:$0xf]
      %v787 = vld [vmem:[%s8 + $0x50] sm:$0xf]
      %v788 = vld [vmem:[%s8 + $0x54] sm:$0xf]
      %v789 = vld [vmem:[%s8 + $0x58] sm:$0xf]
      %v790 = vld [vmem:[%s8 + $0x5c] sm:$0xf]
      %v791 = vld [vmem:[%s8 + $0x60] sm:$0xf]
      %v792 = vld [vmem:[%s8 + $0x64] sm:$0xf]
      %v793 = vld [vmem:[%s8 + $0x68] sm:$0xf]
      %v794 = vld [vmem:[%s8 + $0x6c] sm:$0xf]
      %v795 = vld [vmem:[%s8 + $0x70] sm:$0xf]
      %v796 = vld [vmem:[%s8 + $0x74] sm:$0xf]
      %v797 = vld [vmem:[%s8 + $0x78] sm:$0xf]
      %v798 = vld [vmem:[%s8 + $0x7c] sm:$0xf]
      %v831 = vunpack.c.l.b16 %v767
      %v832 = vunpack.c.l.b16 %v768
      %v833 = vunpack.c.l.b16 %v769
      %v834 = vunpack.c.l.b16 %v770
      %v835 = vunpack.c.l.b16 %v771
      %v836 = vunpack.c.l.b16 %v772
      %v837 = vunpack.c.l.b16 %v773
      %v838 = vunpack.c.l.b16 %v774
      %v839 = vunpack.c.l.b16 %v775
      %v840 = vunpack.c.l.b16 %v776
      %v841 = vunpack.c.l.b16 %v777
      %v842 = vunpack.c.l.b16 %v778
      %v843 = vunpack.c.l.b16 %v779
      %v844 = vunpack.c.l.b16 %v780
      %v845 = vunpack.c.l.b16 %v781
      %v846 = vunpack.c.l.b16 %v782
      %v847 = vunpack.c.l.b16 %v783
      %v848 = vunpack.c.l.b16 %v784
      %v849 = vunpack.c.l.b16 %v785
      %v850 = vunpack.c.l.b16 %v786
      %v851 = vunpack.c.l.b16 %v787
      %v852 = vunpack.c.l.b16 %v788
      %v853 = vunpack.c.l.b16 %v789
      %v854 = vunpack.c.l.b16 %v790
      %v855 = vunpack.c.l.b16 %v791
      %v856 = vunpack.c.l.b16 %v792
      %v857 = vunpack.c.l.b16 %v793
      %v858 = vunpack.c.l.b16 %v794
      %v859 = vunpack.c.l.b16 %v795
      %v860 = vunpack.c.l.b16 %v796
      %v861 = vunpack.c.l.b16 %v797
      %v862 = vunpack.c.l.b16 %v798
      %v863 = vpack.c.b16 %v832, %v831
      %v864 = vpack.c.b16 %v834, %v833
      %v865 = vpack.c.b16 %v836, %v835
      %v866 = vpack.c.b16 %v838, %v837
      %v867 = vpack.c.b16 %v840, %v839
      %v868 = vpack.c.b16 %v842, %v841
      %v869 = vpack.c.b16 %v844, %v843
      %v870 = vpack.c.b16 %v846, %v845
      %v871 = vpack.c.b16 %v848, %v847
      %v872 = vpack.c.b16 %v850, %v849
      %v873 = vpack.c.b16 %v852, %v851
      %v874 = vpack.c.b16 %v854, %v853
      %v875 = vpack.c.b16 %v856, %v855
      %v876 = vpack.c.b16 %v858, %v857
      %v877 = vpack.c.b16 %v860, %v859
      %v878 = vpack.c.b16 %v862, %v861
      %895 = vmatprep.subr.bf16.mxu0 0
      %896 = vmatpush1.bf16.msra.mxu0 %v863
      %897 = vmatprep.subr.bf16.mxu0 0
      %898 = vmatpush1.bf16.msra.mxu0 %v864
      %899 = vmatprep.subr.bf16.mxu0 0
      %900 = vmatpush1.bf16.msra.mxu0 %v865
      %901 = vmatprep.subr.bf16.mxu0 0
      %902 = vmatpush1.bf16.msra.mxu0 %v866
      %903 = vmatprep.subr.bf16.mxu0 0
      %904 = vmatpush1.bf16.msra.mxu0 %v867
      %905 = vmatprep.subr.bf16.mxu0 0
      %906 = vmatpush1.bf16.msra.mxu0 %v868
      %907 = vmatprep.subr.bf16.mxu0 0
      %908 = vmatpush1.bf16.msra.mxu0 %v869
      %909 = vmatprep.subr.bf16.mxu0 0
      %910 = vmatpush1.bf16.msra.mxu0 %v870
      %911 = vmatprep.subr.bf16.mxu0 0
      %912 = vmatpush1.bf16.msra.mxu0 %v871
      %913 = vmatprep.subr.bf16.mxu0 0
      %914 = vmatpush1.bf16.msra.mxu0 %v872
      %915 = vmatprep.subr.bf16.mxu0 0
      %916 = vmatpush1.bf16.msra.mxu0 %v873
      %917 = vmatprep.subr.bf16.mxu0 0
      %918 = vmatpush1.bf16.msra.mxu0 %v874
      %919 = vmatprep.subr.bf16.mxu0 0
      %920 = vmatpush1.bf16.msra.mxu0 %v875
      %921 = vmatprep.subr.bf16.mxu0 0
      %922 = vmatpush1.bf16.msra.mxu0 %v876
      %923 = vmatprep.subr.bf16.mxu0 0
      %924 = vmatpush1.bf16.msra.mxu0 %v877
      %925 = vmatprep.subr.bf16.mxu0 0
      %926 = vmatpush1.bf16.msra.mxu0 %v878
      %927 = vmatprep.mubr.bf16.mxu0 %v766
      %928 = vmatmul.mubr.bf16.gmra.mrb[0].mxu0 %v765
      %v929 = vpop.f32.mrb[0].mxu0
      %v930 = vadd.f32 0.0, %v929
      %v931 = vpop.f32.mrb[0].mxu0
      %v932 = vpop.f32.mrb[0].mxu0
      %v933 = vadd.f32 0.0, %v932
      %v934 = vpop.f32.mrb[0].mxu0
      %935 = vdwg.mxu0
      %v936 = vadd.f32 %v763, %v930
      %v937 = vadd.f32 %v764, %v933
      %938 = vst [vmem:[#allocation2] sm:$0xff] %v936
      %939 = vst [vmem:[#allocation2 + $0x8] sm:$0xff] %v937
      %v940 = vld [vmem:[#allocation2] sm:$0xff]
      %v941 = vld [vmem:[#allocation2 + $0x8] sm:$0xff]
      %v942 = vld [vmem:[%s9] sm:$0x1]
      %v944 = vlaneseq
      %v945 = vshrl.u32 %v944, 7
      %v946 = vsub.s32 0, %v945
      %v947 = vrot.slane %v942, %v946
      %v949 = vadd.f32 %v940, %v947
      %v950 = vadd.f32 %v941, %v947
      %v951 = vadd.f32 %v603, %v949
      %v952 = vadd.f32 %v604, %v950
      %v953 = vld [vmem:[%s10] sm:$0x1]
      %v954 = vld [vmem:[%s11] sm:$0x1]
      %955 = vadd.xlane.f32.xlu0 %v951
      %v956 = vpop.xlane.xlu0 %955
      %957 = vadd.xlane.f32.xlu0 %v952
      %v958 = vpop.xlane.xlu0 %957
      %v959 = vmul.f32 %v956, %v570
      %v960 = vmul.f32 %v958, %v570
      %v961 = vsub.f32 %v951, %v959
      %v962 = vsub.f32 %v952, %v960
      %v963 = vmul.f32 %v961, %v961
      %v964 = vmul.f32 %v962, %v962
      %965 = vadd.xlane.f32.xlu0 %v963
      %v966 = vpop.xlane.xlu0 %965
      %967 = vadd.xlane.f32.xlu0 %v964
      %v968 = vpop.xlane.xlu0 %967
      %v969 = vmul.f32 %v966, %v570
      %v970 = vmul.f32 %v968, %v570
      %v971 = vadd.f32 %v969, 1e-05
      %v972 = vadd.f32 %v970, 1e-05
      %v973 = vrsqrt.pop %v971
      %v974 = vrsqrt.pop %v972
      %v975 = vmul.f32 %v961, %v973
      %v976 = vmul.f32 %v962, %v974
      %v978 = vlaneseq
      %v979 = vshrl.u32 %v978, 7
      %v980 = vsub.s32 0, %v979
      %v981 = vrot.slane %v953, %v980
      %v983 = vmul.f32 %v975, %v981
      %v984 = vmul.f32 %v976, %v981
      %v986 = vlaneseq
      %v987 = vshrl.u32 %v986, 7
      %v988 = vsub.s32 0, %v987
      %v989 = vrot.slane %v954, %v988
      %v991 = vadd.f32 %v983, %v989
      %v992 = vadd.f32 %v984, %v989
      %993 = vst [vmem:[%s437] sm:$0xff] %v991
      %994 = vst [vmem:[%s437 + $0x8] sm:$0xff] %v992
      %s995 = smul.u32 2, %s23
      %p996 = scmp.lt.s32.totalorder %s995, 3
      %s997 = scalar_select %p996, %s995, 3
      %s998 = smul.addr %s997, 8
      %s999 = scalar_lea.vmem %s12, %s998
      // Predicated region
      $region69: #{encoder_forward.8} parent=67 // pred_check
        %p1000 = pneg %p303
      $region70: #{encoder_forward.8} parent=67 // pred_check_branch
        %1002 = sbr.rel (%p1000) target = $region72
      $region71: #{encoder_forward.8} parent=67 // pred_region
        %s1003 = smul.u32 2, %s23
      $region72: #{encoder_forward.8} parent=67 // pred_fallthru
        _
    $region68: #{encoder_forward.8} parent=5 // pred_fallthru
      _
    %p1004 = scmp.le.s32.totalorder 2, %s18
    // Predicated region
    $region73: #{encoder_forward.8} parent=5 // pred_check
      %p1005 = pneg %p1004
    $region74: #{encoder_forward.8} parent=5 // pred_check_branch
      %1007 = sbr.rel (%p1005) target = $region76
    $region75: #{encoder_forward.8} parent=5 // pred_region
      %s1008 = ssub.s32 %s18, 2
      // Predicated region
      $region77: #{encoder_forward.8} parent=75 // pred_check
        %p1009 = pneg %p309
      $region78: #{encoder_forward.8} parent=75 // pred_check_branch
        %1011 = sbr.rel (%p1009) target = $region80
      $region79: #{encoder_forward.8} parent=75 // pred_region
        %s1012 = smul.u32 2, %s24
        %p1013 = scmp.lt.s32.totalorder %s1012, 3
        %s1014 = scalar_select %p1013, %s1012, 3
        %s1015 = smul.addr %s1014, 8
        %s1016 = scalar_lea.vmem %s12, %s1015
      $region80: #{encoder_forward.8} parent=75 // pred_fallthru
        _
    $region76: #{encoder_forward.8} parent=5 // pred_fallthru
      _
  $region6: #{encoder_forward.8} parent=0 // loop_footer
    %s22 = sadd.s32 1, %s18
  $region7: #{encoder_forward.8} parent=0 // loop_footer_branch
    %17 = sbr.rel target = $region3
  $region8: #{encoder_forward.8} parent=0 // loop_exit
    _

// kernel: encoder_forward.11
$region0: #{encoder_forward.11}
  #allocation0 [shape = 'u32[]', space=smem, size = 0x4, offset = 0x4, fixed_abs, tag = 'smem constant byte address 0x4 - core index']
  #allocation1 [shape = 'u32[144,128]{1,0:T(1,128)}', space=vmem, size = 0x12000, scoped, tag = 'internal scratch']
  #allocation2 [shape = 'f32[16,128]{1,0:T(8,128)}', space=vmem, size = 0x2000, scoped, tag = 'scratch operand']
  %s0 = inlined_call_operand.vmem [shape: bf16[32,128], index: 0, kind: input, shape index: {}]
  %s1 = inlined_call_operand.vmem [shape: f32[32,128], index: 1, kind: input, shape index: {}]
  %s2 = inlined_call_operand.vmem [shape: bf16[128,128], index: 2, kind: input, shape index: {}]
  %s3 = inlined_call_operand.vmem [shape: f32[1,128], index: 3, kind: input, shape index: {}]
  %s4 = inlined_call_operand.vmem [shape: f32[1,128], index: 4, kind: input, shape index: {}]
  %s5 = inlined_call_operand.vmem [shape: f32[1,128], index: 5, kind: input, shape index: {}]
  %s6 = inlined_call_operand.vmem [shape: bf16[128,256], index: 6, kind: input, shape index: {}]
  %s7 = inlined_call_operand.vmem [shape: f32[1,256], index: 7, kind: input, shape index: {}]
  %s8 = inlined_call_operand.vmem [shape: bf16[256,128], index: 8, kind: input, shape index: {}]
  %s9 = inlined_call_operand.vmem [shape: f32[1,128], index: 9, kind: input, shape index: {}]
  %s10 = inlined_call_operand.vmem [shape: f32[1,128], index: 10, kind: input, shape index: {}]
  %s11 = inlined_call_operand.vmem [shape: f32[1,128], index: 11, kind: input, shape index: {}]
  %s12 = inlined_call_operand.hbm [shape: f32[32,128], index: 12, kind: output, shape index: {}]
  %s13 = sld [smem:[#allocation0]]
  $region81: #{encoder_forward.11} parent=0
    _
  %s15 = ssub.s32 1, %s13
  %s16 = scalar_select 0, %s15, %s13
  $region1: #{encoder_forward.11} parent=0
    #allocation3 [shape = 'u8[16384]{0}', space=vmem, size = 0x4000, scoped, tag = 'output window, operand 0']
    #allocation4 [shape = 's32[2]{0}', space=sflag, size = 0x8, scoped, tag = 'scoped memory for encoder_forward.11']
    %17 = vsyncpa [#allocation4], 0
    %s18 = scalar_lea.sflag [#allocation4], 1
    %19 = vsyncpa %s18, 0
    loop: start=0, step=1, limit=4
    $region2: #{encoder_forward.11} parent=1 // loop_pre_header
      _
    $region3: #{encoder_forward.11} parent=1 // loop_header
      %s21 = sphi 0, %s25
      %p22 = scmp.ge.s32.totalorder %s21, 4
      %s31 = sphi 0, %s33
      %s34 = sphi 0, %s31
      %s35 = sphi 0, %s34
      %s51 = sphi 0, %s35
      %s57 = sphi 0, %s59
      %s60 = sphi 0, %s57
      %s61 = sphi 0, %s60
      %s77 = sphi 0, %s61
      %s81 = sphi 0, %s81
      %s83 = sphi 0, %s81
      %s84 = sphi 0, %s83
      %s98 = sphi 0, %s84
      %s102 = sphi 0, %s102
      %s104 = sphi 0, %s102
      %s105 = sphi 0, %s104
      %s119 = sphi 0, %s105
      %s123 = sphi 0, %s123
      %s125 = sphi 0, %s123
      %s126 = sphi 0, %s125
      %s140 = sphi 0, %s126
      %s144 = sphi 0, %s144
      %s146 = sphi 0, %s144
      %s147 = sphi 0, %s146
      %s161 = sphi 0, %s147
      %s165 = sphi 0, %s165
      %s167 = sphi 0, %s165
      %s168 = sphi 0, %s167
      %s182 = sphi 0, %s168
      %s186 = sphi 0, %s186
      %s188 = sphi 0, %s186
      %s189 = sphi 0, %s188
      %s203 = sphi 0, %s189
      %s207 = sphi 0, %s207
      %s209 = sphi 0, %s207
      %s210 = sphi 0, %s209
      %s224 = sphi 0, %s210
      %s228 = sphi 0, %s228
      %s230 = sphi 0, %s228
      %s231 = sphi 0, %s230
      %s245 = sphi 0, %s231
      %s249 = sphi 0, %s249
      %s251 = sphi 0, %s249
      %s252 = sphi 0, %s251
      %s266 = sphi 0, %s252
      %s270 = sphi 0, %s270
      %s272 = sphi 0, %s270
      %s273 = sphi 0, %s272
      %s287 = sphi 0, %s273
      %s293 = sphi 0, %s295
      %s296 = sphi 0, %s293
      %s297 = sphi 0, %s296
      %s313 = sphi 0, %s297
    $region4: #{encoder_forward.11} parent=1 // loop_header_branch
      %24 = sbr.rel (%p22) target = $region8
    $region5: #{encoder_forward.11} parent=1 // loop_body
      %s26 = ssub.s32 %s21, 1
      %s27 = ssub.s32 %s21, 2
      %s28 = sadd.s32 %s21, 1
      %s29 = ssub.s32 %s21, %s28
      %p30 = scmp.eq.s32.totalorder %s29, 0
      %s32 = sadd.s32 %s31, 1
      %s33 = scalar_select %p30, %s31, %s32
      %p36 = pneg %p30
      %p37 = scmp.eq.s32.totalorder %s21, 1
      %p38 = por %p36, %p37
      %p39 = scmp.ne.s32.totalorder %s31, %s34
      %p40 = scmp.eq.s32.totalorder %s21, 0
      %p41 = por %p39, %p40
      %p42 = scmp.ne.s32.totalorder %s31, %s34
      %p43 = scmp.eq.s32.totalorder %s26, 1
      %p44 = por %p42, %p43
      %p45 = scmp.ne.s32.totalorder %s34, %s35
      %p46 = scmp.eq.s32.totalorder %s26, 0
      %p47 = por %p45, %p46
      %p48 = scmp.ne.s32.totalorder %s34, %s35
      %p49 = scmp.eq.s32.totalorder %s27, 1
      %p50 = por %p48, %p49
      %p52 = scmp.ne.s32.totalorder %s35, %s51
      %p53 = scmp.eq.s32.totalorder %s27, 0
      %p54 = por %p52, %p53
      %s55 = ssub.s32 %s21, %s28
      %p56 = scmp.eq.s32.totalorder %s55, 0
      %s58 = sadd.s32 %s57, 1
      %s59 = scalar_select %p56, %s57, %s58
      %p62 = pneg %p56
      %p63 = scmp.eq.s32.totalorder %s21, 1
      %p64 = por %p62, %p63
      %p65 = scmp.ne.s32.totalorder %s57, %s60
      %p66 = scmp.eq.s32.totalorder %s21, 0
      %p67 = por %p65, %p66
      %p68 = scmp.ne.s32.totalorder %s57, %s60
      %p69 = scmp.eq.s32.totalorder %s26, 1
      %p70 = por %p68, %p69
      %p71 = scmp.ne.s32.totalorder %s60, %s61
      %p72 = scmp.eq.s32.totalorder %s26, 0
      %p73 = por %p71, %p72
      %p74 = scmp.ne.s32.totalorder %s60, %s61
      %p75 = scmp.eq.s32.totalorder %s27, 1
      %p76 = por %p74, %p75
      %p78 = scmp.ne.s32.totalorder %s61, %s77
      %p79 = scmp.eq.s32.totalorder %s27, 0
      %p80 = por %p78, %p79
      %s82 = sadd.s32 %s81, 1
      %p85 = scmp.eq.s32.totalorder %s21, 1
      %p86 = scmp.ne.s32.totalorder %s81, %s83
      %p87 = scmp.eq.s32.totalorder %s21, 0
      %p88 = por %p86, %p87
      %p89 = scmp.ne.s32.totalorder %s81, %s83
      %p90 = scmp.eq.s32.totalorder %s26, 1
      %p91 = por %p89, %p90
      %p92 = scmp.ne.s32.totalorder %s83, %s84
      %p93 = scmp.eq.s32.totalorder %s26, 0
      %p94 = por %p92, %p93
      %p95 = scmp.ne.s32.totalorder %s83, %s84
      %p96 = scmp.eq.s32.totalorder %s27, 1
      %p97 = por %p95, %p96
      %p99 = scmp.ne.s32.totalorder %s84, %s98
      %p100 = scmp.eq.s32.totalorder %s27, 0
      %p101 = por %p99, %p100
      %s103 = sadd.s32 %s102, 1
      %p106 = scmp.eq.s32.totalorder %s21, 1
      %p107 = scmp.ne.s32.totalorder %s102, %s104
      %p108 = scmp.eq.s32.totalorder %s21, 0
      %p109 = por %p107, %p108
      %p110 = scmp.ne.s32.totalorder %s102, %s104
      %p111 = scmp.eq.s32.totalorder %s26, 1
      %p112 = por %p110, %p111
      %p113 = scmp.ne.s32.totalorder %s104, %s105
      %p114 = scmp.eq.s32.totalorder %s26, 0
      %p115 = por %p113, %p114
      %p116 = scmp.ne.s32.totalorder %s104, %s105
      %p117 = scmp.eq.s32.totalorder %s27, 1
      %p118 = por %p116, %p117
      %p120 = scmp.ne.s32.totalorder %s105, %s119
      %p121 = scmp.eq.s32.totalorder %s27, 0
      %p122 = por %p120, %p121
      %s124 = sadd.s32 %s123, 1
      %p127 = scmp.eq.s32.totalorder %s21, 1
      %p128 = scmp.ne.s32.totalorder %s123, %s125
      %p129 = scmp.eq.s32.totalorder %s21, 0
      %p130 = por %p128, %p129
      %p131 = scmp.ne.s32.totalorder %s123, %s125
      %p132 = scmp.eq.s32.totalorder %s26, 1
      %p133 = por %p131, %p132
      %p134 = scmp.ne.s32.totalorder %s125, %s126
      %p135 = scmp.eq.s32.totalorder %s26, 0
      %p136 = por %p134, %p135
      %p137 = scmp.ne.s32.totalorder %s125, %s126
      %p138 = scmp.eq.s32.totalorder %s27, 1
      %p139 = por %p137, %p138
      %p141 = scmp.ne.s32.totalorder %s126, %s140
      %p142 = scmp.eq.s32.totalorder %s27, 0
      %p143 = por %p141, %p142
      %s145 = sadd.s32 %s144, 1
      %p148 = scmp.eq.s32.totalorder %s21, 1
      %p149 = scmp.ne.s32.totalorder %s144, %s146
      %p150 = scmp.eq.s32.totalorder %s21, 0
      %p151 = por %p149, %p150
      %p152 = scmp.ne.s32.totalorder %s144, %s146
      %p153 = scmp.eq.s32.totalorder %s26, 1
      %p154 = por %p152, %p153
      %p155 = scmp.ne.s32.totalorder %s146, %s147
      %p156 = scmp.eq.s32.totalorder %s26, 0
      %p157 = por %p155, %p156
      %p158 = scmp.ne.s32.totalorder %s146, %s147
      %p159 = scmp.eq.s32.totalorder %s27, 1
      %p160 = por %p158, %p159
      %p162 = scmp.ne.s32.totalorder %s147, %s161
      %p163 = scmp.eq.s32.totalorder %s27, 0
      %p164 = por %p162, %p163
      %s166 = sadd.s32 %s165, 1
      %p169 = scmp.eq.s32.totalorder %s21, 1
      %p170 = scmp.ne.s32.totalorder %s165, %s167
      %p171 = scmp.eq.s32.totalorder %s21, 0
      %p172 = por %p170, %p171
      %p173 = scmp.ne.s32.totalorder %s165, %s167
      %p174 = scmp.eq.s32.totalorder %s26, 1
      %p175 = por %p173, %p174
      %p176 = scmp.ne.s32.totalorder %s167, %s168
      %p177 = scmp.eq.s32.totalorder %s26, 0
      %p178 = por %p176, %p177
      %p179 = scmp.ne.s32.totalorder %s167, %s168
      %p180 = scmp.eq.s32.totalorder %s27, 1
      %p181 = por %p179, %p180
      %p183 = scmp.ne.s32.totalorder %s168, %s182
      %p184 = scmp.eq.s32.totalorder %s27, 0
      %p185 = por %p183, %p184
      %s187 = sadd.s32 %s186, 1
      %p190 = scmp.eq.s32.totalorder %s21, 1
      %p191 = scmp.ne.s32.totalorder %s186, %s188
      %p192 = scmp.eq.s32.totalorder %s21, 0
      %p193 = por %p191, %p192
      %p194 = scmp.ne.s32.totalorder %s186, %s188
      %p195 = scmp.eq.s32.totalorder %s26, 1
      %p196 = por %p194, %p195
      %p197 = scmp.ne.s32.totalorder %s188, %s189
      %p198 = scmp.eq.s32.totalorder %s26, 0
      %p199 = por %p197, %p198
      %p200 = scmp.ne.s32.totalorder %s188, %s189
      %p201 = scmp.eq.s32.totalorder %s27, 1
      %p202 = por %p200, %p201
      %p204 = scmp.ne.s32.totalorder %s189, %s203
      %p205 = scmp.eq.s32.totalorder %s27, 0
      %p206 = por %p204, %p205
      %s208 = sadd.s32 %s207, 1
      %p211 = scmp.eq.s32.totalorder %s21, 1
      %p212 = scmp.ne.s32.totalorder %s207, %s209
      %p213 = scmp.eq.s32.totalorder %s21, 0
      %p214 = por %p212, %p213
      %p215 = scmp.ne.s32.totalorder %s207, %s209
      %p216 = scmp.eq.s32.totalorder %s26, 1
      %p217 = por %p215, %p216
      %p218 = scmp.ne.s32.totalorder %s209, %s210
      %p219 = scmp.eq.s32.totalorder %s26, 0
      %p220 = por %p218, %p219
      %p221 = scmp.ne.s32.totalorder %s209, %s210
      %p222 = scmp.eq.s32.totalorder %s27, 1
      %p223 = por %p221, %p222
      %p225 = scmp.ne.s32.totalorder %s210, %s224
      %p226 = scmp.eq.s32.totalorder %s27, 0
      %p227 = por %p225, %p226
      %s229 = sadd.s32 %s228, 1
      %p232 = scmp.eq.s32.totalorder %s21, 1
      %p233 = scmp.ne.s32.totalorder %s228, %s230
      %p234 = scmp.eq.s32.totalorder %s21, 0
      %p235 = por %p233, %p234
      %p236 = scmp.ne.s32.totalorder %s228, %s230
      %p237 = scmp.eq.s32.totalorder %s26, 1
      %p238 = por %p236, %p237
      %p239 = scmp.ne.s32.totalorder %s230, %s231
      %p240 = scmp.eq.s32.totalorder %s26, 0
      %p241 = por %p239, %p240
      %p242 = scmp.ne.s32.totalorder %s230, %s231
      %p243 = scmp.eq.s32.totalorder %s27, 1
      %p244 = por %p242, %p243
      %p246 = scmp.ne.s32.totalorder %s231, %s245
      %p247 = scmp.eq.s32.totalorder %s27, 0
      %p248 = por %p246, %p247
      %s250 = sadd.s32 %s249, 1
      %p253 = scmp.eq.s32.totalorder %s21, 1
      %p254 = scmp.ne.s32.totalorder %s249, %s251
      %p255 = scmp.eq.s32.totalorder %s21, 0
      %p256 = por %p254, %p255
      %p257 = scmp.ne.s32.totalorder %s249, %s251
      %p258 = scmp.eq.s32.totalorder %s26, 1
      %p259 = por %p257, %p258
      %p260 = scmp.ne.s32.totalorder %s251, %s252
      %p261 = scmp.eq.s32.totalorder %s26, 0
      %p262 = por %p260, %p261
      %p263 = scmp.ne.s32.totalorder %s251, %s252
      %p264 = scmp.eq.s32.totalorder %s27, 1
      %p265 = por %p263, %p264
      %p267 = scmp.ne.s32.totalorder %s252, %s266
      %p268 = scmp.eq.s32.totalorder %s27, 0
      %p269 = por %p267, %p268
      %s271 = sadd.s32 %s270, 1
      %p274 = scmp.eq.s32.totalorder %s21, 1
      %p275 = scmp.ne.s32.totalorder %s270, %s272
      %p276 = scmp.eq.s32.totalorder %s21, 0
      %p277 = por %p275, %p276
      %p278 = scmp.ne.s32.totalorder %s270, %s272
      %p279 = scmp.eq.s32.totalorder %s26, 1
      %p280 = por %p278, %p279
      %p281 = scmp.ne.s32.totalorder %s272, %s273
      %p282 = scmp.eq.s32.totalorder %s26, 0
      %p283 = por %p281, %p282
      %p284 = scmp.ne.s32.totalorder %s272, %s273
      %p285 = scmp.eq.s32.totalorder %s27, 1
      %p286 = por %p284, %p285
      %p288 = scmp.ne.s32.totalorder %s273, %s287
      %p289 = scmp.eq.s32.totalorder %s27, 0
      %p290 = por %p288, %p289
      %s291 = ssub.s32 %s21, %s28
      %p292 = scmp.eq.s32.totalorder %s291, 0
      %s294 = sadd.s32 %s293, 1
      %s295 = scalar_select %p292, %s293, %s294
      %p298 = pneg %p292
      %p299 = scmp.eq.s32.totalorder %s21, 1
      %p300 = por %p298, %p299
      %p301 = scmp.ne.s32.totalorder %s293, %s296
      %p302 = scmp.eq.s32.totalorder %s21, 0
      %p303 = por %p301, %p302
      %p304 = scmp.ne.s32.totalorder %s293, %s296
      %p305 = scmp.eq.s32.totalorder %s26, 1
      %p306 = por %p304, %p305
      %p307 = scmp.ne.s32.totalorder %s296, %s297
      %p308 = scmp.eq.s32.totalorder %s26, 0
      %p309 = por %p307, %p308
      %p310 = scmp.ne.s32.totalorder %s296, %s297
      %p311 = scmp.eq.s32.totalorder %s27, 1
      %p312 = por %p310, %p311
      %p314 = scmp.ne.s32.totalorder %s297, %s313
      %p315 = scmp.eq.s32.totalorder %s27, 0
      %p316 = por %p314, %p315
      %p317 = scmp.le.s32.totalorder 1, %s21
      %p318 = scmp.lt.s32.totalorder %s21, 3
      %p319 = pnand %p317, %p318
      %p320 = pneg %p319
      // Predicated region
      $region9: #{encoder_forward.11} parent=5 // pred_check
        _
      $region10: #{encoder_forward.11} parent=5 // pred_check_branch
        %322 = sbr.rel (%p319) target = $region12
      $region11: #{encoder_forward.11} parent=5 // pred_region
        %s323 = ssub.s32 %s21, 1
        // Predicated region
        $region13: #{encoder_forward.11} parent=11 // pred_check
          %p324 = pneg %p94
        $region14: #{encoder_forward.11} parent=11 // pred_check_branch
          %326 = sbr.rel (%p324) target = $region16
        $region15: #{encoder_forward.11} parent=11 // pred_region
          _
        $region16: #{encoder_forward.11} parent=11 // pred_fallthru
          _
        // Predicated region
        $region17: #{encoder_forward.11} parent=11 // pred_check
          %p327 = pneg %p115
        $region18: #{encoder_forward.11} parent=11 // pred_check_branch
          %329 = sbr.rel (%p327) target = $region20
        $region19: #{encoder_forward.11} parent=11 // pred_region
          _
        $region20: #{encoder_forward.11} parent=11 // pred_fallthru
          _
        // Predicated region
        $region21: #{encoder_forward.11} parent=11 // pred_check
          %p330 = pneg %p136
        $region22: #{encoder_forward.11} parent=11 // pred_check_branch
          %332 = sbr.rel (%p330) target = $region24
        $region23: #{encoder_forward.11} parent=11 // pred_region
          _
        $region24: #{encoder_forward.11} parent=11 // pred_fallthru
          _
        // Predicated region
        $region25: #{encoder_forward.11} parent=11 // pred_check
          %p333 = pneg %p157
        $region26: #{encoder_forward.11} parent=11 // pred_check_branch
          %335 = sbr.rel (%p333) target = $region28
        $region27: #{encoder_forward.11} parent=11 // pred_region
          _
        $region28: #{encoder_forward.11} parent=11 // pred_fallthru
          _
        // Predicated region
        $region29: #{encoder_forward.11} parent=11 // pred_check
          %p336 = pneg %p178
        $region30: #{encoder_forward.11} parent=11 // pred_check_branch
          %338 = sbr.rel (%p336) target = $region32
        $region31: #{encoder_forward.11} parent=11 // pred_region
          _
        $region32: #{encoder_forward.11} parent=11 // pred_fallthru
          _
        // Predicated region
        $region33: #{encoder_forward.11} parent=11 // pred_check
          %p339 = pneg %p199
        $region34: #{encoder_forward.11} parent=11 // pred_check_branch
          %341 = sbr.rel (%p339) target = $region36
        $region35: #{encoder_forward.11} parent=11 // pred_region
          _
        $region36: #{encoder_forward.11} parent=11 // pred_fallthru
          _
        // Predicated region
        $region37: #{encoder_forward.11} parent=11 // pred_check
          %p342 = pneg %p220
        $region38: #{encoder_forward.11} parent=11 // pred_check_branch
          %344 = sbr.rel (%p342) target = $region40
        $region39: #{encoder_forward.11} parent=11 // pred_region
          _
        $region40: #{encoder_forward.11} parent=11 // pred_fallthru
          _
        // Predicated region
        $region41: #{encoder_forward.11} parent=11 // pred_check
          %p345 = pneg %p241
        $region42: #{encoder_forward.11} parent=11 // pred_check_branch
          %347 = sbr.rel (%p345) target = $region44
        $region43: #{encoder_forward.11} parent=11 // pred_region
          _
        $region44: #{encoder_forward.11} parent=11 // pred_fallthru
          _
        // Predicated region
        $region45: #{encoder_forward.11} parent=11 // pred_check
          %p348 = pneg %p262
        $region46: #{encoder_forward.11} parent=11 // pred_check_branch
          %350 = sbr.rel (%p348) target = $region48
        $region47: #{encoder_forward.11} parent=11 // pred_region
          _
        $region48: #{encoder_forward.11} parent=11 // pred_fallthru
          _
        // Predicated region
        $region49: #{encoder_forward.11} parent=11 // pred_check
          %p351 = pneg %p283
        $region50: #{encoder_forward.11} parent=11 // pred_check_branch
          %353 = sbr.rel (%p351) target = $region52
        $region51: #{encoder_forward.11} parent=11 // pred_region
          _
        $region52: #{encoder_forward.11} parent=11 // pred_fallthru
          _
      $region12: #{encoder_forward.11} parent=5 // pred_fallthru
        _
      %p354 = scmp.lt.s32.totalorder %s21, 2
      // Predicated region
      $region53: #{encoder_forward.11} parent=5 // pred_check
        %p355 = pneg %p354
      $region54: #{encoder_forward.11} parent=5 // pred_check_branch
        %357 = sbr.rel (%p355) target = $region56
      $region55: #{encoder_forward.11} parent=5 // pred_region
        // Predicated region
        $region57: #{encoder_forward.11} parent=55 // pred_check
          %p358 = pneg %p41
        $region58: #{encoder_forward.11} parent=55 // pred_check_branch
          %360 = sbr.rel (%p358) target = $region60
        $region59: #{encoder_forward.11} parent=55 // pred_region
          %s361 = smul.u32 2, %s21
          %p362 = scmp.lt.s32.totalorder %s361, 3
          %s363 = scalar_select %p362, %s361, 3
          %s364 = smul.addr %s363, 4
          %s365 = scalar_lea.vmem %s0, %s364
          %s366 = smul.u32 2, %s21
        $region60: #{encoder_forward.11} parent=55 // pred_fallthru
          _
        // Predicated region
        $region61: #{encoder_forward.11} parent=55 // pred_check
          %p367 = pneg %p67
        $region62: #{encoder_forward.11} parent=55 // pred_check_branch
          %369 = sbr.rel (%p367) target = $region64
        $region63: #{encoder_forward.11} parent=55 // pred_region
          %s370 = smul.u32 2, %s21
          %p371 = scmp.lt.s32.totalorder %s370, 3
          %s372 = scalar_select %p371, %s370, 3
          %s373 = smul.addr %s372, 8
          %s374 = scalar_lea.vmem %s1, %s373
          %s375 = smul.u32 2, %s21
        $region64: #{encoder_forward.11} parent=55 // pred_fallthru
          _
      $region56: #{encoder_forward.11} parent=5 // pred_fallthru
        _
      %p376 = scmp.le.s32.totalorder 1, %s21
      %p377 = scmp.lt.s32.totalorder %s21, 3
      %p378 = pnand %p376, %p377
      %p379 = pneg %p378
      // Predicated region
      $region65: #{encoder_forward.11} parent=5 // pred_check
        _
      $region66: #{encoder_forward.11} parent=5 // pred_check_branch
        %381 = sbr.rel (%p378) target = $region68
      $region67: #{encoder_forward.11} parent=5 // pred_region
        %s382 = ssub.s32 %s21, 1
        %s383 = smul.u32 2, %s26
        %p384 = scmp.lt.s32.totalorder %s383, 3
        %s385 = scalar_select %p384, %s383, 3
        %s386 = smul.addr %s385, 4
        %s387 = scalar_lea.vmem %s0, %s386
        %p388 = pneg %p47
        %p389 = pneg %p44
        %s390 = smul.u32 2, %s26
        %p391 = scmp.lt.s32.totalorder %s390, 3
        %s392 = scalar_select %p391, %s390, 3
        %s393 = smul.addr %s392, 8
        %s394 = scalar_lea.vmem %s1, %s393
        %p395 = pneg %p73
        %p396 = pneg %p70
        %p397 = pneg %p94
        %p398 = pneg %p91
        %p399 = pneg %p115
        %p400 = pneg %p112
        %p401 = pneg %p136
        %p402 = pneg %p133
        %p403 = pneg %p157
        %p404 = pneg %p154
        %p405 = pneg %p178
        %p406 = pneg %p175
        %p407 = pneg %p199
        %p408 = pneg %p196
        %p409 = pneg %p220
        %p410 = pneg %p217
        %p411 = pneg %p241
        %p412 = pneg %p238
        %p413 = pneg %p262
        %p414 = pneg %p259
        %p415 = pneg %p283
        %p416 = pneg %p280
        %p417 = pneg %p309
        %p418 = pneg %p306
        %s419 = sand.u32 %s296, 1
        %s420 = scalar_lea.sflag [#allocation4], %s419
        %s421 = sand.u32 %s296, 1
        %s422 = smul.addr %s421, 16
        %s423 = scalar_lea.vmem [#allocation3], %s422
        %s424 = smul.u32 2, %s26
        %p425 = scmp.lt.s32.totalorder %s424, 3
        %s426 = scalar_select %p425, %s424, 3
        %s427 = smul.addr %s426, 4
        %s428 = scalar_lea.vmem %s0, %s427
        %s429 = smul.u32 2, %s26
        %s430 = smul.u32 2, %s26
        %p431 = scmp.lt.s32.totalorder %s430, 3
        %s432 = scalar_select %p431, %s430, 3
        %s433 = smul.addr %s432, 8
        %s434 = scalar_lea.vmem %s1, %s433
        %s435 = smul.u32 2, %s26
        %s436 = smul.u32 2, %s26
        %v438 = vld [vmem:[%s428] sm:$0xf]
        %v439 = vld [vmem:[%s428 + $0x4] sm:$0xf]
        %v440 = vld [vmem:[%s2] sm:$0xf]
        %v441 = vld [vmem:[%s2 + $0x4] sm:$0xf]
        %v442 = vld [vmem:[%s2 + $0x8] sm:$0xf]
        %v443 = vld [vmem:[%s2 + $0xc] sm:$0xf]
        %v444 = vld [vmem:[%s2 + $0x10] sm:$0xf]
        %v445 = vld [vmem:[%s2 + $0x14] sm:$0xf]
        %v446 = vld [vmem:[%s2 + $0x18] sm:$0xf]
        %v447 = vld [vmem:[%s2 + $0x1c] sm:$0xf]
        %v448 = vld [vmem:[%s2 + $0x20] sm:$0xf]
        %v449 = vld [vmem:[%s2 + $0x24] sm:$0xf]
        %v450 = vld [vmem:[%s2 + $0x28] sm:$0xf]
        %v451 = vld [vmem:[%s2 + $0x2c] sm:$0xf]
        %v452 = vld [vmem:[%s2 + $0x30] sm:$0xf]
        %v453 = vld [vmem:[%s2 + $0x34] sm:$0xf]
        %v454 = vld [vmem:[%s2 + $0x38] sm:$0xf]
        %v455 = vld [vmem:[%s2 + $0x3c] sm:$0xf]
        %v456 = vld [vmem:[%s3] sm:$0x1]
        %v458 = vlaneseq
        %v459 = vshrl.u32 %v458, 7
        %v460 = vsub.s32 0, %v459
        %v461 = vrot.slane %v456, %v460
        %v465 = vunpack.c.l.b16 %v438
        %v466 = vunpack.c.l.b16 %v439
        %v467 = vpack.c.b16 %v466, %v465
        %v485 = vunpack.c.l.b16 %v440
        %v486 = vunpack.c.l.b16 %v441
        %v487 = vunpack.c.l.b16 %v442
        %v488 = vunpack.c.l.b16 %v443
        %v489 = vunpack.c.l.b16 %v444
        %v490 = vunpack.c.l.b16 %v445
        %v491 = vunpack.c.l.b16 %v446
        %v492 = vunpack.c.l.b16 %v447
        %v493 = vunpack.c.l.b16 %v448
        %v494 = vunpack.c.l.b16 %v449
        %v495 = vunpack.c.l.b16 %v450
        %v496 = vunpack.c.l.b16 %v451
        %v497 = vunpack.c.l.b16 %v452
        %v498 = vunpack.c.l.b16 %v453
        %v499 = vunpack.c.l.b16 %v454
        %v500 = vunpack.c.l.b16 %v455
        %v501 = vpack.c.b16 %v486, %v485
        %v502 = vpack.c.b16 %v488, %v487
        %v503 = vpack.c.b16 %v490, %v489
        %v504 = vpack.c.b16 %v492, %v491
        %v505 = vpack.c.b16 %v494, %v493
        %v506 = vpack.c.b16 %v496, %v495
        %v507 = vpack.c.b16 %v498, %v497
        %v508 = vpack.c.b16 %v500, %v499
        %517 = vmatprep.subr.bf16.mxu0 0
        %518 = vmatpush1.bf16.msra.mxu0 %v501
        %519 = vmatprep.subr.bf16.mxu0 0
        %520 = vmatpush1.bf16.msra.mxu0 %v502
        %521 = vmatprep.subr.bf16.mxu0 0
        %522 = vmatpush1.bf16.msra.mxu0 %v503
        %523 = vmatprep.subr.bf16.mxu0 0
        %524 = vmatpush1.bf16.msra.mxu0 %v504
        %525 = vmatprep.subr.bf16.mxu0 0
        %526 = vmatpush1.bf16.msra.mxu0 %v505
        %527 = vmatprep.subr.bf16.mxu0 0
        %528 = vmatpush1.bf16.msra.mxu0 %v506
        %529 = vmatprep.subr.bf16.mxu0 0
        %530 = vmatpush1.bf16.msra.mxu0 %v507
        %531 = vmatprep.subr.bf16.mxu0 0
        %532 = vmatpush1.bf16.msra.mxu0 %v508
        %533 = vmatprep.subr.bf16.mxu0 0
        %534 = vmatpush1.bf16.msra.mxu0 0
        %535 = vmatprep.subr.bf16.mxu0 0
        %536 = vmatpush1.bf16.msra.mxu0 0
        %537 = vmatprep.subr.bf16.mxu0 0
        %538 = vmatpush1.bf16.msra.mxu0 0
        %539 = vmatprep.subr.bf16.mxu0 0
        %540 = vmatpush1.bf16.msra.mxu0 0
        %541 = vmatprep.subr.bf16.mxu0 0
        %542 = vmatpush1.bf16.msra.mxu0 0
        %543 = vmatprep.subr.bf16.mxu0 0
        %544 = vmatpush1.bf16.msra.mxu0 0
        %545 = vmatprep.subr.bf16.mxu0 0
        %546 = vmatpush1.bf16.msra.mxu0 0
        %547 = vmatprep.subr.bf16.mxu0 0
        %548 = vmatpush1.bf16.msra.mxu0 0
        %549 = vmatprep.mubr.bf16.mxu0 0
        %550 = vmatmul.mubr.bf16.gmra.mrb[0].mxu0 %v467
        %v551 = vpop.f32.mrb[0].mxu0
        %v552 = vadd.f32 %v461, %v551
        %v553 = vpop.f32.mrb[0].mxu0
        %v554 = vpop.f32.mrb[0].mxu0
        %v555 = vadd.f32 %v461, %v554
        %v556 = vpop.f32.mrb[0].mxu0
        %557 = vdwg.mxu0
        %v558 = vld [vmem:[%s434] sm:$0xff]
        %v559 = vld [vmem:[%s434 + $0x8] sm:$0xff]
        %v560 = vadd.f32 %v558, %v552
        %v561 = vadd.f32 %v559, %v555
        %v562 = vld [vmem:[%s4] sm:$0x1]
        %v563 = vld [vmem:[%s5] sm:$0x1]
        %564 = vadd.xlane.f32.xlu0 %v560
        %v565 = vpop.xlane.xlu0 %564
        %566 = vadd.xlane.f32.xlu0 %v561
        %v567 = vpop.xlane.xlu0 %566
        %v568 = vrcp.pop 128.0
        %v569 = vmul.f32 %v565, %v568
        %v570 = vmul.f32 %v567, %v568
        %v571 = vsub.f32 %v560, %v569
        %v572 = vsub.f32 %v561, %v570
        %v573 = vmul.f32 %v571, %v571
        %v574 = vmul.f32 %v572, %v572
        %575 = vadd.xlane.f32.xlu0 %v573
        %v576 = vpop.xlane.xlu0 %575
        %577 = vadd.xlane.f32.xlu0 %v574
        %v578 = vpop.xlane.xlu0 %577
        %v579 = vmul.f32 %v576, %v568
        %v580 = vmul.f32 %v578, %v568
        %v581 = vadd.f32 %v579, 1e-05
        %v582 = vadd.f32 %v580, 1e-05
        %v583 = vrsqrt.pop %v581
        %v584 = vrsqrt.pop %v582
        %v585 = vmul.f32 %v571, %v583
        %v586 = vmul.f32 %v572, %v584
        %v588 = vlaneseq
        %v589 = vshrl.u32 %v588, 7
        %v590 = vsub.s32 0, %v589
        %v591 = vrot.slane %v562, %v590
        %v593 = vmul.f32 %v585, %v591
        %v594 = vmul.f32 %v586, %v591
        %v596 = vlaneseq
        %v597 = vshrl.u32 %v596, 7
        %v598 = vsub.s32 0, %v597
        %v599 = vrot.slane %v563, %v598
        %v601 = vadd.f32 %v593, %v599
        %v602 = vadd.f32 %v594, %v599
        %v603 = vpack.c.bf16 %v602, %v601
        %604 = vst [vmem:[#allocation2] sm:$0xff] 0.0
        %605 = vst [vmem:[#allocation2 + $0x8] sm:$0xff] 0.0
        %v606 = vld [vmem:[%s6] sm:$0xff]
        %v607 = vld [vmem:[%s6 + $0x8] sm:$0xff]
        %v608 = vld [vmem:[%s6 + $0x10] sm:$0xff]
        %v609 = vld [vmem:[%s6 + $0x18] sm:$0xff]
        %v610 = vld [vmem:[%s6 + $0x20] sm:$0xff]
        %v611 = vld [vmem:[%s6 + $0x28] sm:$0xff]
        %v612 = vld [vmem:[%s6 + $0x30] sm:$0xff]
        %v613 = vld [vmem:[%s6 + $0x38] sm:$0xff]
        %v614 = vld [vmem:[%s6 + $0x40] sm:$0xff]
        %v615 = vld [vmem:[%s6 + $0x48] sm:$0xff]
        %v616 = vld [vmem:[%s6 + $0x50] sm:$0xff]
        %v617 = vld [vmem:[%s6 + $0x58] sm:$0xff]
        %v618 = vld [vmem:[%s6 + $0x60] sm:$0xff]
        %v619 = vld [vmem:[%s6 + $0x68] sm:$0xff]
        %v620 = vld [vmem:[%s6 + $0x70] sm:$0xff]
        %v621 = vld [vmem:[%s6 + $0x78] sm:$0xff]
        %v622 = vld [vmem:[%s7] sm:$0x3]
        %v624 = vlaneseq
        %v625 = vshrl.u32 %v624, 7
        %v626 = vsub.s32 0, %v625
        %v627 = vrot.slane %v622, %v626
        %v628 = vlaneseq
        %v629 = vshrl.u32 %v628, 7
        %v630 = vsub.s32 1, %v629
        %v631 = vrot.slane %v622, %v630
        %v650 = vunpack.c.l.b16 %v606
        %v651 = vunpack.c.h.b16 %v606
        %v652 = vunpack.c.l.b16 %v607
        %v653 = vunpack.c.h.b16 %v607
        %v654 = vunpack.c.l.b16 %v608
        %v655 = vunpack.c.h.b16 %v608
        %v656 = vunpack.c.l.b16 %v609
        %v657 = vunpack.c.h.b16 %v609
        %v658 = vunpack.c.l.b16 %v610
        %v659 = vunpack.c.h.b16 %v610
        %v660 = vunpack.c.l.b16 %v611
        %v661 = vunpack.c.h.b16 %v611
        %v662 = vunpack.c.l.b16 %v612
        %v663 = vunpack.c.h.b16 %v612
        %v664 = vunpack.c.l.b16 %v613
        %v665 = vunpack.c.h.b16 %v613
        %v666 = vunpack.c.l.b16 %v614
        %v667 = vunpack.c.h.b16 %v614
        %v668 = vunpack.c.l.b16 %v615
        %v669 = vunpack.c.h.b16 %v615
        %v670 = vunpack.c.l.b16 %v616
        %v671 = vunpack.c.h.b16 %v616
        %v672 = vunpack.c.l.b16 %v617
        %v673 = vunpack.c.h.b16 %v617
        %v674 = vunpack.c.l.b16 %v618
        %v675 = vunpack.c.h.b16 %v618
        %v676 = vunpack.c.l.b16 %v619
        %v677 = vunpack.c.h.b16 %v619
        %v678 = vunpack.c.l.b16 %v620
        %v679 = vunpack.c.h.b16 %v620
        %v680 = vunpack.c.l.b16 %v621
        %v681 = vunpack.c.h.b16 %v621
        %v682 = vpack.c.b16 %v652, %v650
        %v683 = vpack.c.b16 %v653, %v651
        %v684 = vpack.c.b16 %v656, %v654
        %v685 = vpack.c.b16 %v657, %v655
        %v686 = vpack.c.b16 %v660, %v658
        %v687 = vpack.c.b16 %v661, %v659
        %v688 = vpack.c.b16 %v664, %v662
        %v689 = vpack.c.b16 %v665, %v663
        %v690 = vpack.c.b16 %v668, %v666
        %v691 = vpack.c.b16 %v669, %v667
        %v692 = vpack.c.b16 %v672, %v670
        %v693 = vpack.c.b16 %v673, %v671
        %v694 = vpack.c.b16 %v676, %v674
        %v695 = vpack.c.b16 %v677, %v675
        %v696 = vpack.c.b16 %v680, %v678
        %v697 = vpack.c.b16 %v681, %v679
        %714 = vmatprep.subr.bf16.mxu0 %v683
        %715 = vmatpush1.bf16.msra.mxu0 %v682
        %716 = vmatprep.subr.bf16.mxu0 %v685
        %717 = vmatpush1.bf16.msra.mxu0 %v684
        %718 = vmatprep.subr.bf16.mxu0 %v687
        %719 = vmatpush1.bf16.msra.mxu0 %v686
        %720 = vmatprep.subr.bf16.mxu0 %v689
        %721 = vmatpush1.bf16.msra.mxu0 %v688
        %722 = vmatprep.subr.bf16.mxu0 %v691
        %723 = vmatpush1.bf16.msra.mxu0 %v690
        %724 = vmatprep.subr.bf16.mxu0 %v693
        %725 = vmatpush1.bf16.msra.mxu0 %v692
        %726 = vmatprep.subr.bf16.mxu0 %v695
        %727 = vmatpush1.bf16.msra.mxu0 %v694
        %728 = vmatprep.subr.bf16.mxu0 %v697
        %729 = vmatpush1.bf16.msra.mxu0 %v696
        %730 = vmatprep.subr.bf16.mxu0 0
        %731 = vmatpush1.bf16.msra.mxu0 0
        %732 = vmatprep.subr.bf16.mxu0 0
        %733 = vmatpush1.bf16.msra.mxu0 0
        %734 = vmatprep.subr.bf16.mxu0 0
        %735 = vmatpush1.bf16.msra.mxu0 0
        %736 = vmatprep.subr.bf16.mxu0 0
        %737 = vmatpush1.bf16.msra.mxu0 0
        %738 = vmatprep.subr.bf16.mxu0 0
        %739 = vmatpush1.bf16.msra.mxu0 0
        %740 = vmatprep.subr.bf16.mxu0 0
        %741 = vmatpush1.bf16.msra.mxu0 0
        %742 = vmatprep.subr.bf16.mxu0 0
        %743 = vmatpush1.bf16.msra.mxu0 0
        %744 = vmatprep.subr.bf16.mxu0 0
        %745 = vmatpush1.bf16.msra.mxu0 0
        %746 = vmatprep.mubr.bf16.mxu0 0
        %747 = vmatmul.mubr.bf16.gmra.mrb[0].mxu0 %v603
        %v748 = vpop.f32.mrb[0].mxu0
        %v749 = vadd.f32 %v627, %v748
        %v750 = vpop.f32.mrb[0].mxu0
        %v751 = vadd.f32 %v631, %v750
        %v752 = vpop.f32.mrb[0].mxu0
        %v753 = vadd.f32 %v627, %v752
        %v754 = vpop.f32.mrb[0].mxu0
        %v755 = vadd.f32 %v631, %v754
        %756 = vdwg.mxu0
        %v757 = vmax.f32 %v749, 0.0
        %v758 = vmax.f32 %v751, 0.0
        %v759 = vmax.f32 %v753, 0.0
        %v760 = vmax.f32 %v755, 0.0
        %v761 = vld [vmem:[#allocation2] sm:$0xff]
        %v762 = vld [vmem:[#allocation2 + $0x8] sm:$0xff]
        %v763 = vpack.c.bf16 %v759, %v757
        %v764 = vpack.c.bf16 %v760, %v758
        %v765 = vld [vmem:[%s8] sm:$0xf]
        %v766 = vld [vmem:[%s8 + $0x4] sm:$0xf]
        %v767 = vld [vmem:[%s8 + $0x8] sm:$0xf]
        %v768 = vld [vmem:[%s8 + $0xc] sm:$0xf]
        %v769 = vld [vmem:[%s8 + $0x10] sm:$0xf]
        %v770 = vld [vmem:[%s8 + $0x14] sm:$0xf]
        %v771 = vld [vmem:[%s8 + $0x18] sm:$0xf]
        %v772 = vld [vmem:[%s8 + $0x1c] sm:$0xf]
        %v773 = vld [vmem:[%s8 + $0x20] sm:$0xf]
        %v774 = vld [vmem:[%s8 + $0x24] sm:$0xf]
        %v775 = vld [vmem:[%s8 + $0x28] sm:$0xf]
        %v776 = vld [vmem:[%s8 + $0x2c] sm:$0xf]
        %v777 = vld [vmem:[%s8 + $0x30] sm:$0xf]
        %v778 = vld [vmem:[%s8 + $0x34] sm:$0xf]
        %v779 = vld [vmem:[%s8 + $0x38] sm:$0xf]
        %v780 = vld [vmem:[%s8 + $0x3c] sm:$0xf]
        %v781 = vld [vmem:[%s8 + $0x40] sm:$0xf]
        %v782 = vld [vmem:[%s8 + $0x44] sm:$0xf]
        %v783 = vld [vmem:[%s8 + $0x48] sm:$0xf]
        %v784 = vld [vmem:[%s8 + $0x4c] sm:$0xf]
        %v785 = vld [vmem:[%s8 + $0x50] sm:$0xf]
        %v786 = vld [vmem:[%s8 + $0x54] sm:$0xf]
        %v787 = vld [vmem:[%s8 + $0x58] sm:$0xf]
        %v788 = vld [vmem:[%s8 + $0x5c] sm:$0xf]
        %v789 = vld [vmem:[%s8 + $0x60] sm:$0xf]
        %v790 = vld [vmem:[%s8 + $0x64] sm:$0xf]
        %v791 = vld [vmem:[%s8 + $0x68] sm:$0xf]
        %v792 = vld [vmem:[%s8 + $0x6c] sm:$0xf]
        %v793 = vld [vmem:[%s8 + $0x70] sm:$0xf]
        %v794 = vld [vmem:[%s8 + $0x74] sm:$0xf]
        %v795 = vld [vmem:[%s8 + $0x78] sm:$0xf]
        %v796 = vld [vmem:[%s8 + $0x7c] sm:$0xf]
        %v829 = vunpack.c.l.b16 %v765
        %v830 = vunpack.c.l.b16 %v766
        %v831 = vunpack.c.l.b16 %v767
        %v832 = vunpack.c.l.b16 %v768
        %v833 = vunpack.c.l.b16 %v769
        %v834 = vunpack.c.l.b16 %v770
        %v835 = vunpack.c.l.b16 %v771
        %v836 = vunpack.c.l.b16 %v772
        %v837 = vunpack.c.l.b16 %v773
        %v838 = vunpack.c.l.b16 %v774
        %v839 = vunpack.c.l.b16 %v775
        %v840 = vunpack.c.l.b16 %v776
        %v841 = vunpack.c.l.b16 %v777
        %v842 = vunpack.c.l.b16 %v778
        %v843 = vunpack.c.l.b16 %v779
        %v844 = vunpack.c.l.b16 %v780
        %v845 = vunpack.c.l.b16 %v781
        %v846 = vunpack.c.l.b16 %v782
        %v847 = vunpack.c.l.b16 %v783
        %v848 = vunpack.c.l.b16 %v784
        %v849 = vunpack.c.l.b16 %v785
        %v850 = vunpack.c.l.b16 %v786
        %v851 = vunpack.c.l.b16 %v787
        %v852 = vunpack.c.l.b16 %v788
        %v853 = vunpack.c.l.b16 %v789
        %v854 = vunpack.c.l.b16 %v790
        %v855 = vunpack.c.l.b16 %v791
        %v856 = vunpack.c.l.b16 %v792
        %v857 = vunpack.c.l.b16 %v793
        %v858 = vunpack.c.l.b16 %v794
        %v859 = vunpack.c.l.b16 %v795
        %v860 = vunpack.c.l.b16 %v796
        %v861 = vpack.c.b16 %v830, %v829
        %v862 = vpack.c.b16 %v832, %v831
        %v863 = vpack.c.b16 %v834, %v833
        %v864 = vpack.c.b16 %v836, %v835
        %v865 = vpack.c.b16 %v838, %v837
        %v866 = vpack.c.b16 %v840, %v839
        %v867 = vpack.c.b16 %v842, %v841
        %v868 = vpack.c.b16 %v844, %v843
        %v869 = vpack.c.b16 %v846, %v845
        %v870 = vpack.c.b16 %v848, %v847
        %v871 = vpack.c.b16 %v850, %v849
        %v872 = vpack.c.b16 %v852, %v851
        %v873 = vpack.c.b16 %v854, %v853
        %v874 = vpack.c.b16 %v856, %v855
        %v875 = vpack.c.b16 %v858, %v857
        %v876 = vpack.c.b16 %v860, %v859
        %893 = vmatprep.subr.bf16.mxu0 0
        %894 = vmatpush1.bf16.msra.mxu0 %v861
        %895 = vmatprep.subr.bf16.mxu0 0
        %896 = vmatpush1.bf16.msra.mxu0 %v862
        %897 = vmatprep.subr.bf16.mxu0 0
        %898 = vmatpush1.bf16.msra.mxu0 %v863
        %899 = vmatprep.subr.bf16.mxu0 0
        %900 = vmatpush1.bf16.msra.mxu0 %v864
        %901 = vmatprep.subr.bf16.mxu0 0
        %902 = vmatpush1.bf16.msra.mxu0 %v865
        %903 = vmatprep.subr.bf16.mxu0 0
        %904 = vmatpush1.bf16.msra.mxu0 %v866
        %905 = vmatprep.subr.bf16.mxu0 0
        %906 = vmatpush1.bf16.msra.mxu0 %v867
        %907 = vmatprep.subr.bf16.mxu0 0
        %908 = vmatpush1.bf16.msra.mxu0 %v868
        %909 = vmatprep.subr.bf16.mxu0 0
        %910 = vmatpush1.bf16.msra.mxu0 %v869
        %911 = vmatprep.subr.bf16.mxu0 0
        %912 = vmatpush1.bf16.msra.mxu0 %v870
        %913 = vmatprep.subr.bf16.mxu0 0
        %914 = vmatpush1.bf16.msra.mxu0 %v871
        %915 = vmatprep.subr.bf16.mxu0 0
        %916 = vmatpush1.bf16.msra.mxu0 %v872
        %917 = vmatprep.subr.bf16.mxu0 0
        %918 = vmatpush1.bf16.msra.mxu0 %v873
        %919 = vmatprep.subr.bf16.mxu0 0
        %920 = vmatpush1.bf16.msra.mxu0 %v874
        %921 = vmatprep.subr.bf16.mxu0 0
        %922 = vmatpush1.bf16.msra.mxu0 %v875
        %923 = vmatprep.subr.bf16.mxu0 0
        %924 = vmatpush1.bf16.msra.mxu0 %v876
        %925 = vmatprep.mubr.bf16.mxu0 %v764
        %926 = vmatmul.mubr.bf16.gmra.mrb[0].mxu0 %v763
        %v927 = vpop.f32.mrb[0].mxu0
        %v928 = vadd.f32 0.0, %v927
        %v929 = vpop.f32.mrb[0].mxu0
        %v930 = vpop.f32.mrb[0].mxu0
        %v931 = vadd.f32 0.0, %v930
        %v932 = vpop.f32.mrb[0].mxu0
        %933 = vdwg.mxu0
        %v934 = vadd.f32 %v761, %v928
        %v935 = vadd.f32 %v762, %v931
        %936 = vst [vmem:[#allocation2] sm:$0xff] %v934
        %937 = vst [vmem:[#allocation2 + $0x8] sm:$0xff] %v935
        %v938 = vld [vmem:[#allocation2] sm:$0xff]
        %v939 = vld [vmem:[#allocation2 + $0x8] sm:$0xff]
        %v940 = vld [vmem:[%s9] sm:$0x1]
        %v942 = vlaneseq
        %v943 = vshrl.u32 %v942, 7
        %v944 = vsub.s32 0, %v943
        %v945 = vrot.slane %v940, %v944
        %v947 = vadd.f32 %v938, %v945
        %v948 = vadd.f32 %v939, %v945
        %v949 = vadd.f32 %v601, %v947
        %v950 = vadd.f32 %v602, %v948
        %v951 = vld [vmem:[%s10] sm:$0x1]
        %v952 = vld [vmem:[%s11] sm:$0x1]
        %953 = vadd.xlane.f32.xlu0 %v949
        %v954 = vpop.xlane.xlu0 %953
        %955 = vadd.xlane.f32.xlu0 %v950
        %v956 = vpop.xlane.xlu0 %955
        %v957 = vmul.f32 %v954, %v568
        %v958 = vmul.f32 %v956, %v568
        %v959 = vsub.f32 %v949, %v957
        %v960 = vsub.f32 %v950, %v958
        %v961 = vmul.f32 %v959, %v959
        %v962 = vmul.f32 %v960, %v960
        %963 = vadd.xlane.f32.xlu0 %v961
        %v964 = vpop.xlane.xlu0 %963
        %965 = vadd.xlane.f32.xlu0 %v962
        %v966 = vpop.xlane.xlu0 %965
        %v967 = vmul.f32 %v964, %v568
        %v968 = vmul.f32 %v966, %v568
        %v969 = vadd.f32 %v967, 1e-05
        %v970 = vadd.f32 %v968, 1e-05
        %v971 = vrsqrt.pop %v969
        %v972 = vrsqrt.pop %v970
        %v973 = vmul.f32 %v959, %v971
        %v974 = vmul.f32 %v960, %v972
        %v976 = vlaneseq
        %v977 = vshrl.u32 %v976, 7
        %v978 = vsub.s32 0, %v977
        %v979 = vrot.slane %v951, %v978
        %v981 = vmul.f32 %v973, %v979
        %v982 = vmul.f32 %v974, %v979
        %v984 = vlaneseq
        %v985 = vshrl.u32 %v984, 7
        %v986 = vsub.s32 0, %v985
        %v987 = vrot.slane %v952, %v986
        %v989 = vadd.f32 %v981, %v987
        %v990 = vadd.f32 %v982, %v987
        %991 = vst [vmem:[%s423] sm:$0xff] %v989
        %992 = vst [vmem:[%s423 + $0x8] sm:$0xff] %v990
        %s993 = sand.u32 %s296, 1
        %s994 = scalar_lea.sflag [#allocation4], %s993
        %s995 = sand.u32 %s296, 1
        %s996 = smul.addr %s995, 16
        %s997 = scalar_lea.vmem [#allocation3], %s996
        // Predicated region
        $region69: #{encoder_forward.11} parent=67 // pred_check
          %p998 = pneg %p306
        $region70: #{encoder_forward.11} parent=67 // pred_check_branch
          %1000 = sbr.rel (%p998) target = $region72
        $region71: #{encoder_forward.11} parent=67 // pred_region
          %s1001 = smul.u32 2, %s26
          %s1003 = ssub.s32 256, 256
          %1004 = vsyncadd %s994, %s1003
          %s1005 = smul.addr %s1001, 128
          %s1006 = scalar_lea.hbm %s12, %s1005
          %s1007 = sshll.u32 %s997, 4
          %s1008 = int_to_ptr.vmem [resolvable:$true] %s1007
          %1013 = dma.vmem_to_hbm [thread:$0]  %s1008, 256, %s1006, %s994, 128, 128, 8
        $region72: #{encoder_forward.11} parent=67 // pred_fallthru
          _
      $region68: #{encoder_forward.11} parent=5 // pred_fallthru
        _
      %p1014 = scmp.le.s32.totalorder 2, %s21
      // Predicated region
      $region73: #{encoder_forward.11} parent=5 // pred_check
        %p1015 = pneg %p1014
      $region74: #{encoder_forward.11} parent=5 // pred_check_branch
        %1017 = sbr.rel (%p1015) target = $region76
      $region75: #{encoder_forward.11} parent=5 // pred_region
        %s1018 = ssub.s32 %s21, 2
        // Predicated region
        $region77: #{encoder_forward.11} parent=75 // pred_check
          %p1019 = pneg %p312
        $region78: #{encoder_forward.11} parent=75 // pred_check_branch
          %1021 = sbr.rel (%p1019) target = $region80
        $region79: #{encoder_forward.11} parent=75 // pred_region
          %s1022 = sand.u32 %s297, 1
          %s1023 = scalar_lea.sflag [#allocation4], %s1022
          %s1024 = sand.u32 %s297, 1
          %s1025 = smul.addr %s1024, 16
          %s1026 = scalar_lea.vmem [#allocation3], %s1025
          %1027 = dma.done %s1023, 256
        $region80: #{encoder_forward.11} parent=75 // pred_fallthru
          _
      $region76: #{encoder_forward.11} parent=5 // pred_fallthru
        _
    $region6: #{encoder_forward.11} parent=1 // loop_footer
      %s25 = sadd.s32 1, %s21
    $region7: #{encoder_forward.11} parent=1 // loop_footer_branch
      %20 = sbr.rel target = $region3
    $region8: #{encoder_forward.11} parent=1 // loop_exit
      _
    %1028 = vsyncpa [#allocation4], 1
    %s1029 = scalar_lea.sflag [#allocation4], 1
    %1030 = vsyncpa %s1029, 1

</llo_original>
